<compile_context>
chip_gen: v7x
topology: tpu7x:2x2x1
jax: 0.10.0
libtpu: 0.0.40
codegen_flags: <defaults>
</compile_context>

<pallas_src>
import numpy as np
import jax
import jax.numpy as jnp
from jax.experimental import pallas as pl
from jax.experimental.pallas import tpu as pltpu

ALPHA = 10.56            # boundary_distance sharpness (matches the PyTorch module)
TWO_PI = 2.0 * np.pi


def mlp_forward(X, P, *, tile_n=None):
    """X: (N, 3) float32 rows (t, x, y); P: parameter dict (see init_params)."""
    N = int(X.shape[0])
    n_t = int(P["B_t"].shape[-1])
    n_x = int(P["B_x"].shape[-1])
    n_y = int(P["B_y"].shape[-1])
    n_f = n_t + n_x + n_y
    # Reserve one extra angle row for 2*pi*t and round up to a full sublane tile.
    n_fp = ((n_f + 1 + 7) // 8) * 8
    H0 = int(P["w0"].shape[0])

    if tile_n is None:
        # At least 2 grid steps when possible (v7x: 2 TensorCores), cap at 4096
        # (VMEM-friendly on v5e's 16 MiB scoped default / v7x's 64 MiB VMEM).
        half = -(-N // 2)
        tile_n = min(4096, max(128, ((half + 127) // 128) * 128))
    tile_n = int(tile_n)
    assert tile_n % 128 == 0, "tile_n must be a multiple of 128 (lane width)"

    # Lane-dense layout: batch on the last (lane) axis.  No host-side pad.
    Xt = X.T.astype(jnp.float32)                              # (3, N)

    col = lambda a: jnp.asarray(a, jnp.float32).reshape(-1, 1)

    # Stacked angle-frequency column: [B_t; B_x; B_y; 2*pi; 0-pad]  -> (n_fp, 1)
    bstack = jnp.concatenate(
        [col(P["B_t"]), col(P["B_x"]), col(P["B_y"]),
         jnp.full((1, 1), TWO_PI, jnp.float32),
         jnp.zeros((n_fp - n_f - 1, 1), jnp.float32)], axis=0)

    # Reorder / zero-pad w0 columns to match the in-kernel feature order:
    #   [cos block (n_fp) | sin block (n_fp) | x | y]
    # Original column order: [cos_t, sin_t, x, cos_x, sin_x, y, cos_y, sin_y].
    w0 = jnp.asarray(P["w0"], jnp.float32)
    ct = w0[:, 0:n_t]
    st = w0[:, n_t:2 * n_t]
    xc = w0[:, 2 * n_t:2 * n_t + 1]
    cx = w0[:, 2 * n_t + 1:2 * n_t + 1 + n_x]
    sx = w0[:, 2 * n_t + 1 + n_x:2 * n_t + 1 + 2 * n_x]
    yc = w0[:, 2 * n_t + 1 + 2 * n_x:2 * n_t + 2 + 2 * n_x]
    cy = w0[:, 2 * n_t + 2 + 2 * n_x:2 * n_t + 2 + 2 * n_x + n_y]
    sy = w0[:, 2 * n_t + 2 + 2 * n_x + n_y:]
    zpad = jnp.zeros((H0, n_fp - n_f), jnp.float32)
    w0_ff = jnp.concatenate([ct, cx, cy, zpad, st, sx, sy, zpad, xc, yc], axis=1)

    norm_col = col(P["norm"])                                  # (3, 1) VMEM
    amp = jnp.asarray([P["Amplitude"]], dtype=jnp.float32)     # (1,)  SMEM

    vmem_params = [
        norm_col, bstack,
        w0_ff, col(P["b0"]),
        jnp.asarray(P["wr0"], jnp.float32), col(P["br0"]),
        jnp.asarray(P["w1"], jnp.float32), col(P["b1"]),
        jnp.asarray(P["wr1"], jnp.float32), col(P["br1"]),
        jnp.asarray(P["w2"], jnp.float32), col(P["b2"]),
    ]

    def kernel(amp_ref, x_ref, norm_ref, bstack_ref,
               w0_ref, b0_ref, wr0_ref, br0_ref,
               w1_ref, b1_ref, wr1_ref, br1_ref,
               w2_ref, b2_ref, o_ref):
        # One dense normalization multiply: (3,TN) * (3,1)
        Xn = x_ref[...] * norm_ref[...]
        t = Xn[0:1, :]
        x = Xn[1:2, :]
        y = Xn[2:3, :]

        # Dense angle tile: rows [B_t*t | B_x*x | B_y*y | 2*pi*t | 0...]
        row = jax.lax.broadcasted_iota(jnp.int32, (n_fp, 1), 0)
        rep = jnp.where(row < n_t, t,
              jnp.where(row < n_t + n_x, x,
              jnp.where(row < n_f, y, t)))                 # (n_fp, TN)
        ang = bstack_ref[...] * rep                        # (n_fp,1)*(n_fp,TN)
        cos_a = jnp.cos(ang)                               # one dense EUP push
        sin_a = jnp.sin(ang)                               # one dense EUP push

        # Sublane-aligned feature stack: (2*n_fp+2, TN), one first-layer matmul.
        feats = jnp.concatenate([cos_a, sin_a, Xn[1:3, :]], axis=0)

        def mm(w_ref, h):
            return jnp.dot(w_ref[...], h, preferred_element_type=jnp.float32)

        def resblock(h, w_ref, b_ref):
            # ResidualBlock: h + tanh(Linear(tanh(h)))
            return h + jnp.tanh(mm(w_ref, jnp.tanh(h)) + b_ref[...])

        # model = Linear, Res, Linear, Res, Linear  (last Res popped)
        h = mm(w0_ref, feats) + b0_ref[...]                # (H0, TN)
        h = resblock(h, wr0_ref, br0_ref)
        h = mm(w1_ref, h) + b1_ref[...]
        h = resblock(h, wr1_ref, br1_ref)
        yn = mm(w2_ref, h) + b2_ref[...]                   # (3, TN)

        # Boundary distance: one fused tanh on a (4,TN) tile:
        #   rows = [alpha*x, alpha*(1-x), alpha*y, alpha*(1-y)]
        row4 = jax.lax.broadcasted_iota(jnp.int32, (4, 1), 0)
        base = jnp.where(row4 < 2, x, y)
        ab = ALPHA * base
        d = jnp.tanh(jnp.where((row4 % 2) == 0, ab, ALPHA - ab))
        dxi = d[0:1, :]
        dxf = d[1:2, :]
        dyi = d[2:3, :]
        dyf = d[3:4, :]

        # Blend (D * Yn + Yp) and emit one dense (3,TN) store.
        row3 = jax.lax.broadcasted_iota(jnp.int32, (3, 1), 0)
        dff = dxf * dyf
        D = jnp.where(row3 == 0, dxi, jnp.where(row3 == 1, dff, dff * dyi))
        Yp = jnp.where(row3 == 0, amp_ref[0] * sin_a[n_f:n_f + 1, :], 0.0)
        o_ref[...] = (D * yn + Yp).astype(o_ref.dtype)

    smem_spec = pl.BlockSpec(memory_space=pltpu.MemorySpace.SMEM)

    def full_spec(a):
        nd = a.ndim
        return pl.BlockSpec(a.shape, lambda i, _nd=nd: (0,) * _nd)

    in_specs = ([smem_spec, pl.BlockSpec((3, tile_n), lambda i: (0, i))]
                + [full_spec(p) for p in vmem_params])
    out_specs = pl.BlockSpec((3, tile_n), lambda i: (0, i))

    out_t = pl.pallas_call(
        kernel,
        out_shape=jax.ShapeDtypeStruct((3, N), jnp.float32),
        grid=(pl.cdiv(N, tile_n),),
        in_specs=in_specs,
        out_specs=out_specs,
        compiler_params=pltpu.CompilerParams(
            dimension_semantics=("parallel",)),
    )(amp, Xt, *vmem_params)

    return out_t.T                                             # (N, 3)


def mlp_reference(X, P):
    """Pure-JAX replica of the PyTorch forward (weights in (out, in) layout)."""
    Xn = X * P["norm"]
    t, x, y = Xn[:, 0:1], Xn[:, 1:2], Xn[:, 2:3]
    feats = jnp.concatenate(
        [jnp.cos(t * P["B_t"]), jnp.sin(t * P["B_t"]), x,
         jnp.cos(x * P["B_x"]), jnp.sin(x * P["B_x"]), y,
         jnp.cos(y * P["B_y"]), jnp.sin(y * P["B_y"])], axis=1)

    lin = lambda h, w, b: h @ w.T + b
    res = lambda h, w, b: h + jnp.tanh(lin(jnp.tanh(h), w, b))

    h = lin(feats, P["w0"], P["b0"])
    h = res(h, P["wr0"], P["br0"])
    h = lin(h, P["w1"], P["b1"])
    h = res(h, P["wr1"], P["br1"])
    Yn = lin(h, P["w2"], P["b2"])

    e = P["Amplitude"] * jnp.sin(TWO_PI * t)
    uv = jnp.zeros_like(t)
    Yp = jnp.concatenate([e, uv, uv], axis=1)

    dxi = jnp.tanh(x * ALPHA)
    dxf = jnp.tanh((1.0 - x) * ALPHA)
    dyi = jnp.tanh(y * ALPHA)
    dyf = jnp.tanh((1.0 - y) * ALPHA)
    D = jnp.concatenate([dxi, dxf * dyf, dxf * dyi * dyf], axis=1)
    return D * Yn + Yp


def init_params(key, fourier_nodes=(4, 4, 4), hidden=(32, 32)):
    """Deterministic synthetic init matching the module's __init__ shapes.

    Linear weights are kept in PyTorch's (out_features, in_features) layout.
    """
    n_t, n_x, n_y = fourier_nodes
    feat_dim = 2 * (n_t + n_x + n_y) + 2
    layers = [feat_dim, *hidden, 3]

    keys = iter(jax.random.split(key, 64))
    nrm = lambda shape, scale=1.0: (
        scale * jax.random.normal(next(keys), shape, dtype=jnp.float32))

    P = {
        "Amplitude": 0.1,
        "B_t": nrm((1, n_t), 2.0),
        "B_x": nrm((1, n_x), 2.0),
        "B_y": nrm((1, n_y), 2.0),
        "norm": jnp.array([1.0, 0.5, 0.5], dtype=jnp.float32),  # (norm_t, norm_x, norm_y)
    }

    pairs = list(zip(layers, layers[1:]))
    names = [("w0", "b0", "wr0", "br0"),
             ("w1", "b1", "wr1", "br1"),
             ("w2", "b2", None, None)]
    for (fin, fout), (wn, bn, wrn, brn) in zip(pairs, names):
        P[wn] = nrm((fout, fin), 1.0 / np.sqrt(fin))
        P[bn] = nrm((fout,), 0.1)
        if wrn is not None:  # residual block (popped for the final layer)
            P[wrn] = nrm((fout, fout), 1.0 / np.sqrt(fout))
            P[brn] = nrm((fout,), 0.1)
    return P


if __name__ == "__main__":
    key = jax.random.PRNGKey(0)
    kp, kx = jax.random.split(key)
    P = init_params(kp)

    # Case 1: divisible batch (auto tile -> 512, grid of 2 steps).
    N = 1024
    X = jax.random.uniform(kx, (N, 3), dtype=jnp.float32)   # (t, x, y) samples
    out = jax.block_until_ready(mlp_forward(X, P))
    ref = jax.block_until_ready(mlp_reference(X, P))
    assert out.shape == (N, 3) and out.dtype == jnp.float32
    assert np.allclose(np.asarray(out), np.asarray(ref), atol=2e-4, rtol=2e-4)

    # Case 2: ragged batch (exercises the no-host-pad path: Pallas masks the
    # out-of-bounds lanes of the final block).
    N2 = 1000
    X2 = X[:N2]
    out2 = jax.block_until_ready(mlp_forward(X2, P))
    ref2 = jax.block_until_ready(mlp_reference(X2, P))
    assert out2.shape == (N2, 3)
    assert np.allclose(np.asarray(out2), np.asarray(ref2), atol=2e-4, rtol=2e-4)

    print("KERNEL_OK")
</pallas_src>

<mosaic_0001>
module attributes {stable_mosaic.version = 11 : i64} {
  func.func @kernel(%arg0: i32, %arg1: memref<1xf32, #tpu.memory_space<smem>>, %arg2: memref<3x512xf32, #tpu.memory_space<vmem>>, %arg3: memref<3x1xf32, #tpu.memory_space<vmem>>, %arg4: memref<16x1xf32, #tpu.memory_space<vmem>>, %arg5: memref<32x34xf32, #tpu.memory_space<vmem>>, %arg6: memref<32x1xf32, #tpu.memory_space<vmem>>, %arg7: memref<32x32xf32, #tpu.memory_space<vmem>>, %arg8: memref<32x1xf32, #tpu.memory_space<vmem>>, %arg9: memref<32x32xf32, #tpu.memory_space<vmem>>, %arg10: memref<32x1xf32, #tpu.memory_space<vmem>>, %arg11: memref<32x32xf32, #tpu.memory_space<vmem>>, %arg12: memref<32x1xf32, #tpu.memory_space<vmem>>, %arg13: memref<3x32xf32, #tpu.memory_space<vmem>>, %arg14: memref<3x1xf32, #tpu.memory_space<vmem>>, %arg15: memref<3x512xf32, #tpu.memory_space<vmem>>) attributes {dimension_semantics = [#tpu.dimension_semantics<parallel>], iteration_bounds = array<i64: 2>, scalar_prefetch = 0 : i64, scratch_operands = 0 : i64, tpu.core_type = #tpu.core_type<tc>, window_params = [{transform_indices = @transform_0, window_bounds = array<i64: 1>}, {transform_indices = @transform_1, window_bounds = array<i64: 3, 512>}, {pipeline_mode = #tpu.pipeline_mode<synchronous>, transform_indices = @transform_2, window_bounds = array<i64: 3, 1>}, {pipeline_mode = #tpu.pipeline_mode<synchronous>, transform_indices = @transform_3, window_bounds = array<i64: 16, 1>}, {pipeline_mode = #tpu.pipeline_mode<synchronous>, transform_indices = @transform_4, window_bounds = array<i64: 32, 34>}, {pipeline_mode = #tpu.pipeline_mode<synchronous>, transform_indices = @transform_5, window_bounds = array<i64: 32, 1>}, {pipeline_mode = #tpu.pipeline_mode<synchronous>, transform_indices = @transform_6, window_bounds = array<i64: 32, 32>}, {pipeline_mode = #tpu.pipeline_mode<synchronous>, transform_indices = @transform_7, window_bounds = array<i64: 32, 1>}, {pipeline_mode = #tpu.pipeline_mode<synchronous>, transform_indices = @transform_8, window_bounds = array<i64: 32, 32>}, {pipeline_mode = #tpu.pipeline_mode<synchronous>, transform_indices = @transform_9, window_bounds = array<i64: 32, 1>}, {pipeline_mode = #tpu.pipeline_mode<synchronous>, transform_indices = @transform_10, window_bounds = array<i64: 32, 32>}, {pipeline_mode = #tpu.pipeline_mode<synchronous>, transform_indices = @transform_11, window_bounds = array<i64: 32, 1>}, {pipeline_mode = #tpu.pipeline_mode<synchronous>, transform_indices = @transform_12, window_bounds = array<i64: 3, 32>}, {pipeline_mode = #tpu.pipeline_mode<synchronous>, transform_indices = @transform_13, window_bounds = array<i64: 3, 1>}, {transform_indices = @transform_14, window_bounds = array<i64: 3, 512>}]} {
    %c0 = arith.constant 0 : index
    %c0_0 = arith.constant 0 : index
    %0 = vector.load %arg2[%c0, %c0_0] : memref<3x512xf32, #tpu.memory_space<vmem>>, vector<3x512xf32>
    %c0_1 = arith.constant 0 : index
    %c0_2 = arith.constant 0 : index
    %1 = vector.load %arg3[%c0_1, %c0_2] : memref<3x1xf32, #tpu.memory_space<vmem>>, vector<3x1xf32>
    %2 = vector.broadcast %1 : vector<3x1xf32> to vector<3x512xf32>
    %3 = arith.mulf %0, %2 : vector<3x512xf32>
    %4 = vector.extract_strided_slice %3 {offsets = [0, 0], sizes = [1, 512], strides = [1, 1]} : vector<3x512xf32> to vector<1x512xf32>
    %5 = vector.extract_strided_slice %3 {offsets = [1, 0], sizes = [1, 512], strides = [1, 1]} : vector<3x512xf32> to vector<1x512xf32>
    %6 = vector.extract_strided_slice %3 {offsets = [2, 0], sizes = [1, 512], strides = [1, 1]} : vector<3x512xf32> to vector<1x512xf32>
    %7 = tpu.iota {dimensions = array<i32: 0>} : vector<16x1xi32>
    %c4_i32 = arith.constant 4 : i32
    %8 = vector.broadcast %c4_i32 : i32 to vector<16x1xi32>
    %9 = arith.cmpi slt, %7, %8 : vector<16x1xi32>
    %c8_i32 = arith.constant 8 : i32
    %10 = vector.broadcast %c8_i32 : i32 to vector<16x1xi32>
    %11 = arith.cmpi slt, %7, %10 : vector<16x1xi32>
    %c12_i32 = arith.constant 12 : i32
    %12 = vector.broadcast %c12_i32 : i32 to vector<16x1xi32>
    %13 = arith.cmpi slt, %7, %12 : vector<16x1xi32>
    %14 = vector.shape_cast %13 : vector<16x1xi1> to vector<16x1xi1>
    %15 = vector.broadcast %14 : vector<16x1xi1> to vector<16x512xi1>
    %16 = vector.shape_cast %6 : vector<1x512xf32> to vector<1x512xf32>
    %17 = vector.broadcast %16 : vector<1x512xf32> to vector<16x512xf32>
    %18 = vector.shape_cast %4 : vector<1x512xf32> to vector<1x512xf32>
    %19 = vector.broadcast %18 : vector<1x512xf32> to vector<16x512xf32>
    %20 = arith.select %15, %17, %19 : vector<16x512xi1>, vector<16x512xf32>
    %21 = vector.shape_cast %11 : vector<16x1xi1> to vector<16x1xi1>
    %22 = vector.broadcast %21 : vector<16x1xi1> to vector<16x512xi1>
    %23 = vector.shape_cast %5 : vector<1x512xf32> to vector<1x512xf32>
    %24 = vector.broadcast %23 : vector<1x512xf32> to vector<16x512xf32>
    %25 = arith.select %22, %24, %20 : vector<16x512xi1>, vector<16x512xf32>
    %26 = vector.shape_cast %9 : vector<16x1xi1> to vector<16x1xi1>
    %27 = vector.broadcast %26 : vector<16x1xi1> to vector<16x512xi1>
    %28 = vector.shape_cast %4 : vector<1x512xf32> to vector<1x512xf32>
    %29 = vector.broadcast %28 : vector<1x512xf32> to vector<16x512xf32>
    %30 = arith.select %27, %29, %25 : vector<16x512xi1>, vector<16x512xf32>
    %c0_3 = arith.constant 0 : index
    %c0_4 = arith.constant 0 : index
    %31 = vector.load %arg4[%c0_3, %c0_4] : memref<16x1xf32, #tpu.memory_space<vmem>>, vector<16x1xf32>
    %32 = vector.broadcast %31 : vector<16x1xf32> to vector<16x512xf32>
    %33 = arith.mulf %32, %30 : vector<16x512xf32>
    %34 = math.cos %33 : vector<16x512xf32>
    %35 = math.sin %33 : vector<16x512xf32>
    %36 = vector.extract_strided_slice %3 {offsets = [1, 0], sizes = [2, 512], strides = [1, 1]} : vector<3x512xf32> to vector<2x512xf32>
    %37 = tpu.concatenate %34, %35, %36 in 0 : vector<16x512xf32>, vector<16x512xf32>, vector<2x512xf32> -> vector<34x512xf32>
    %c0_5 = arith.constant 0 : index
    %c0_6 = arith.constant 0 : index
    %38 = vector.load %arg5[%c0_5, %c0_6] : memref<32x34xf32, #tpu.memory_space<vmem>>, vector<32x34xf32>
    %cst = arith.constant dense<0.000000e+00> : vector<32x512xf32>
    %39 = tpu.matmul %38, %37, %cst {dimension_numbers = #tpu.dot_dimension_numbers<[1], [0], [0], [1], [0, 0, 1, 1], [], []>} : vector<32x34xf32>, vector<34x512xf32>, vector<32x512xf32> -> vector<32x512xf32>
    %c0_7 = arith.constant 0 : index
    %c0_8 = arith.constant 0 : index
    %40 = vector.load %arg6[%c0_7, %c0_8] : memref<32x1xf32, #tpu.memory_space<vmem>>, vector<32x1xf32>
    %41 = vector.broadcast %40 : vector<32x1xf32> to vector<32x512xf32>
    %42 = arith.addf %39, %41 : vector<32x512xf32>
    %43 = math.tanh %42 : vector<32x512xf32>
    %c0_9 = arith.constant 0 : index
    %c0_10 = arith.constant 0 : index
    %44 = vector.load %arg7[%c0_9, %c0_10] : memref<32x32xf32, #tpu.memory_space<vmem>>, vector<32x32xf32>
    %cst_11 = arith.constant dense<0.000000e+00> : vector<32x512xf32>
    %45 = tpu.matmul %44, %43, %cst_11 {dimension_numbers = #tpu.dot_dimension_numbers<[1], [0], [0], [1], [0, 0, 1, 1], [], []>} : vector<32x32xf32>, vector<32x512xf32>, vector<32x512xf32> -> vector<32x512xf32>
    %c0_12 = arith.constant 0 : index
    %c0_13 = arith.constant 0 : index
    %46 = vector.load %arg8[%c0_12, %c0_13] : memref<32x1xf32, #tpu.memory_space<vmem>>, vector<32x1xf32>
    %47 = vector.broadcast %46 : vector<32x1xf32> to vector<32x512xf32>
    %48 = arith.addf %45, %47 : vector<32x512xf32>
    %49 = math.tanh %48 : vector<32x512xf32>
    %50 = arith.addf %42, %49 : vector<32x512xf32>
    %c0_14 = arith.constant 0 : index
    %c0_15 = arith.constant 0 : index
    %51 = vector.load %arg9[%c0_14, %c0_15] : memref<32x32xf32, #tpu.memory_space<vmem>>, vector<32x32xf32>
    %cst_16 = arith.constant dense<0.000000e+00> : vector<32x512xf32>
    %52 = tpu.matmul %51, %50, %cst_16 {dimension_numbers = #tpu.dot_dimension_numbers<[1], [0], [0], [1], [0, 0, 1, 1], [], []>} : vector<32x32xf32>, vector<32x512xf32>, vector<32x512xf32> -> vector<32x512xf32>
    %c0_17 = arith.constant 0 : index
    %c0_18 = arith.constant 0 : index
    %53 = vector.load %arg10[%c0_17, %c0_18] : memref<32x1xf32, #tpu.memory_space<vmem>>, vector<32x1xf32>
    %54 = vector.broadcast %53 : vector<32x1xf32> to vector<32x512xf32>
    %55 = arith.addf %52, %54 : vector<32x512xf32>
    %56 = math.tanh %55 : vector<32x512xf32>
    %c0_19 = arith.constant 0 : index
    %c0_20 = arith.constant 0 : index
    %57 = vector.load %arg11[%c0_19, %c0_20] : memref<32x32xf32, #tpu.memory_space<vmem>>, vector<32x32xf32>
    %cst_21 = arith.constant dense<0.000000e+00> : vector<32x512xf32>
    %58 = tpu.matmul %57, %56, %cst_21 {dimension_numbers = #tpu.dot_dimension_numbers<[1], [0], [0], [1], [0, 0, 1, 1], [], []>} : vector<32x32xf32>, vector<32x512xf32>, vector<32x512xf32> -> vector<32x512xf32>
    %c0_22 = arith.constant 0 : index
    %c0_23 = arith.constant 0 : index
    %59 = vector.load %arg12[%c0_22, %c0_23] : memref<32x1xf32, #tpu.memory_space<vmem>>, vector<32x1xf32>
    %60 = vector.broadcast %59 : vector<32x1xf32> to vector<32x512xf32>
    %61 = arith.addf %58, %60 : vector<32x512xf32>
    %62 = math.tanh %61 : vector<32x512xf32>
    %63 = arith.addf %55, %62 : vector<32x512xf32>
    %c0_24 = arith.constant 0 : index
    %c0_25 = arith.constant 0 : index
    %64 = vector.load %arg13[%c0_24, %c0_25] : memref<3x32xf32, #tpu.memory_space<vmem>>, vector<3x32xf32>
    %cst_26 = arith.constant dense<0.000000e+00> : vector<3x512xf32>
    %65 = tpu.matmul %64, %63, %cst_26 {dimension_numbers = #tpu.dot_dimension_numbers<[1], [0], [0], [1], [0, 0, 1, 1], [], []>} : vector<3x32xf32>, vector<32x512xf32>, vector<3x512xf32> -> vector<3x512xf32>
    %c0_27 = arith.constant 0 : index
    %c0_28 = arith.constant 0 : index
    %66 = vector.load %arg14[%c0_27, %c0_28] : memref<3x1xf32, #tpu.memory_space<vmem>>, vector<3x1xf32>
    %67 = vector.broadcast %66 : vector<3x1xf32> to vector<3x512xf32>
    %68 = arith.addf %65, %67 : vector<3x512xf32>
    %69 = tpu.iota {dimensions = array<i32: 0>} : vector<4x1xi32>
    %c2_i32 = arith.constant 2 : i32
    %70 = vector.broadcast %c2_i32 : i32 to vector<4x1xi32>
    %71 = arith.cmpi slt, %69, %70 : vector<4x1xi32>
    %72 = vector.shape_cast %71 : vector<4x1xi1> to vector<4x1xi1>
    %73 = vector.broadcast %72 : vector<4x1xi1> to vector<4x512xi1>
    %74 = vector.shape_cast %5 : vector<1x512xf32> to vector<1x512xf32>
    %75 = vector.broadcast %74 : vector<1x512xf32> to vector<4x512xf32>
    %76 = vector.shape_cast %6 : vector<1x512xf32> to vector<1x512xf32>
    %77 = vector.broadcast %76 : vector<1x512xf32> to vector<4x512xf32>
    %78 = arith.select %73, %75, %77 : vector<4x512xi1>, vector<4x512xf32>
    %cst_29 = arith.constant 1.056000e+01 : f32
    %79 = vector.broadcast %cst_29 : f32 to vector<4x512xf32>
    %80 = arith.mulf %79, %78 : vector<4x512xf32>
    %c2_i32_30 = arith.constant 2 : i32
    %c0_i32 = arith.constant 0 : i32
    %81 = arith.cmpi eq, %c2_i32_30, %c0_i32 : i32
    %c1_i32 = arith.constant 1 : i32
    %82 = arith.select %81, %c1_i32, %c2_i32_30 : i32
    %83 = vector.broadcast %82 : i32 to vector<4x1xi32>
    %84 = arith.remsi %69, %83 : vector<4x1xi32>
    %c0_i32_31 = arith.constant 0 : i32
    %85 = vector.broadcast %c0_i32_31 : i32 to vector<4x1xi32>
    %86 = arith.cmpi ne, %84, %85 : vector<4x1xi32>
    %c0_i32_32 = arith.constant 0 : i32
    %87 = vector.broadcast %c0_i32_32 : i32 to vector<4x1xi32>
    %88 = arith.cmpi slt, %84, %87 : vector<4x1xi32>
    %c0_i32_33 = arith.constant 0 : i32
    %89 = arith.cmpi slt, %82, %c0_i32_33 : i32
    %90 = vector.broadcast %89 : i1 to vector<4x1xi1>
    %91 = vector.broadcast %90 : vector<4x1xi1> to vector<4x1xi1>
    %92 = arith.xori %88, %91 : vector<4x1xi1>
    %93 = arith.andi %92, %86 : vector<4x1xi1>
    %94 = vector.broadcast %82 : i32 to vector<4x1xi32>
    %95 = arith.addi %84, %94 : vector<4x1xi32>
    %96 = arith.select %93, %95, %84 : vector<4x1xi1>, vector<4x1xi32>
    %c0_i32_34 = arith.constant 0 : i32
    %97 = vector.broadcast %c0_i32_34 : i32 to vector<4x1xi32>
    %98 = arith.cmpi eq, %96, %97 : vector<4x1xi32>
    %cst_35 = arith.constant 1.056000e+01 : f32
    %99 = vector.broadcast %cst_35 : f32 to vector<4x512xf32>
    %100 = arith.subf %99, %80 : vector<4x512xf32>
    %101 = vector.shape_cast %98 : vector<4x1xi1> to vector<4x1xi1>
    %102 = vector.broadcast %101 : vector<4x1xi1> to vector<4x512xi1>
    %103 = arith.select %102, %80, %100 : vector<4x512xi1>, vector<4x512xf32>
    %104 = math.tanh %103 : vector<4x512xf32>
    %105 = vector.extract_strided_slice %104 {offsets = [0, 0], sizes = [1, 512], strides = [1, 1]} : vector<4x512xf32> to vector<1x512xf32>
    %106 = vector.extract_strided_slice %104 {offsets = [1, 0], sizes = [1, 512], strides = [1, 1]} : vector<4x512xf32> to vector<1x512xf32>
    %107 = vector.extract_strided_slice %104 {offsets = [2, 0], sizes = [1, 512], strides = [1, 1]} : vector<4x512xf32> to vector<1x512xf32>
    %108 = vector.extract_strided_slice %104 {offsets = [3, 0], sizes = [1, 512], strides = [1, 1]} : vector<4x512xf32> to vector<1x512xf32>
    %109 = tpu.iota {dimensions = array<i32: 0>} : vector<3x1xi32>
    %110 = arith.mulf %106, %108 : vector<1x512xf32>
    %c0_i32_36 = arith.constant 0 : i32
    %111 = vector.broadcast %c0_i32_36 : i32 to vector<3x1xi32>
    %112 = arith.cmpi eq, %109, %111 : vector<3x1xi32>
    %c1_i32_37 = arith.constant 1 : i32
    %113 = vector.broadcast %c1_i32_37 : i32 to vector<3x1xi32>
    %114 = arith.cmpi eq, %109, %113 : vector<3x1xi32>
    %115 = arith.mulf %110, %107 : vector<1x512xf32>
    %116 = vector.shape_cast %114 : vector<3x1xi1> to vector<3x1xi1>
    %117 = vector.broadcast %116 : vector<3x1xi1> to vector<3x512xi1>
    %118 = vector.shape_cast %110 : vector<1x512xf32> to vector<1x512xf32>
    %119 = vector.broadcast %118 : vector<1x512xf32> to vector<3x512xf32>
    %120 = vector.shape_cast %115 : vector<1x512xf32> to vector<1x512xf32>
    %121 = vector.broadcast %120 : vector<1x512xf32> to vector<3x512xf32>
    %122 = arith.select %117, %119, %121 : vector<3x512xi1>, vector<3x512xf32>
    %123 = vector.shape_cast %112 : vector<3x1xi1> to vector<3x1xi1>
    %124 = vector.broadcast %123 : vector<3x1xi1> to vector<3x512xi1>
    %125 = vector.shape_cast %105 : vector<1x512xf32> to vector<1x512xf32>
    %126 = vector.broadcast %125 : vector<1x512xf32> to vector<3x512xf32>
    %127 = arith.select %124, %126, %122 : vector<3x512xi1>, vector<3x512xf32>
    %c0_i32_38 = arith.constant 0 : i32
    %128 = vector.broadcast %c0_i32_38 : i32 to vector<3x1xi32>
    %129 = arith.cmpi eq, %109, %128 : vector<3x1xi32>
    %c0_39 = arith.constant 0 : index
    %130 = memref.load %arg1[%c0_39] : memref<1xf32, #tpu.memory_space<smem>>
    %131 = vector.extract_strided_slice %35 {offsets = [12, 0], sizes = [1, 512], strides = [1, 1]} : vector<16x512xf32> to vector<1x512xf32>
    %132 = vector.broadcast %130 : f32 to vector<1x512xf32>
    %133 = arith.mulf %132, %131 : vector<1x512xf32>
    %cst_40 = arith.constant 0.000000e+00 : f32
    %134 = vector.shape_cast %129 : vector<3x1xi1> to vector<3x1xi1>
    %135 = vector.broadcast %134 : vector<3x1xi1> to vector<3x512xi1>
    %136 = vector.shape_cast %133 : vector<1x512xf32> to vector<1x512xf32>
    %137 = vector.broadcast %136 : vector<1x512xf32> to vector<3x512xf32>
    %138 = vector.broadcast %cst_40 : f32 to vector<3x512xf32>
    %139 = arith.select %135, %137, %138 : vector<3x512xi1>, vector<3x512xf32>
    %140 = arith.mulf %127, %68 : vector<3x512xf32>
    %141 = arith.addf %140, %139 : vector<3x512xf32>
    %c0_41 = arith.constant 0 : index
    %c0_42 = arith.constant 0 : index
    %142 = vector.load %arg15[%c0_41, %c0_42] : memref<3x512xf32, #tpu.memory_space<vmem>>, vector<3x512xf32>
    tpu.vector_store %arg15[%c0_41, %c0_42], %141 {strides = array<i32>} : memref<3x512xf32, #tpu.memory_space<vmem>>, vector<3x512xf32>,
    return
  }
  func.func @transform_0(%arg0: i32) -> i32 {
    %c0_i32 = arith.constant 0 : i32
    %c0_i32_0 = arith.constant 0 : i32
    return %c0_i32 : i32
  }
  func.func @transform_1(%arg0: i32) -> (i32, i32) {
    %c0_i32 = arith.constant 0 : i32
    %c0_i32_0 = arith.constant 0 : i32
    return %c0_i32, %arg0 : i32, i32
  }
  func.func @transform_2(%arg0: i32) -> (i32, i32) {
    %c0_i32 = arith.constant 0 : i32
    %c0_i32_0 = arith.constant 0 : i32
    %c0_i32_1 = arith.constant 0 : i32
    return %c0_i32, %c0_i32_0 : i32, i32
  }
  func.func @transform_3(%arg0: i32) -> (i32, i32) {
    %c0_i32 = arith.constant 0 : i32
    %c0_i32_0 = arith.constant 0 : i32
    %c0_i32_1 = arith.constant 0 : i32
    return %c0_i32, %c0_i32_0 : i32, i32
  }
  func.func @transform_4(%arg0: i32) -> (i32, i32) {
    %c0_i32 = arith.constant 0 : i32
    %c0_i32_0 = arith.constant 0 : i32
    %c0_i32_1 = arith.constant 0 : i32
    return %c0_i32, %c0_i32_0 : i32, i32
  }
  func.func @transform_5(%arg0: i32) -> (i32, i32) {
    %c0_i32 = arith.constant 0 : i32
    %c0_i32_0 = arith.constant 0 : i32
    %c0_i32_1 = arith.constant 0 : i32
    return %c0_i32, %c0_i32_0 : i32, i32
  }
  func.func @transform_6(%arg0: i32) -> (i32, i32) {
    %c0_i32 = arith.constant 0 : i32
    %c0_i32_0 = arith.constant 0 : i32
    %c0_i32_1 = arith.constant 0 : i32
    return %c0_i32, %c0_i32_0 : i32, i32
  }
  func.func @transform_7(%arg0: i32) -> (i32, i32) {
    %c0_i32 = arith.constant 0 : i32
    %c0_i32_0 = arith.constant 0 : i32
    %c0_i32_1 = arith.constant 0 : i32
    return %c0_i32, %c0_i32_0 : i32, i32
  }
  func.func @transform_8(%arg0: i32) -> (i32, i32) {
    %c0_i32 = arith.constant 0 : i32
    %c0_i32_0 = arith.constant 0 : i32
    %c0_i32_1 = arith.constant 0 : i32
    return %c0_i32, %c0_i32_0 : i32, i32
  }
  func.func @transform_9(%arg0: i32) -> (i32, i32) {
    %c0_i32 = arith.constant 0 : i32
    %c0_i32_0 = arith.constant 0 : i32
    %c0_i32_1 = arith.constant 0 : i32
    return %c0_i32, %c0_i32_0 : i32, i32
  }
  func.func @transform_10(%arg0: i32) -> (i32, i32) {
    %c0_i32 = arith.constant 0 : i32
    %c0_i32_0 = arith.constant 0 : i32
    %c0_i32_1 = arith.constant 0 : i32
    return %c0_i32, %c0_i32_0 : i32, i32
  }
  func.func @transform_11(%arg0: i32) -> (i32, i32) {
    %c0_i32 = arith.constant 0 : i32
    %c0_i32_0 = arith.constant 0 : i32
    %c0_i32_1 = arith.constant 0 : i32
    return %c0_i32, %c0_i32_0 : i32, i32
  }
  func.func @transform_12(%arg0: i32) -> (i32, i32) {
    %c0_i32 = arith.constant 0 : i32
    %c0_i32_0 = arith.constant 0 : i32
    %c0_i32_1 = arith.constant 0 : i32
    return %c0_i32, %c0_i32_0 : i32, i32
  }
  func.func @transform_13(%arg0: i32) -> (i32, i32) {
    %c0_i32 = arith.constant 0 : i32
    %c0_i32_0 = arith.constant 0 : i32
    %c0_i32_1 = arith.constant 0 : i32
    return %c0_i32, %c0_i32_0 : i32, i32
  }
  func.func @transform_14(%arg0: i32) -> (i32, i32) {
    %c0_i32 = arith.constant 0 : i32
    %c0_i32_0 = arith.constant 0 : i32
    return %c0_i32, %arg0 : i32, i32
  }
}

</mosaic_0001>

<llo_original>
// kernel: tpu_custom_call.1
$region0: #{tpu_custom_call.1}
  #allocation0 [shape = 'u32[]', space=smem, size = 0x4, offset = 0x4, fixed_abs, tag = 'smem constant byte address 0x4 - core index']
  #allocation1 [shape = 'u32[144,128]{1,0:T(1,128)}', space=vmem, size = 0x12000, scoped, tag = 'internal scratch']
  #allocation2 [shape = 'f32[1]{0:T(128)S(6)}', space=smem, size = 0x200, scoped, tag = 'scoped memory for tpu_custom_call.1']
  %s0 = inlined_call_operand.<no memory space> [shape: f32[1], index: 0, kind: input, shape index: {}]
  %s1 = inlined_call_operand.vmem [shape: f32[3,1024], index: 1, kind: input, shape index: {}]
  %s2 = inlined_call_operand.vmem [shape: f32[3,1], index: 2, kind: input, shape index: {}]
  %s3 = inlined_call_operand.vmem [shape: f32[16,1], index: 3, kind: input, shape index: {}]
  %s4 = inlined_call_operand.vmem [shape: f32[32,34], index: 4, kind: input, shape index: {}]
  %s5 = inlined_call_operand.vmem [shape: f32[32,1], index: 5, kind: input, shape index: {}]
  %s6 = inlined_call_operand.vmem [shape: f32[32,32], index: 6, kind: input, shape index: {}]
  %s7 = inlined_call_operand.vmem [shape: f32[32,1], index: 7, kind: input, shape index: {}]
  %s8 = inlined_call_operand.vmem [shape: f32[32,32], index: 8, kind: input, shape index: {}]
  %s9 = inlined_call_operand.vmem [shape: f32[32,1], index: 9, kind: input, shape index: {}]
  %s10 = inlined_call_operand.vmem [shape: f32[32,32], index: 10, kind: input, shape index: {}]
  %s11 = inlined_call_operand.vmem [shape: f32[32,1], index: 11, kind: input, shape index: {}]
  %s12 = inlined_call_operand.vmem [shape: f32[3,32], index: 12, kind: input, shape index: {}]
  %s13 = inlined_call_operand.vmem [shape: f32[3,1], index: 13, kind: input, shape index: {}]
  %s14 = inlined_call_operand.hbm [shape: f32[3,1024], index: 14, kind: output, shape index: {}]
  %s15 = sld [smem:[#allocation0]]
  $region89: #{tpu_custom_call.1} parent=0
    _
  %s17 = ssub.s32 1, %s15
  %s18 = scalar_select 0, %s17, %s15
  %19 = sst [smem:[#allocation2]] %s0
  $region1: #{tpu_custom_call.1} parent=0
    #allocation3 [shape = 'u8[16384]{0}', space=vmem, size = 0x4000, scoped, tag = 'output window, operand 0']
    #allocation4 [shape = 's32[2]{0}', space=sflag, size = 0x8, scoped, tag = 'scoped memory for tpu_custom_call.1']
    %20 = vsyncpa [#allocation4], 0
    %s21 = scalar_lea.sflag [#allocation4], 1
    %22 = vsyncpa %s21, 0
    loop: start=0, step=1, limit=4
    $region2: #{tpu_custom_call.1} parent=1 // loop_pre_header
      _
    $region3: #{tpu_custom_call.1} parent=1 // loop_header
      %s24 = sphi 0, %s28
      %p25 = scmp.ge.s32.totalorder %s24, 4
      %s32 = sphi 0, %s32
      %s34 = sphi 0, %s32
      %s35 = sphi 0, %s34
      %s49 = sphi 0, %s35
      %s55 = sphi 0, %s57
      %s58 = sphi 0, %s55
      %s59 = sphi 0, %s58
      %s75 = sphi 0, %s59
      %s79 = sphi 0, %s79
      %s81 = sphi 0, %s79
      %s82 = sphi 0, %s81
      %s96 = sphi 0, %s82
      %s100 = sphi 0, %s100
      %s102 = sphi 0, %s100
      %s103 = sphi 0, %s102
      %s117 = sphi 0, %s103
      %s121 = sphi 0, %s121
      %s123 = sphi 0, %s121
      %s124 = sphi 0, %s123
      %s138 = sphi 0, %s124
      %s142 = sphi 0, %s142
      %s144 = sphi 0, %s142
      %s145 = sphi 0, %s144
      %s159 = sphi 0, %s145
      %s163 = sphi 0, %s163
      %s165 = sphi 0, %s163
      %s166 = sphi 0, %s165
      %s180 = sphi 0, %s166
      %s184 = sphi 0, %s184
      %s186 = sphi 0, %s184
      %s187 = sphi 0, %s186
      %s201 = sphi 0, %s187
      %s205 = sphi 0, %s205
      %s207 = sphi 0, %s205
      %s208 = sphi 0, %s207
      %s222 = sphi 0, %s208
      %s226 = sphi 0, %s226
      %s228 = sphi 0, %s226
      %s229 = sphi 0, %s228
      %s243 = sphi 0, %s229
      %s247 = sphi 0, %s247
      %s249 = sphi 0, %s247
      %s250 = sphi 0, %s249
      %s264 = sphi 0, %s250
      %s268 = sphi 0, %s268
      %s270 = sphi 0, %s268
      %s271 = sphi 0, %s270
      %s285 = sphi 0, %s271
      %s289 = sphi 0, %s289
      %s291 = sphi 0, %s289
      %s292 = sphi 0, %s291
      %s306 = sphi 0, %s292
      %s310 = sphi 0, %s310
      %s312 = sphi 0, %s310
      %s313 = sphi 0, %s312
      %s327 = sphi 0, %s313
      %s333 = sphi 0, %s335
      %s336 = sphi 0, %s333
      %s337 = sphi 0, %s336
      %s353 = sphi 0, %s337
    $region4: #{tpu_custom_call.1} parent=1 // loop_header_branch
      %27 = sbr.rel (%p25) target = $region8
    $region5: #{tpu_custom_call.1} parent=1 // loop_body
      %s29 = ssub.s32 %s24, 1
      %s30 = ssub.s32 %s24, 2
      %s31 = sadd.s32 %s24, 1
      %s33 = sadd.s32 %s32, 1
      %p36 = scmp.eq.s32.totalorder %s24, 1
      %p37 = scmp.ne.s32.totalorder %s32, %s34
      %p38 = scmp.eq.s32.totalorder %s24, 0
      %p39 = por %p37, %p38
      %p40 = scmp.ne.s32.totalorder %s32, %s34
      %p41 = scmp.eq.s32.totalorder %s29, 1
      %p42 = por %p40, %p41
      %p43 = scmp.ne.s32.totalorder %s34, %s35
      %p44 = scmp.eq.s32.totalorder %s29, 0
      %p45 = por %p43, %p44
      %p46 = scmp.ne.s32.totalorder %s34, %s35
      %p47 = scmp.eq.s32.totalorder %s30, 1
      %p48 = por %p46, %p47
      %p50 = scmp.ne.s32.totalorder %s35, %s49
      %p51 = scmp.eq.s32.totalorder %s30, 0
      %p52 = por %p50, %p51
      %s53 = ssub.s32 %s24, %s31
      %p54 = scmp.eq.s32.totalorder %s53, 0
      %s56 = sadd.s32 %s55, 1
      %s57 = scalar_select %p54, %s55, %s56
      %p60 = pneg %p54
      %p61 = scmp.eq.s32.totalorder %s24, 1
      %p62 = por %p60, %p61
      %p63 = scmp.ne.s32.totalorder %s55, %s58
      %p64 = scmp.eq.s32.totalorder %s24, 0
      %p65 = por %p63, %p64
      %p66 = scmp.ne.s32.totalorder %s55, %s58
      %p67 = scmp.eq.s32.totalorder %s29, 1
      %p68 = por %p66, %p67
      %p69 = scmp.ne.s32.totalorder %s58, %s59
      %p70 = scmp.eq.s32.totalorder %s29, 0
      %p71 = por %p69, %p70
      %p72 = scmp.ne.s32.totalorder %s58, %s59
      %p73 = scmp.eq.s32.totalorder %s30, 1
      %p74 = por %p72, %p73
      %p76 = scmp.ne.s32.totalorder %s59, %s75
      %p77 = scmp.eq.s32.totalorder %s30, 0
      %p78 = por %p76, %p77
      %s80 = sadd.s32 %s79, 1
      %p83 = scmp.eq.s32.totalorder %s24, 1
      %p84 = scmp.ne.s32.totalorder %s79, %s81
      %p85 = scmp.eq.s32.totalorder %s24, 0
      %p86 = por %p84, %p85
      %p87 = scmp.ne.s32.totalorder %s79, %s81
      %p88 = scmp.eq.s32.totalorder %s29, 1
      %p89 = por %p87, %p88
      %p90 = scmp.ne.s32.totalorder %s81, %s82
      %p91 = scmp.eq.s32.totalorder %s29, 0
      %p92 = por %p90, %p91
      %p93 = scmp.ne.s32.totalorder %s81, %s82
      %p94 = scmp.eq.s32.totalorder %s30, 1
      %p95 = por %p93, %p94
      %p97 = scmp.ne.s32.totalorder %s82, %s96
      %p98 = scmp.eq.s32.totalorder %s30, 0
      %p99 = por %p97, %p98
      %s101 = sadd.s32 %s100, 1
      %p104 = scmp.eq.s32.totalorder %s24, 1
      %p105 = scmp.ne.s32.totalorder %s100, %s102
      %p106 = scmp.eq.s32.totalorder %s24, 0
      %p107 = por %p105, %p106
      %p108 = scmp.ne.s32.totalorder %s100, %s102
      %p109 = scmp.eq.s32.totalorder %s29, 1
      %p110 = por %p108, %p109
      %p111 = scmp.ne.s32.totalorder %s102, %s103
      %p112 = scmp.eq.s32.totalorder %s29, 0
      %p113 = por %p111, %p112
      %p114 = scmp.ne.s32.totalorder %s102, %s103
      %p115 = scmp.eq.s32.totalorder %s30, 1
      %p116 = por %p114, %p115
      %p118 = scmp.ne.s32.totalorder %s103, %s117
      %p119 = scmp.eq.s32.totalorder %s30, 0
      %p120 = por %p118, %p119
      %s122 = sadd.s32 %s121, 1
      %p125 = scmp.eq.s32.totalorder %s24, 1
      %p126 = scmp.ne.s32.totalorder %s121, %s123
      %p127 = scmp.eq.s32.totalorder %s24, 0
      %p128 = por %p126, %p127
      %p129 = scmp.ne.s32.totalorder %s121, %s123
      %p130 = scmp.eq.s32.totalorder %s29, 1
      %p131 = por %p129, %p130
      %p132 = scmp.ne.s32.totalorder %s123, %s124
      %p133 = scmp.eq.s32.totalorder %s29, 0
      %p134 = por %p132, %p133
      %p135 = scmp.ne.s32.totalorder %s123, %s124
      %p136 = scmp.eq.s32.totalorder %s30, 1
      %p137 = por %p135, %p136
      %p139 = scmp.ne.s32.totalorder %s124, %s138
      %p140 = scmp.eq.s32.totalorder %s30, 0
      %p141 = por %p139, %p140
      %s143 = sadd.s32 %s142, 1
      %p146 = scmp.eq.s32.totalorder %s24, 1
      %p147 = scmp.ne.s32.totalorder %s142, %s144
      %p148 = scmp.eq.s32.totalorder %s24, 0
      %p149 = por %p147, %p148
      %p150 = scmp.ne.s32.totalorder %s142, %s144
      %p151 = scmp.eq.s32.totalorder %s29, 1
      %p152 = por %p150, %p151
      %p153 = scmp.ne.s32.totalorder %s144, %s145
      %p154 = scmp.eq.s32.totalorder %s29, 0
      %p155 = por %p153, %p154
      %p156 = scmp.ne.s32.totalorder %s144, %s145
      %p157 = scmp.eq.s32.totalorder %s30, 1
      %p158 = por %p156, %p157
      %p160 = scmp.ne.s32.totalorder %s145, %s159
      %p161 = scmp.eq.s32.totalorder %s30, 0
      %p162 = por %p160, %p161
      %s164 = sadd.s32 %s163, 1
      %p167 = scmp.eq.s32.totalorder %s24, 1
      %p168 = scmp.ne.s32.totalorder %s163, %s165
      %p169 = scmp.eq.s32.totalorder %s24, 0
      %p170 = por %p168, %p169
      %p171 = scmp.ne.s32.totalorder %s163, %s165
      %p172 = scmp.eq.s32.totalorder %s29, 1
      %p173 = por %p171, %p172
      %p174 = scmp.ne.s32.totalorder %s165, %s166
      %p175 = scmp.eq.s32.totalorder %s29, 0
      %p176 = por %p174, %p175
      %p177 = scmp.ne.s32.totalorder %s165, %s166
      %p178 = scmp.eq.s32.totalorder %s30, 1
      %p179 = por %p177, %p178
      %p181 = scmp.ne.s32.totalorder %s166, %s180
      %p182 = scmp.eq.s32.totalorder %s30, 0
      %p183 = por %p181, %p182
      %s185 = sadd.s32 %s184, 1
      %p188 = scmp.eq.s32.totalorder %s24, 1
      %p189 = scmp.ne.s32.totalorder %s184, %s186
      %p190 = scmp.eq.s32.totalorder %s24, 0
      %p191 = por %p189, %p190
      %p192 = scmp.ne.s32.totalorder %s184, %s186
      %p193 = scmp.eq.s32.totalorder %s29, 1
      %p194 = por %p192, %p193
      %p195 = scmp.ne.s32.totalorder %s186, %s187
      %p196 = scmp.eq.s32.totalorder %s29, 0
      %p197 = por %p195, %p196
      %p198 = scmp.ne.s32.totalorder %s186, %s187
      %p199 = scmp.eq.s32.totalorder %s30, 1
      %p200 = por %p198, %p199
      %p202 = scmp.ne.s32.totalorder %s187, %s201
      %p203 = scmp.eq.s32.totalorder %s30, 0
      %p204 = por %p202, %p203
      %s206 = sadd.s32 %s205, 1
      %p209 = scmp.eq.s32.totalorder %s24, 1
      %p210 = scmp.ne.s32.totalorder %s205, %s207
      %p211 = scmp.eq.s32.totalorder %s24, 0
      %p212 = por %p210, %p211
      %p213 = scmp.ne.s32.totalorder %s205, %s207
      %p214 = scmp.eq.s32.totalorder %s29, 1
      %p215 = por %p213, %p214
      %p216 = scmp.ne.s32.totalorder %s207, %s208
      %p217 = scmp.eq.s32.totalorder %s29, 0
      %p218 = por %p216, %p217
      %p219 = scmp.ne.s32.totalorder %s207, %s208
      %p220 = scmp.eq.s32.totalorder %s30, 1
      %p221 = por %p219, %p220
      %p223 = scmp.ne.s32.totalorder %s208, %s222
      %p224 = scmp.eq.s32.totalorder %s30, 0
      %p225 = por %p223, %p224
      %s227 = sadd.s32 %s226, 1
      %p230 = scmp.eq.s32.totalorder %s24, 1
      %p231 = scmp.ne.s32.totalorder %s226, %s228
      %p232 = scmp.eq.s32.totalorder %s24, 0
      %p233 = por %p231, %p232
      %p234 = scmp.ne.s32.totalorder %s226, %s228
      %p235 = scmp.eq.s32.totalorder %s29, 1
      %p236 = por %p234, %p235
      %p237 = scmp.ne.s32.totalorder %s228, %s229
      %p238 = scmp.eq.s32.totalorder %s29, 0
      %p239 = por %p237, %p238
      %p240 = scmp.ne.s32.totalorder %s228, %s229
      %p241 = scmp.eq.s32.totalorder %s30, 1
      %p242 = por %p240, %p241
      %p244 = scmp.ne.s32.totalorder %s229, %s243
      %p245 = scmp.eq.s32.totalorder %s30, 0
      %p246 = por %p244, %p245
      %s248 = sadd.s32 %s247, 1
      %p251 = scmp.eq.s32.totalorder %s24, 1
      %p252 = scmp.ne.s32.totalorder %s247, %s249
      %p253 = scmp.eq.s32.totalorder %s24, 0
      %p254 = por %p252, %p253
      %p255 = scmp.ne.s32.totalorder %s247, %s249
      %p256 = scmp.eq.s32.totalorder %s29, 1
      %p257 = por %p255, %p256
      %p258 = scmp.ne.s32.totalorder %s249, %s250
      %p259 = scmp.eq.s32.totalorder %s29, 0
      %p260 = por %p258, %p259
      %p261 = scmp.ne.s32.totalorder %s249, %s250
      %p262 = scmp.eq.s32.totalorder %s30, 1
      %p263 = por %p261, %p262
      %p265 = scmp.ne.s32.totalorder %s250, %s264
      %p266 = scmp.eq.s32.totalorder %s30, 0
      %p267 = por %p265, %p266
      %s269 = sadd.s32 %s268, 1
      %p272 = scmp.eq.s32.totalorder %s24, 1
      %p273 = scmp.ne.s32.totalorder %s268, %s270
      %p274 = scmp.eq.s32.totalorder %s24, 0
      %p275 = por %p273, %p274
      %p276 = scmp.ne.s32.totalorder %s268, %s270
      %p277 = scmp.eq.s32.totalorder %s29, 1
      %p278 = por %p276, %p277
      %p279 = scmp.ne.s32.totalorder %s270, %s271
      %p280 = scmp.eq.s32.totalorder %s29, 0
      %p281 = por %p279, %p280
      %p282 = scmp.ne.s32.totalorder %s270, %s271
      %p283 = scmp.eq.s32.totalorder %s30, 1
      %p284 = por %p282, %p283
      %p286 = scmp.ne.s32.totalorder %s271, %s285
      %p287 = scmp.eq.s32.totalorder %s30, 0
      %p288 = por %p286, %p287
      %s290 = sadd.s32 %s289, 1
      %p293 = scmp.eq.s32.totalorder %s24, 1
      %p294 = scmp.ne.s32.totalorder %s289, %s291
      %p295 = scmp.eq.s32.totalorder %s24, 0
      %p296 = por %p294, %p295
      %p297 = scmp.ne.s32.totalorder %s289, %s291
      %p298 = scmp.eq.s32.totalorder %s29, 1
      %p299 = por %p297, %p298
      %p300 = scmp.ne.s32.totalorder %s291, %s292
      %p301 = scmp.eq.s32.totalorder %s29, 0
      %p302 = por %p300, %p301
      %p303 = scmp.ne.s32.totalorder %s291, %s292
      %p304 = scmp.eq.s32.totalorder %s30, 1
      %p305 = por %p303, %p304
      %p307 = scmp.ne.s32.totalorder %s292, %s306
      %p308 = scmp.eq.s32.totalorder %s30, 0
      %p309 = por %p307, %p308
      %s311 = sadd.s32 %s310, 1
      %p314 = scmp.eq.s32.totalorder %s24, 1
      %p315 = scmp.ne.s32.totalorder %s310, %s312
      %p316 = scmp.eq.s32.totalorder %s24, 0
      %p317 = por %p315, %p316
      %p318 = scmp.ne.s32.totalorder %s310, %s312
      %p319 = scmp.eq.s32.totalorder %s29, 1
      %p320 = por %p318, %p319
      %p321 = scmp.ne.s32.totalorder %s312, %s313
      %p322 = scmp.eq.s32.totalorder %s29, 0
      %p323 = por %p321, %p322
      %p324 = scmp.ne.s32.totalorder %s312, %s313
      %p325 = scmp.eq.s32.totalorder %s30, 1
      %p326 = por %p324, %p325
      %p328 = scmp.ne.s32.totalorder %s313, %s327
      %p329 = scmp.eq.s32.totalorder %s30, 0
      %p330 = por %p328, %p329
      %s331 = ssub.s32 %s24, %s31
      %p332 = scmp.eq.s32.totalorder %s331, 0
      %s334 = sadd.s32 %s333, 1
      %s335 = scalar_select %p332, %s333, %s334
      %p338 = pneg %p332
      %p339 = scmp.eq.s32.totalorder %s24, 1
      %p340 = por %p338, %p339
      %p341 = scmp.ne.s32.totalorder %s333, %s336
      %p342 = scmp.eq.s32.totalorder %s24, 0
      %p343 = por %p341, %p342
      %p344 = scmp.ne.s32.totalorder %s333, %s336
      %p345 = scmp.eq.s32.totalorder %s29, 1
      %p346 = por %p344, %p345
      %p347 = scmp.ne.s32.totalorder %s336, %s337
      %p348 = scmp.eq.s32.totalorder %s29, 0
      %p349 = por %p347, %p348
      %p350 = scmp.ne.s32.totalorder %s336, %s337
      %p351 = scmp.eq.s32.totalorder %s30, 1
      %p352 = por %p350, %p351
      %p354 = scmp.ne.s32.totalorder %s337, %s353
      %p355 = scmp.eq.s32.totalorder %s30, 0
      %p356 = por %p354, %p355
      %p357 = scmp.le.s32.totalorder 1, %s24
      %p358 = scmp.lt.s32.totalorder %s24, 3
      %p359 = pnand %p357, %p358
      %p360 = pneg %p359
      // Predicated region
      $region9: #{tpu_custom_call.1} parent=5 // pred_check
        _
      $region10: #{tpu_custom_call.1} parent=5 // pred_check_branch
        %362 = sbr.rel (%p359) target = $region12
      $region11: #{tpu_custom_call.1} parent=5 // pred_region
        %s363 = ssub.s32 %s24, 1
        // Predicated region
        $region13: #{tpu_custom_call.1} parent=11 // pred_check
          %p364 = pneg %p45
        $region14: #{tpu_custom_call.1} parent=11 // pred_check_branch
          %366 = sbr.rel (%p364) target = $region16
        $region15: #{tpu_custom_call.1} parent=11 // pred_region
          _
        $region16: #{tpu_custom_call.1} parent=11 // pred_fallthru
          _
        // Predicated region
        $region17: #{tpu_custom_call.1} parent=11 // pred_check
          %p367 = pneg %p92
        $region18: #{tpu_custom_call.1} parent=11 // pred_check_branch
          %369 = sbr.rel (%p367) target = $region20
        $region19: #{tpu_custom_call.1} parent=11 // pred_region
          _
        $region20: #{tpu_custom_call.1} parent=11 // pred_fallthru
          _
        // Predicated region
        $region21: #{tpu_custom_call.1} parent=11 // pred_check
          %p370 = pneg %p113
        $region22: #{tpu_custom_call.1} parent=11 // pred_check_branch
          %372 = sbr.rel (%p370) target = $region24
        $region23: #{tpu_custom_call.1} parent=11 // pred_region
          _
        $region24: #{tpu_custom_call.1} parent=11 // pred_fallthru
          _
        // Predicated region
        $region25: #{tpu_custom_call.1} parent=11 // pred_check
          %p373 = pneg %p134
        $region26: #{tpu_custom_call.1} parent=11 // pred_check_branch
          %375 = sbr.rel (%p373) target = $region28
        $region27: #{tpu_custom_call.1} parent=11 // pred_region
          _
        $region28: #{tpu_custom_call.1} parent=11 // pred_fallthru
          _
        // Predicated region
        $region29: #{tpu_custom_call.1} parent=11 // pred_check
          %p376 = pneg %p155
        $region30: #{tpu_custom_call.1} parent=11 // pred_check_branch
          %378 = sbr.rel (%p376) target = $region32
        $region31: #{tpu_custom_call.1} parent=11 // pred_region
          _
        $region32: #{tpu_custom_call.1} parent=11 // pred_fallthru
          _
        // Predicated region
        $region33: #{tpu_custom_call.1} parent=11 // pred_check
          %p379 = pneg %p176
        $region34: #{tpu_custom_call.1} parent=11 // pred_check_branch
          %381 = sbr.rel (%p379) target = $region36
        $region35: #{tpu_custom_call.1} parent=11 // pred_region
          _
        $region36: #{tpu_custom_call.1} parent=11 // pred_fallthru
          _
        // Predicated region
        $region37: #{tpu_custom_call.1} parent=11 // pred_check
          %p382 = pneg %p197
        $region38: #{tpu_custom_call.1} parent=11 // pred_check_branch
          %384 = sbr.rel (%p382) target = $region40
        $region39: #{tpu_custom_call.1} parent=11 // pred_region
          _
        $region40: #{tpu_custom_call.1} parent=11 // pred_fallthru
          _
        // Predicated region
        $region41: #{tpu_custom_call.1} parent=11 // pred_check
          %p385 = pneg %p218
        $region42: #{tpu_custom_call.1} parent=11 // pred_check_branch
          %387 = sbr.rel (%p385) target = $region44
        $region43: #{tpu_custom_call.1} parent=11 // pred_region
          _
        $region44: #{tpu_custom_call.1} parent=11 // pred_fallthru
          _
        // Predicated region
        $region45: #{tpu_custom_call.1} parent=11 // pred_check
          %p388 = pneg %p239
        $region46: #{tpu_custom_call.1} parent=11 // pred_check_branch
          %390 = sbr.rel (%p388) target = $region48
        $region47: #{tpu_custom_call.1} parent=11 // pred_region
          _
        $region48: #{tpu_custom_call.1} parent=11 // pred_fallthru
          _
        // Predicated region
        $region49: #{tpu_custom_call.1} parent=11 // pred_check
          %p391 = pneg %p260
        $region50: #{tpu_custom_call.1} parent=11 // pred_check_branch
          %393 = sbr.rel (%p391) target = $region52
        $region51: #{tpu_custom_call.1} parent=11 // pred_region
          _
        $region52: #{tpu_custom_call.1} parent=11 // pred_fallthru
          _
        // Predicated region
        $region53: #{tpu_custom_call.1} parent=11 // pred_check
          %p394 = pneg %p281
        $region54: #{tpu_custom_call.1} parent=11 // pred_check_branch
          %396 = sbr.rel (%p394) target = $region56
        $region55: #{tpu_custom_call.1} parent=11 // pred_region
          _
        $region56: #{tpu_custom_call.1} parent=11 // pred_fallthru
          _
        // Predicated region
        $region57: #{tpu_custom_call.1} parent=11 // pred_check
          %p397 = pneg %p302
        $region58: #{tpu_custom_call.1} parent=11 // pred_check_branch
          %399 = sbr.rel (%p397) target = $region60
        $region59: #{tpu_custom_call.1} parent=11 // pred_region
          _
        $region60: #{tpu_custom_call.1} parent=11 // pred_fallthru
          _
        // Predicated region
        $region61: #{tpu_custom_call.1} parent=11 // pred_check
          %p400 = pneg %p323
        $region62: #{tpu_custom_call.1} parent=11 // pred_check_branch
          %402 = sbr.rel (%p400) target = $region64
        $region63: #{tpu_custom_call.1} parent=11 // pred_region
          _
        $region64: #{tpu_custom_call.1} parent=11 // pred_fallthru
          _
      $region12: #{tpu_custom_call.1} parent=5 // pred_fallthru
        _
      %p403 = scmp.lt.s32.totalorder %s24, 2
      // Predicated region
      $region65: #{tpu_custom_call.1} parent=5 // pred_check
        %p404 = pneg %p403
      $region66: #{tpu_custom_call.1} parent=5 // pred_check_branch
        %406 = sbr.rel (%p404) target = $region68
      $region67: #{tpu_custom_call.1} parent=5 // pred_region
        // Predicated region
        $region69: #{tpu_custom_call.1} parent=67 // pred_check
          %p407 = pneg %p65
        $region70: #{tpu_custom_call.1} parent=67 // pred_check_branch
          %409 = sbr.rel (%p407) target = $region72
        $region71: #{tpu_custom_call.1} parent=67 // pred_region
          %s410 = smul.u32 4, %s24
          %p411 = scmp.lt.s32.totalorder %s410, 7
          %s412 = scalar_select %p411, %s410, 7
          %s413 = smul.addr %s412, 4
          %s414 = scalar_lea.vmem %s1, %s413
          %s415 = smul.u32 4, %s24
        $region72: #{tpu_custom_call.1} parent=67 // pred_fallthru
          _
      $region68: #{tpu_custom_call.1} parent=5 // pred_fallthru
        _
      %p416 = scmp.le.s32.totalorder 1, %s24
      %p417 = scmp.lt.s32.totalorder %s24, 3
      %p418 = pnand %p416, %p417
      %p419 = pneg %p418
      // Predicated region
      $region73: #{tpu_custom_call.1} parent=5 // pred_check
        _
      $region74: #{tpu_custom_call.1} parent=5 // pred_check_branch
        %421 = sbr.rel (%p418) target = $region76
      $region75: #{tpu_custom_call.1} parent=5 // pred_region
        %s422 = ssub.s32 %s24, 1
        %p423 = pneg %p45
        %p424 = pneg %p42
        %s425 = smul.u32 4, %s29
        %p426 = scmp.lt.s32.totalorder %s425, 7
        %s427 = scalar_select %p426, %s425, 7
        %s428 = smul.addr %s427, 4
        %s429 = scalar_lea.vmem %s1, %s428
        %p430 = pneg %p71
        %p431 = pneg %p68
        %p432 = pneg %p92
        %p433 = pneg %p89
        %p434 = pneg %p113
        %p435 = pneg %p110
        %p436 = pneg %p134
        %p437 = pneg %p131
        %p438 = pneg %p155
        %p439 = pneg %p152
        %p440 = pneg %p176
        %p441 = pneg %p173
        %p442 = pneg %p197
        %p443 = pneg %p194
        %p444 = pneg %p218
        %p445 = pneg %p215
        %p446 = pneg %p239
        %p447 = pneg %p236
        %p448 = pneg %p260
        %p449 = pneg %p257
        %p450 = pneg %p281
        %p451 = pneg %p278
        %p452 = pneg %p302
        %p453 = pneg %p299
        %p454 = pneg %p323
        %p455 = pneg %p320
        %p456 = pneg %p349
        %p457 = pneg %p346
        %s458 = sand.u32 %s336, 1
        %s459 = scalar_lea.sflag [#allocation4], %s458
        %s460 = sand.u32 %s336, 1
        %s461 = smul.addr %s460, 16
        %s462 = scalar_lea.vmem [#allocation3], %s461
        %s463 = smul.u32 4, %s29
        %p464 = scmp.lt.s32.totalorder %s463, 7
        %s465 = scalar_select %p464, %s463, 7
        %s466 = smul.addr %s465, 4
        %s467 = scalar_lea.vmem %s1, %s466
        %s468 = smul.u32 4, %s29
        %s469 = smul.u32 4, %s29
        %v470 = vld [vmem:[%s467] sm:$0x77]
        %v471 = vld [vmem:[%s467 + $0x8] sm:$0x77]
        %v472 = vld [vmem:[%s2] sm:$0x7]
        %474 = vset.pattern.permute.xlu0 0
        %475 = vperm.xlu0 %474, %v472
        %v476 = vpop.permute.xlu0 %475
        %v478 = vunpack.c.l.s4 839922192
        %v479 = vunpack.c.0.s8 %v478
        %v480 = vlaneseq
        %v481 = vshrl.u32 %v480, 7
        %v482 = vsub.s32 %v479, %v481
        %v483 = vrot.slane %v476, %v482
        %v485 = vmul.f32 %v470, %v483
        %v486 = vmul.f32 %v471, %v483
        %v487 = vlaneseq
        %v488 = vshrl.u32 %v487, 7
        %v489 = vadd.s32 %v488, 8
        %vm490 = vcmp.lt.s32.totalorder %v488, 4
        %vm491 = vcmp.lt.s32.totalorder %v489, 4
        %vm492 = vcmp.lt.s32.totalorder %v488, 8
        %vm493 = vcmp.lt.s32.totalorder %v489, 8
        %vm494 = vcmp.lt.s32.totalorder %v488, 12
        %vm495 = vcmp.lt.s32.totalorder %v489, 12
        %v496 = vsel %vm494, 1, 0
        %v497 = vsel %vm495, 1, 0
        %vm498 = vcmp.eq.s32.totalorder %v496, 1
        %vm499 = vcmp.eq.s32.totalorder %v497, 1
        %v502 = vlaneseq
        %v503 = vshrl.u32 %v502, 7
        %v504 = vsub.s32 2, %v503
        %v505 = vrot.slane %v485, %v504
        %v506 = vlaneseq
        %v507 = vshrl.u32 %v506, 7
        %v508 = vsub.s32 6, %v507
        %v509 = vrot.slane %v485, %v508
        %v510 = vlaneseq
        %v511 = vshrl.u32 %v510, 7
        %v512 = vsub.s32 2, %v511
        %v513 = vrot.slane %v486, %v512
        %v514 = vlaneseq
        %v515 = vshrl.u32 %v514, 7
        %v516 = vsub.s32 6, %v515
        %v517 = vrot.slane %v486, %v516
        %v522 = vlaneseq
        %v523 = vshrl.u32 %v522, 7
        %v524 = vsub.s32 2, %v523
        %v525 = vrot.slane %v505, %v524
        %v526 = vlaneseq
        %v527 = vshrl.u32 %v526, 7
        %v528 = vsub.s32 2, %v527
        %v529 = vrot.slane %v509, %v528
        %v530 = vlaneseq
        %v531 = vshrl.u32 %v530, 7
        %v532 = vsub.s32 2, %v531
        %v533 = vrot.slane %v513, %v532
        %v534 = vlaneseq
        %v535 = vshrl.u32 %v534, 7
        %v536 = vsub.s32 2, %v535
        %v537 = vrot.slane %v517, %v536
        %v538 = vlaneseq
        %v539 = vshrl.u32 %v538, 7
        %v540 = vsub.s32 0, %v539
        %v541 = vrot.slane %v485, %v540
        %v542 = vlaneseq
        %v543 = vshrl.u32 %v542, 7
        %v544 = vsub.s32 4, %v543
        %v545 = vrot.slane %v485, %v544
        %v546 = vlaneseq
        %v547 = vshrl.u32 %v546, 7
        %v548 = vsub.s32 0, %v547
        %v549 = vrot.slane %v486, %v548
        %v550 = vlaneseq
        %v551 = vshrl.u32 %v550, 7
        %v552 = vsub.s32 4, %v551
        %v553 = vrot.slane %v486, %v552
        %v558 = vlaneseq
        %v559 = vshrl.u32 %v558, 7
        %v560 = vsub.s32 0, %v559
        %v561 = vrot.slane %v541, %v560
        %v562 = vlaneseq
        %v563 = vshrl.u32 %v562, 7
        %v564 = vsub.s32 0, %v563
        %v565 = vrot.slane %v545, %v564
        %v566 = vlaneseq
        %v567 = vshrl.u32 %v566, 7
        %v568 = vsub.s32 0, %v567
        %v569 = vrot.slane %v549, %v568
        %v570 = vlaneseq
        %v571 = vshrl.u32 %v570, 7
        %v572 = vsub.s32 0, %v571
        %v573 = vrot.slane %v553, %v572
        %v574 = vsel %vm498, %v525, %v561
        %v575 = vsel %vm498, %v529, %v565
        %v576 = vsel %vm498, %v533, %v569
        %v577 = vsel %vm498, %v537, %v573
        %v578 = vsel %vm499, %v525, %v561
        %v579 = vsel %vm499, %v529, %v565
        %v580 = vsel %vm499, %v533, %v569
        %v581 = vsel %vm499, %v537, %v573
        %v582 = vsel %vm492, 1, 0
        %v583 = vsel %vm493, 1, 0
        %vm584 = vcmp.eq.s32.totalorder %v582, 1
        %vm585 = vcmp.eq.s32.totalorder %v583, 1
        %v586 = vlaneseq
        %v587 = vshrl.u32 %v586, 7
        %v588 = vsub.s32 1, %v587
        %v589 = vrot.slane %v485, %v588
        %v590 = vlaneseq
        %v591 = vshrl.u32 %v590, 7
        %v592 = vsub.s32 5, %v591
        %v593 = vrot.slane %v485, %v592
        %v594 = vlaneseq
        %v595 = vshrl.u32 %v594, 7
        %v596 = vsub.s32 1, %v595
        %v597 = vrot.slane %v486, %v596
        %v598 = vlaneseq
        %v599 = vshrl.u32 %v598, 7
        %v600 = vsub.s32 5, %v599
        %v601 = vrot.slane %v486, %v600
        %v606 = vlaneseq
        %v607 = vshrl.u32 %v606, 7
        %v608 = vsub.s32 1, %v607
        %v609 = vrot.slane %v589, %v608
        %v610 = vlaneseq
        %v611 = vshrl.u32 %v610, 7
        %v612 = vsub.s32 1, %v611
        %v613 = vrot.slane %v593, %v612
        %v614 = vlaneseq
        %v615 = vshrl.u32 %v614, 7
        %v616 = vsub.s32 1, %v615
        %v617 = vrot.slane %v597, %v616
        %v618 = vlaneseq
        %v619 = vshrl.u32 %v618, 7
        %v620 = vsub.s32 1, %v619
        %v621 = vrot.slane %v601, %v620
        %v622 = vsel %vm584, %v609, %v574
        %v623 = vsel %vm584, %v613, %v575
        %v624 = vsel %vm584, %v617, %v576
        %v625 = vsel %vm584, %v621, %v577
        %v626 = vsel %vm585, %v609, %v578
        %v627 = vsel %vm585, %v613, %v579
        %v628 = vsel %vm585, %v617, %v580
        %v629 = vsel %vm585, %v621, %v581
        %v630 = vsel %vm490, 1, 0
        %v631 = vsel %vm491, 1, 0
        %vm632 = vcmp.eq.s32.totalorder %v630, 1
        %vm633 = vcmp.eq.s32.totalorder %v631, 1
        %v634 = vsel %vm632, %v561, %v622
        %v635 = vsel %vm632, %v565, %v623
        %v636 = vsel %vm632, %v569, %v624
        %v637 = vsel %vm632, %v573, %v625
        %v638 = vsel %vm633, %v561, %v626
        %v639 = vsel %vm633, %v565, %v627
        %v640 = vsel %vm633, %v569, %v628
        %v641 = vsel %vm633, %v573, %v629
        %v642 = vld [vmem:[%s3] sm:$0xff]
        %v643 = vld [vmem:[%s3 + $0x8] sm:$0xff]
        %645 = vset.pattern.permute.xlu0 0
        %646 = vperm.xlu0 %645, %v642
        %v647 = vpop.permute.xlu0 %646
        %650 = vset.pattern.permute.xlu0 0
        %651 = vperm.xlu0 %650, %v643
        %v652 = vpop.permute.xlu0 %651
        %v654 = vmul.f32 %v647, %v634
        %v655 = vmul.f32 %v647, %v635
        %v656 = vmul.f32 %v647, %v636
        %v657 = vmul.f32 %v647, %v637
        %v658 = vmul.f32 %v652, %v638
        %v659 = vmul.f32 %v652, %v639
        %v660 = vmul.f32 %v652, %v640
        %v661 = vmul.f32 %v652, %v641
        %v662 = vand.u32 2147483647, %v654
        %vm663 = vcmp.le.f32.partialorder %v662, 0.7853982
        %vm664 = vcmp.lt.s32.totalorder %v654, 0
        %v665 = vand.u32 %v654, 2139095040
        %v666 = vshrl.u32 %v665, 23
        %v667 = vsub.s32 %v666, 127
        %v668 = vand.u32 2147483647, %v654
        %v669 = vand.u32 %v668, 8388607
        %v670 = vor.u32 %v669, 8388608
        %v671 = vsub.s32 0, %v670
        %v672 = vadd.s32 %v667, 1
        %vm673 = vcmp.gt.s32.totalorder %v672, 0
        %v674 = vsel %vm673, %v672, 0
        %v675 = vshrl.u32 %v674, 5
        %v676 = vand.u32 %v674, 31
        %v677 = vsub.s32 32, %v676
        %v678 = vshrl.u32 683565275, %v677
        %v679 = vshll.u32 683565275, %v676
        %v680 = vshrl.u32 2475754826, %v677
        %v681 = vor.u32 %v679, %v680
        %v682 = vshll.u32 2475754826, %v676
        %v683 = vshrl.u32 2131351028, %v677
        %v684 = vor.u32 %v682, %v683
        %v685 = vshll.u32 2131351028, %v676
        %v686 = vshrl.u32 2102212464, %v677
        %v687 = vor.u32 %v685, %v686
        %v688 = vshll.u32 2102212464, %v676
        %v689 = vshrl.u32 920167782, %v677
        %v690 = vor.u32 %v688, %v689
        %v691 = vshll.u32 920167782, %v676
        %v692 = vshrl.u32 1326507024, %v677
        %v693 = vor.u32 %v691, %v692
        %vm694 = vcmp.lt.s32.totalorder %v675, 1
        %vm695 = vcmp.lt.s32.totalorder %v675, 2
        %vm696 = vcmp.lt.s32.totalorder %v675, 3
        %vm697 = vcmp.lt.s32.totalorder %v675, 4
        %v698 = vsel %vm694, %v678, %v681
        %v699 = vsel %vm697, %v687, 2102212464
        %v700 = vsel %vm696, %v684, %v699
        %v701 = vsel %vm695, %v698, %v700
        %v702 = vsel %vm694, %v681, %v684
        %v703 = vsel %vm697, %v690, 920167782
        %v704 = vsel %vm696, %v687, %v703
        %v705 = vsel %vm695, %v702, %v704
        %v706 = vsel %vm694, %v684, %v687
        %v707 = vsel %vm697, %v693, 1326507024
        %v708 = vsel %vm696, %v690, %v707
        %v709 = vsel %vm695, %v706, %v708
        %v710 = vshll.u32 %v670, 8
        %v711 = vmul.u32.u64.compose %v710, %v709
        %v712 = vextract.low.u32 %v711
        %v713 = vextract.high.u32 %v711
        %v714 = vmul.u32.u64.compose %v710, %v705
        %v715 = vextract.low.u32 %v714
        %v716 = vextract.high.u32 %v714
        %v717 = vmul.u32 %v710, %v701
        %v718 = vadd.s32 %v713, %v715
        %vm719 = vc.u32 %v713, %v715
        %v720 = vadd.s32 %v716, 1
        %v721 = vsel %vm719, %v720, %v716
        %v722 = vadd.s32 %v717, %v721
        %v723 = vadd.s32 %v722, 536870912
        %v724 = vshrl.u32 %v723, 30
        %v725 = vshll.u32 %v724, 30
        %v726 = vsub.s32 %v722, %v725
        %vm727 = vcmp.lt.s32.totalorder %v726, 0
        %v728 = vsub.s32 0, %v726
        %v729 = vsel %vm727, %v728, %v726
        %v730 = vclz %v729
        %v731 = vsub.s32 %v730, 2
        %vm732 = vcmp.gt.s32.totalorder 0, %v731
        %v733 = vsel %vm732, 0, %v731
        %v734 = vsub.s32 32, %v733
        %v735 = vshll.u32 %v726, %v733
        %v736 = vshrl.u32 %v718, %v734
        %v737 = vor.u32 %v735, %v736
        %v738 = vsub.s32 4294967266, %v733
        %v739 = vadd.s32 %v738, 127
        %v740 = vshll.u32 %v739, 23
        %v741 = vor.u32 4788187, %v740
        %v742 = vand.u32 2147483647, %v741
        %v744 = vcvt.s32.f32 %v737
        %v745 = vmul.f32 %v744, %v742
        %v746 = vxor.u32 %v745, 2147483648
        %v747 = vsel %vm664, %v746, %v745
        %v748 = vsub.s32 4, %v724
        %v749 = vsel %vm664, %v748, %v724
        %v750 = vsel %vm663, %v654, %v747
        %v751 = vsel %vm663, 0, %v749
        %v752 = vcosq.f32.pop %v750
        %v753 = vsinq.f32.pop %v750
        %vm754 = vweird.f32 %v654
        %v755 = vand.u32 %v751, 3
        %vm756 = vcmp.lt.s32.totalorder %v755, 2
        %vm757 = vcmp.eq.s32.totalorder %v755, 0
        %v758 = vxor.u32 %v753, 2147483648
        %v759 = vsel %vm757, %v752, %v758
        %vm760 = vcmp.eq.s32.totalorder %v755, 2
        %v761 = vxor.u32 %v752, 2147483648
        %v762 = vsel %vm760, %v761, %v753
        %v763 = vsel %vm756, %v759, %v762
        %v764 = vsel %vm754, nan, %v763
        %v765 = vand.u32 2147483647, %v655
        %vm766 = vcmp.le.f32.partialorder %v765, 0.7853982
        %vm767 = vcmp.lt.s32.totalorder %v655, 0
        %v768 = vand.u32 %v655, 2139095040
        %v769 = vshrl.u32 %v768, 23
        %v770 = vsub.s32 %v769, 127
        %v771 = vand.u32 2147483647, %v655
        %v772 = vand.u32 %v771, 8388607
        %v773 = vor.u32 %v772, 8388608
        %v774 = vsub.s32 0, %v773
        %v775 = vadd.s32 %v770, 1
        %vm776 = vcmp.gt.s32.totalorder %v775, 0
        %v777 = vsel %vm776, %v775, 0
        %v778 = vshrl.u32 %v777, 5
        %v779 = vand.u32 %v777, 31
        %v780 = vsub.s32 32, %v779
        %v781 = vshrl.u32 683565275, %v780
        %v782 = vshll.u32 683565275, %v779
        %v783 = vshrl.u32 2475754826, %v780
        %v784 = vor.u32 %v782, %v783
        %v785 = vshll.u32 2475754826, %v779
        %v786 = vshrl.u32 2131351028, %v780
        %v787 = vor.u32 %v785, %v786
        %v788 = vshll.u32 2131351028, %v779
        %v789 = vshrl.u32 2102212464, %v780
        %v790 = vor.u32 %v788, %v789
        %v791 = vshll.u32 2102212464, %v779
        %v792 = vshrl.u32 920167782, %v780
        %v793 = vor.u32 %v791, %v792
        %v794 = vshll.u32 920167782, %v779
        %v795 = vshrl.u32 1326507024, %v780
        %v796 = vor.u32 %v794, %v795
        %vm797 = vcmp.lt.s32.totalorder %v778, 1
        %vm798 = vcmp.lt.s32.totalorder %v778, 2
        %vm799 = vcmp.lt.s32.totalorder %v778, 3
        %vm800 = vcmp.lt.s32.totalorder %v778, 4
        %v801 = vsel %vm797, %v781, %v784
        %v802 = vsel %vm800, %v790, 2102212464
        %v803 = vsel %vm799, %v787, %v802
        %v804 = vsel %vm798, %v801, %v803
        %v805 = vsel %vm797, %v784, %v787
        %v806 = vsel %vm800, %v793, 920167782
        %v807 = vsel %vm799, %v790, %v806
        %v808 = vsel %vm798, %v805, %v807
        %v809 = vsel %vm797, %v787, %v790
        %v810 = vsel %vm800, %v796, 1326507024
        %v811 = vsel %vm799, %v793, %v810
        %v812 = vsel %vm798, %v809, %v811
        %v813 = vshll.u32 %v773, 8
        %v814 = vmul.u32.u64.compose %v813, %v812
        %v815 = vextract.low.u32 %v814
        %v816 = vextract.high.u32 %v814
        %v817 = vmul.u32.u64.compose %v813, %v808
        %v818 = vextract.low.u32 %v817
        %v819 = vextract.high.u32 %v817
        %v820 = vmul.u32 %v813, %v804
        %v821 = vadd.s32 %v816, %v818
        %vm822 = vc.u32 %v816, %v818
        %v823 = vadd.s32 %v819, 1
        %v824 = vsel %vm822, %v823, %v819
        %v825 = vadd.s32 %v820, %v824
        %v826 = vadd.s32 %v825, 536870912
        %v827 = vshrl.u32 %v826, 30
        %v828 = vshll.u32 %v827, 30
        %v829 = vsub.s32 %v825, %v828
        %vm830 = vcmp.lt.s32.totalorder %v829, 0
        %v831 = vsub.s32 0, %v829
        %v832 = vsel %vm830, %v831, %v829
        %v833 = vclz %v832
        %v834 = vsub.s32 %v833, 2
        %vm835 = vcmp.gt.s32.totalorder 0, %v834
        %v836 = vsel %vm835, 0, %v834
        %v837 = vsub.s32 32, %v836
        %v838 = vshll.u32 %v829, %v836
        %v839 = vshrl.u32 %v821, %v837
        %v840 = vor.u32 %v838, %v839
        %v841 = vsub.s32 4294967266, %v836
        %v842 = vadd.s32 %v841, 127
        %v843 = vshll.u32 %v842, 23
        %v844 = vor.u32 4788187, %v843
        %v845 = vand.u32 2147483647, %v844
        %v847 = vcvt.s32.f32 %v840
        %v848 = vmul.f32 %v847, %v845
        %v849 = vxor.u32 %v848, 2147483648
        %v850 = vsel %vm767, %v849, %v848
        %v851 = vsub.s32 4, %v827
        %v852 = vsel %vm767, %v851, %v827
        %v853 = vsel %vm766, %v655, %v850
        %v854 = vsel %vm766, 0, %v852
        %v855 = vcosq.f32.pop %v853
        %v856 = vsinq.f32.pop %v853
        %vm857 = vweird.f32 %v655
        %v858 = vand.u32 %v854, 3
        %vm859 = vcmp.lt.s32.totalorder %v858, 2
        %vm860 = vcmp.eq.s32.totalorder %v858, 0
        %v861 = vxor.u32 %v856, 2147483648
        %v862 = vsel %vm860, %v855, %v861
        %vm863 = vcmp.eq.s32.totalorder %v858, 2
        %v864 = vxor.u32 %v855, 2147483648
        %v865 = vsel %vm863, %v864, %v856
        %v866 = vsel %vm859, %v862, %v865
        %v867 = vsel %vm857, nan, %v866
        %v868 = vand.u32 2147483647, %v656
        %vm869 = vcmp.le.f32.partialorder %v868, 0.7853982
        %vm870 = vcmp.lt.s32.totalorder %v656, 0
        %v871 = vand.u32 %v656, 2139095040
        %v872 = vshrl.u32 %v871, 23
        %v873 = vsub.s32 %v872, 127
        %v874 = vand.u32 2147483647, %v656
        %v875 = vand.u32 %v874, 8388607
        %v876 = vor.u32 %v875, 8388608
        %v877 = vsub.s32 0, %v876
        %v878 = vadd.s32 %v873, 1
        %vm879 = vcmp.gt.s32.totalorder %v878, 0
        %v880 = vsel %vm879, %v878, 0
        %v881 = vshrl.u32 %v880, 5
        %v882 = vand.u32 %v880, 31
        %v883 = vsub.s32 32, %v882
        %v884 = vshrl.u32 683565275, %v883
        %v885 = vshll.u32 683565275, %v882
        %v886 = vshrl.u32 2475754826, %v883
        %v887 = vor.u32 %v885, %v886
        %v888 = vshll.u32 2475754826, %v882
        %v889 = vshrl.u32 2131351028, %v883
        %v890 = vor.u32 %v888, %v889
        %v891 = vshll.u32 2131351028, %v882
        %v892 = vshrl.u32 2102212464, %v883
        %v893 = vor.u32 %v891, %v892
        %v894 = vshll.u32 2102212464, %v882
        %v895 = vshrl.u32 920167782, %v883
        %v896 = vor.u32 %v894, %v895
        %v897 = vshll.u32 920167782, %v882
        %v898 = vshrl.u32 1326507024, %v883
        %v899 = vor.u32 %v897, %v898
        %vm900 = vcmp.lt.s32.totalorder %v881, 1
        %vm901 = vcmp.lt.s32.totalorder %v881, 2
        %vm902 = vcmp.lt.s32.totalorder %v881, 3
        %vm903 = vcmp.lt.s32.totalorder %v881, 4
        %v904 = vsel %vm900, %v884, %v887
        %v905 = vsel %vm903, %v893, 2102212464
        %v906 = vsel %vm902, %v890, %v905
        %v907 = vsel %vm901, %v904, %v906
        %v908 = vsel %vm900, %v887, %v890
        %v909 = vsel %vm903, %v896, 920167782
        %v910 = vsel %vm902, %v893, %v909
        %v911 = vsel %vm901, %v908, %v910
        %v912 = vsel %vm900, %v890, %v893
        %v913 = vsel %vm903, %v899, 1326507024
        %v914 = vsel %vm902, %v896, %v913
        %v915 = vsel %vm901, %v912, %v914
        %v916 = vshll.u32 %v876, 8
        %v917 = vmul.u32.u64.compose %v916, %v915
        %v918 = vextract.low.u32 %v917
        %v919 = vextract.high.u32 %v917
        %v920 = vmul.u32.u64.compose %v916, %v911
        %v921 = vextract.low.u32 %v920
        %v922 = vextract.high.u32 %v920
        %v923 = vmul.u32 %v916, %v907
        %v924 = vadd.s32 %v919, %v921
        %vm925 = vc.u32 %v919, %v921
        %v926 = vadd.s32 %v922, 1
        %v927 = vsel %vm925, %v926, %v922
        %v928 = vadd.s32 %v923, %v927
        %v929 = vadd.s32 %v928, 536870912
        %v930 = vshrl.u32 %v929, 30
        %v931 = vshll.u32 %v930, 30
        %v932 = vsub.s32 %v928, %v931
        %vm933 = vcmp.lt.s32.totalorder %v932, 0
        %v934 = vsub.s32 0, %v932
        %v935 = vsel %vm933, %v934, %v932
        %v936 = vclz %v935
        %v937 = vsub.s32 %v936, 2
        %vm938 = vcmp.gt.s32.totalorder 0, %v937
        %v939 = vsel %vm938, 0, %v937
        %v940 = vsub.s32 32, %v939
        %v941 = vshll.u32 %v932, %v939
        %v942 = vshrl.u32 %v924, %v940
        %v943 = vor.u32 %v941, %v942
        %v944 = vsub.s32 4294967266, %v939
        %v945 = vadd.s32 %v944, 127
        %v946 = vshll.u32 %v945, 23
        %v947 = vor.u32 4788187, %v946
        %v948 = vand.u32 2147483647, %v947
        %v950 = vcvt.s32.f32 %v943
        %v951 = vmul.f32 %v950, %v948
        %v952 = vxor.u32 %v951, 2147483648
        %v953 = vsel %vm870, %v952, %v951
        %v954 = vsub.s32 4, %v930
        %v955 = vsel %vm870, %v954, %v930
        %v956 = vsel %vm869, %v656, %v953
        %v957 = vsel %vm869, 0, %v955
        %v958 = vcosq.f32.pop %v956
        %v959 = vsinq.f32.pop %v956
        %vm960 = vweird.f32 %v656
        %v961 = vand.u32 %v957, 3
        %vm962 = vcmp.lt.s32.totalorder %v961, 2
        %vm963 = vcmp.eq.s32.totalorder %v961, 0
        %v964 = vxor.u32 %v959, 2147483648
        %v965 = vsel %vm963, %v958, %v964
        %vm966 = vcmp.eq.s32.totalorder %v961, 2
        %v967 = vxor.u32 %v958, 2147483648
        %v968 = vsel %vm966, %v967, %v959
        %v969 = vsel %vm962, %v965, %v968
        %v970 = vsel %vm960, nan, %v969
        %v971 = vand.u32 2147483647, %v657
        %vm972 = vcmp.le.f32.partialorder %v971, 0.7853982
        %vm973 = vcmp.lt.s32.totalorder %v657, 0
        %v974 = vand.u32 %v657, 2139095040
        %v975 = vshrl.u32 %v974, 23
        %v976 = vsub.s32 %v975, 127
        %v977 = vand.u32 2147483647, %v657
        %v978 = vand.u32 %v977, 8388607
        %v979 = vor.u32 %v978, 8388608
        %v980 = vsub.s32 0, %v979
        %v981 = vadd.s32 %v976, 1
        %vm982 = vcmp.gt.s32.totalorder %v981, 0
        %v983 = vsel %vm982, %v981, 0
        %v984 = vshrl.u32 %v983, 5
        %v985 = vand.u32 %v983, 31
        %v986 = vsub.s32 32, %v985
        %v987 = vshrl.u32 683565275, %v986
        %v988 = vshll.u32 683565275, %v985
        %v989 = vshrl.u32 2475754826, %v986
        %v990 = vor.u32 %v988, %v989
        %v991 = vshll.u32 2475754826, %v985
        %v992 = vshrl.u32 2131351028, %v986
        %v993 = vor.u32 %v991, %v992
        %v994 = vshll.u32 2131351028, %v985
        %v995 = vshrl.u32 2102212464, %v986
        %v996 = vor.u32 %v994, %v995
        %v997 = vshll.u32 2102212464, %v985
        %v998 = vshrl.u32 920167782, %v986
        %v999 = vor.u32 %v997, %v998
        %v1000 = vshll.u32 920167782, %v985
        %v1001 = vshrl.u32 1326507024, %v986
        %v1002 = vor.u32 %v1000, %v1001
        %vm1003 = vcmp.lt.s32.totalorder %v984, 1
        %vm1004 = vcmp.lt.s32.totalorder %v984, 2
        %vm1005 = vcmp.lt.s32.totalorder %v984, 3
        %vm1006 = vcmp.lt.s32.totalorder %v984, 4
        %v1007 = vsel %vm1003, %v987, %v990
        %v1008 = vsel %vm1006, %v996, 2102212464
        %v1009 = vsel %vm1005, %v993, %v1008
        %v1010 = vsel %vm1004, %v1007, %v1009
        %v1011 = vsel %vm1003, %v990, %v993
        %v1012 = vsel %vm1006, %v999, 920167782
        %v1013 = vsel %vm1005, %v996, %v1012
        %v1014 = vsel %vm1004, %v1011, %v1013
        %v1015 = vsel %vm1003, %v993, %v996
        %v1016 = vsel %vm1006, %v1002, 1326507024
        %v1017 = vsel %vm1005, %v999, %v1016
        %v1018 = vsel %vm1004, %v1015, %v1017
        %v1019 = vshll.u32 %v979, 8
        %v1020 = vmul.u32.u64.compose %v1019, %v1018
        %v1021 = vextract.low.u32 %v1020
        %v1022 = vextract.high.u32 %v1020
        %v1023 = vmul.u32.u64.compose %v1019, %v1014
        %v1024 = vextract.low.u32 %v1023
        %v1025 = vextract.high.u32 %v1023
        %v1026 = vmul.u32 %v1019, %v1010
        %v1027 = vadd.s32 %v1022, %v1024
        %vm1028 = vc.u32 %v1022, %v1024
        %v1029 = vadd.s32 %v1025, 1
        %v1030 = vsel %vm1028, %v1029, %v1025
        %v1031 = vadd.s32 %v1026, %v1030
        %v1032 = vadd.s32 %v1031, 536870912
        %v1033 = vshrl.u32 %v1032, 30
        %v1034 = vshll.u32 %v1033, 30
        %v1035 = vsub.s32 %v1031, %v1034
        %vm1036 = vcmp.lt.s32.totalorder %v1035, 0
        %v1037 = vsub.s32 0, %v1035
        %v1038 = vsel %vm1036, %v1037, %v1035
        %v1039 = vclz %v1038
        %v1040 = vsub.s32 %v1039, 2
        %vm1041 = vcmp.gt.s32.totalorder 0, %v1040
        %v1042 = vsel %vm1041, 0, %v1040
        %v1043 = vsub.s32 32, %v1042
        %v1044 = vshll.u32 %v1035, %v1042
        %v1045 = vshrl.u32 %v1027, %v1043
        %v1046 = vor.u32 %v1044, %v1045
        %v1047 = vsub.s32 4294967266, %v1042
        %v1048 = vadd.s32 %v1047, 127
        %v1049 = vshll.u32 %v1048, 23
        %v1050 = vor.u32 4788187, %v1049
        %v1051 = vand.u32 2147483647, %v1050
        %v1053 = vcvt.s32.f32 %v1046
        %v1054 = vmul.f32 %v1053, %v1051
        %v1055 = vxor.u32 %v1054, 2147483648
        %v1056 = vsel %vm973, %v1055, %v1054
        %v1057 = vsub.s32 4, %v1033
        %v1058 = vsel %vm973, %v1057, %v1033
        %v1059 = vsel %vm972, %v657, %v1056
        %v1060 = vsel %vm972, 0, %v1058
        %v1061 = vcosq.f32.pop %v1059
        %v1062 = vsinq.f32.pop %v1059
        %vm1063 = vweird.f32 %v657
        %v1064 = vand.u32 %v1060, 3
        %vm1065 = vcmp.lt.s32.totalorder %v1064, 2
        %vm1066 = vcmp.eq.s32.totalorder %v1064, 0
        %v1067 = vxor.u32 %v1062, 2147483648
        %v1068 = vsel %vm1066, %v1061, %v1067
        %vm1069 = vcmp.eq.s32.totalorder %v1064, 2
        %v1070 = vxor.u32 %v1061, 2147483648
        %v1071 = vsel %vm1069, %v1070, %v1062
        %v1072 = vsel %vm1065, %v1068, %v1071
        %v1073 = vsel %vm1063, nan, %v1072
        %v1074 = vand.u32 2147483647, %v658
        %vm1075 = vcmp.le.f32.partialorder %v1074, 0.7853982
        %vm1076 = vcmp.lt.s32.totalorder %v658, 0
        %v1077 = vand.u32 %v658, 2139095040
        %v1078 = vshrl.u32 %v1077, 23
        %v1079 = vsub.s32 %v1078, 127
        %v1080 = vand.u32 2147483647, %v658
        %v1081 = vand.u32 %v1080, 8388607
        %v1082 = vor.u32 %v1081, 8388608
        %v1083 = vsub.s32 0, %v1082
        %v1084 = vadd.s32 %v1079, 1
        %vm1085 = vcmp.gt.s32.totalorder %v1084, 0
        %v1086 = vsel %vm1085, %v1084, 0
        %v1087 = vshrl.u32 %v1086, 5
        %v1088 = vand.u32 %v1086, 31
        %v1089 = vsub.s32 32, %v1088
        %v1090 = vshrl.u32 683565275, %v1089
        %v1091 = vshll.u32 683565275, %v1088
        %v1092 = vshrl.u32 2475754826, %v1089
        %v1093 = vor.u32 %v1091, %v1092
        %v1094 = vshll.u32 2475754826, %v1088
        %v1095 = vshrl.u32 2131351028, %v1089
        %v1096 = vor.u32 %v1094, %v1095
        %v1097 = vshll.u32 2131351028, %v1088
        %v1098 = vshrl.u32 2102212464, %v1089
        %v1099 = vor.u32 %v1097, %v1098
        %v1100 = vshll.u32 2102212464, %v1088
        %v1101 = vshrl.u32 920167782, %v1089
        %v1102 = vor.u32 %v1100, %v1101
        %v1103 = vshll.u32 920167782, %v1088
        %v1104 = vshrl.u32 1326507024, %v1089
        %v1105 = vor.u32 %v1103, %v1104
        %vm1106 = vcmp.lt.s32.totalorder %v1087, 1
        %vm1107 = vcmp.lt.s32.totalorder %v1087, 2
        %vm1108 = vcmp.lt.s32.totalorder %v1087, 3
        %vm1109 = vcmp.lt.s32.totalorder %v1087, 4
        %v1110 = vsel %vm1106, %v1090, %v1093
        %v1111 = vsel %vm1109, %v1099, 2102212464
        %v1112 = vsel %vm1108, %v1096, %v1111
        %v1113 = vsel %vm1107, %v1110, %v1112
        %v1114 = vsel %vm1106, %v1093, %v1096
        %v1115 = vsel %vm1109, %v1102, 920167782
        %v1116 = vsel %vm1108, %v1099, %v1115
        %v1117 = vsel %vm1107, %v1114, %v1116
        %v1118 = vsel %vm1106, %v1096, %v1099
        %v1119 = vsel %vm1109, %v1105, 1326507024
        %v1120 = vsel %vm1108, %v1102, %v1119
        %v1121 = vsel %vm1107, %v1118, %v1120
        %v1122 = vshll.u32 %v1082, 8
        %v1123 = vmul.u32.u64.compose %v1122, %v1121
        %v1124 = vextract.low.u32 %v1123
        %v1125 = vextract.high.u32 %v1123
        %v1126 = vmul.u32.u64.compose %v1122, %v1117
        %v1127 = vextract.low.u32 %v1126
        %v1128 = vextract.high.u32 %v1126
        %v1129 = vmul.u32 %v1122, %v1113
        %v1130 = vadd.s32 %v1125, %v1127
        %vm1131 = vc.u32 %v1125, %v1127
        %v1132 = vadd.s32 %v1128, 1
        %v1133 = vsel %vm1131, %v1132, %v1128
        %v1134 = vadd.s32 %v1129, %v1133
        %v1135 = vadd.s32 %v1134, 536870912
        %v1136 = vshrl.u32 %v1135, 30
        %v1137 = vshll.u32 %v1136, 30
        %v1138 = vsub.s32 %v1134, %v1137
        %vm1139 = vcmp.lt.s32.totalorder %v1138, 0
        %v1140 = vsub.s32 0, %v1138
        %v1141 = vsel %vm1139, %v1140, %v1138
        %v1142 = vclz %v1141
        %v1143 = vsub.s32 %v1142, 2
        %vm1144 = vcmp.gt.s32.totalorder 0, %v1143
        %v1145 = vsel %vm1144, 0, %v1143
        %v1146 = vsub.s32 32, %v1145
        %v1147 = vshll.u32 %v1138, %v1145
        %v1148 = vshrl.u32 %v1130, %v1146
        %v1149 = vor.u32 %v1147, %v1148
        %v1150 = vsub.s32 4294967266, %v1145
        %v1151 = vadd.s32 %v1150, 127
        %v1152 = vshll.u32 %v1151, 23
        %v1153 = vor.u32 4788187, %v1152
        %v1154 = vand.u32 2147483647, %v1153
        %v1156 = vcvt.s32.f32 %v1149
        %v1157 = vmul.f32 %v1156, %v1154
        %v1158 = vxor.u32 %v1157, 2147483648
        %v1159 = vsel %vm1076, %v1158, %v1157
        %v1160 = vsub.s32 4, %v1136
        %v1161 = vsel %vm1076, %v1160, %v1136
        %v1162 = vsel %vm1075, %v658, %v1159
        %v1163 = vsel %vm1075, 0, %v1161
        %v1164 = vcosq.f32.pop %v1162
        %v1165 = vsinq.f32.pop %v1162
        %vm1166 = vweird.f32 %v658
        %v1167 = vand.u32 %v1163, 3
        %vm1168 = vcmp.lt.s32.totalorder %v1167, 2
        %vm1169 = vcmp.eq.s32.totalorder %v1167, 0
        %v1170 = vxor.u32 %v1165, 2147483648
        %v1171 = vsel %vm1169, %v1164, %v1170
        %vm1172 = vcmp.eq.s32.totalorder %v1167, 2
        %v1173 = vxor.u32 %v1164, 2147483648
        %v1174 = vsel %vm1172, %v1173, %v1165
        %v1175 = vsel %vm1168, %v1171, %v1174
        %v1176 = vsel %vm1166, nan, %v1175
        %v1177 = vand.u32 2147483647, %v659
        %vm1178 = vcmp.le.f32.partialorder %v1177, 0.7853982
        %vm1179 = vcmp.lt.s32.totalorder %v659, 0
        %v1180 = vand.u32 %v659, 2139095040
        %v1181 = vshrl.u32 %v1180, 23
        %v1182 = vsub.s32 %v1181, 127
        %v1183 = vand.u32 2147483647, %v659
        %v1184 = vand.u32 %v1183, 8388607
        %v1185 = vor.u32 %v1184, 8388608
        %v1186 = vsub.s32 0, %v1185
        %v1187 = vadd.s32 %v1182, 1
        %vm1188 = vcmp.gt.s32.totalorder %v1187, 0
        %v1189 = vsel %vm1188, %v1187, 0
        %v1190 = vshrl.u32 %v1189, 5
        %v1191 = vand.u32 %v1189, 31
        %v1192 = vsub.s32 32, %v1191
        %v1193 = vshrl.u32 683565275, %v1192
        %v1194 = vshll.u32 683565275, %v1191
        %v1195 = vshrl.u32 2475754826, %v1192
        %v1196 = vor.u32 %v1194, %v1195
        %v1197 = vshll.u32 2475754826, %v1191
        %v1198 = vshrl.u32 2131351028, %v1192
        %v1199 = vor.u32 %v1197, %v1198
        %v1200 = vshll.u32 2131351028, %v1191
        %v1201 = vshrl.u32 2102212464, %v1192
        %v1202 = vor.u32 %v1200, %v1201
        %v1203 = vshll.u32 2102212464, %v1191
        %v1204 = vshrl.u32 920167782, %v1192
        %v1205 = vor.u32 %v1203, %v1204
        %v1206 = vshll.u32 920167782, %v1191
        %v1207 = vshrl.u32 1326507024, %v1192
        %v1208 = vor.u32 %v1206, %v1207
        %vm1209 = vcmp.lt.s32.totalorder %v1190, 1
        %vm1210 = vcmp.lt.s32.totalorder %v1190, 2
        %vm1211 = vcmp.lt.s32.totalorder %v1190, 3
        %vm1212 = vcmp.lt.s32.totalorder %v1190, 4
        %v1213 = vsel %vm1209, %v1193, %v1196
        %v1214 = vsel %vm1212, %v1202, 2102212464
        %v1215 = vsel %vm1211, %v1199, %v1214
        %v1216 = vsel %vm1210, %v1213, %v1215
        %v1217 = vsel %vm1209, %v1196, %v1199
        %v1218 = vsel %vm1212, %v1205, 920167782
        %v1219 = vsel %vm1211, %v1202, %v1218
        %v1220 = vsel %vm1210, %v1217, %v1219
        %v1221 = vsel %vm1209, %v1199, %v1202
        %v1222 = vsel %vm1212, %v1208, 1326507024
        %v1223 = vsel %vm1211, %v1205, %v1222
        %v1224 = vsel %vm1210, %v1221, %v1223
        %v1225 = vshll.u32 %v1185, 8
        %v1226 = vmul.u32.u64.compose %v1225, %v1224
        %v1227 = vextract.low.u32 %v1226
        %v1228 = vextract.high.u32 %v1226
        %v1229 = vmul.u32.u64.compose %v1225, %v1220
        %v1230 = vextract.low.u32 %v1229
        %v1231 = vextract.high.u32 %v1229
        %v1232 = vmul.u32 %v1225, %v1216
        %v1233 = vadd.s32 %v1228, %v1230
        %vm1234 = vc.u32 %v1228, %v1230
        %v1235 = vadd.s32 %v1231, 1
        %v1236 = vsel %vm1234, %v1235, %v1231
        %v1237 = vadd.s32 %v1232, %v1236
        %v1238 = vadd.s32 %v1237, 536870912
        %v1239 = vshrl.u32 %v1238, 30
        %v1240 = vshll.u32 %v1239, 30
        %v1241 = vsub.s32 %v1237, %v1240
        %vm1242 = vcmp.lt.s32.totalorder %v1241, 0
        %v1243 = vsub.s32 0, %v1241
        %v1244 = vsel %vm1242, %v1243, %v1241
        %v1245 = vclz %v1244
        %v1246 = vsub.s32 %v1245, 2
        %vm1247 = vcmp.gt.s32.totalorder 0, %v1246
        %v1248 = vsel %vm1247, 0, %v1246
        %v1249 = vsub.s32 32, %v1248
        %v1250 = vshll.u32 %v1241, %v1248
        %v1251 = vshrl.u32 %v1233, %v1249
        %v1252 = vor.u32 %v1250, %v1251
        %v1253 = vsub.s32 4294967266, %v1248
        %v1254 = vadd.s32 %v1253, 127
        %v1255 = vshll.u32 %v1254, 23
        %v1256 = vor.u32 4788187, %v1255
        %v1257 = vand.u32 2147483647, %v1256
        %v1259 = vcvt.s32.f32 %v1252
        %v1260 = vmul.f32 %v1259, %v1257
        %v1261 = vxor.u32 %v1260, 2147483648
        %v1262 = vsel %vm1179, %v1261, %v1260
        %v1263 = vsub.s32 4, %v1239
        %v1264 = vsel %vm1179, %v1263, %v1239
        %v1265 = vsel %vm1178, %v659, %v1262
        %v1266 = vsel %vm1178, 0, %v1264
        %v1267 = vcosq.f32.pop %v1265
        %v1268 = vsinq.f32.pop %v1265
        %vm1269 = vweird.f32 %v659
        %v1270 = vand.u32 %v1266, 3
        %vm1271 = vcmp.lt.s32.totalorder %v1270, 2
        %vm1272 = vcmp.eq.s32.totalorder %v1270, 0
        %v1273 = vxor.u32 %v1268, 2147483648
        %v1274 = vsel %vm1272, %v1267, %v1273
        %vm1275 = vcmp.eq.s32.totalorder %v1270, 2
        %v1276 = vxor.u32 %v1267, 2147483648
        %v1277 = vsel %vm1275, %v1276, %v1268
        %v1278 = vsel %vm1271, %v1274, %v1277
        %v1279 = vsel %vm1269, nan, %v1278
        %v1280 = vand.u32 2147483647, %v660
        %vm1281 = vcmp.le.f32.partialorder %v1280, 0.7853982
        %vm1282 = vcmp.lt.s32.totalorder %v660, 0
        %v1283 = vand.u32 %v660, 2139095040
        %v1284 = vshrl.u32 %v1283, 23
        %v1285 = vsub.s32 %v1284, 127
        %v1286 = vand.u32 2147483647, %v660
        %v1287 = vand.u32 %v1286, 8388607
        %v1288 = vor.u32 %v1287, 8388608
        %v1289 = vsub.s32 0, %v1288
        %v1290 = vadd.s32 %v1285, 1
        %vm1291 = vcmp.gt.s32.totalorder %v1290, 0
        %v1292 = vsel %vm1291, %v1290, 0
        %v1293 = vshrl.u32 %v1292, 5
        %v1294 = vand.u32 %v1292, 31
        %v1295 = vsub.s32 32, %v1294
        %v1296 = vshrl.u32 683565275, %v1295
        %v1297 = vshll.u32 683565275, %v1294
        %v1298 = vshrl.u32 2475754826, %v1295
        %v1299 = vor.u32 %v1297, %v1298
        %v1300 = vshll.u32 2475754826, %v1294
        %v1301 = vshrl.u32 2131351028, %v1295
        %v1302 = vor.u32 %v1300, %v1301
        %v1303 = vshll.u32 2131351028, %v1294
        %v1304 = vshrl.u32 2102212464, %v1295
        %v1305 = vor.u32 %v1303, %v1304
        %v1306 = vshll.u32 2102212464, %v1294
        %v1307 = vshrl.u32 920167782, %v1295
        %v1308 = vor.u32 %v1306, %v1307
        %v1309 = vshll.u32 920167782, %v1294
        %v1310 = vshrl.u32 1326507024, %v1295
        %v1311 = vor.u32 %v1309, %v1310
        %vm1312 = vcmp.lt.s32.totalorder %v1293, 1
        %vm1313 = vcmp.lt.s32.totalorder %v1293, 2
        %vm1314 = vcmp.lt.s32.totalorder %v1293, 3
        %vm1315 = vcmp.lt.s32.totalorder %v1293, 4
        %v1316 = vsel %vm1312, %v1296, %v1299
        %v1317 = vsel %vm1315, %v1305, 2102212464
        %v1318 = vsel %vm1314, %v1302, %v1317
        %v1319 = vsel %vm1313, %v1316, %v1318
        %v1320 = vsel %vm1312, %v1299, %v1302
        %v1321 = vsel %vm1315, %v1308, 920167782
        %v1322 = vsel %vm1314, %v1305, %v1321
        %v1323 = vsel %vm1313, %v1320, %v1322
        %v1324 = vsel %vm1312, %v1302, %v1305
        %v1325 = vsel %vm1315, %v1311, 1326507024
        %v1326 = vsel %vm1314, %v1308, %v1325
        %v1327 = vsel %vm1313, %v1324, %v1326
        %v1328 = vshll.u32 %v1288, 8
        %v1329 = vmul.u32.u64.compose %v1328, %v1327
        %v1330 = vextract.low.u32 %v1329
        %v1331 = vextract.high.u32 %v1329
        %v1332 = vmul.u32.u64.compose %v1328, %v1323
        %v1333 = vextract.low.u32 %v1332
        %v1334 = vextract.high.u32 %v1332
        %v1335 = vmul.u32 %v1328, %v1319
        %v1336 = vadd.s32 %v1331, %v1333
        %vm1337 = vc.u32 %v1331, %v1333
        %v1338 = vadd.s32 %v1334, 1
        %v1339 = vsel %vm1337, %v1338, %v1334
        %v1340 = vadd.s32 %v1335, %v1339
        %v1341 = vadd.s32 %v1340, 536870912
        %v1342 = vshrl.u32 %v1341, 30
        %v1343 = vshll.u32 %v1342, 30
        %v1344 = vsub.s32 %v1340, %v1343
        %vm1345 = vcmp.lt.s32.totalorder %v1344, 0
        %v1346 = vsub.s32 0, %v1344
        %v1347 = vsel %vm1345, %v1346, %v1344
        %v1348 = vclz %v1347
        %v1349 = vsub.s32 %v1348, 2
        %vm1350 = vcmp.gt.s32.totalorder 0, %v1349
        %v1351 = vsel %vm1350, 0, %v1349
        %v1352 = vsub.s32 32, %v1351
        %v1353 = vshll.u32 %v1344, %v1351
        %v1354 = vshrl.u32 %v1336, %v1352
        %v1355 = vor.u32 %v1353, %v1354
        %v1356 = vsub.s32 4294967266, %v1351
        %v1357 = vadd.s32 %v1356, 127
        %v1358 = vshll.u32 %v1357, 23
        %v1359 = vor.u32 4788187, %v1358
        %v1360 = vand.u32 2147483647, %v1359
        %v1362 = vcvt.s32.f32 %v1355
        %v1363 = vmul.f32 %v1362, %v1360
        %v1364 = vxor.u32 %v1363, 2147483648
        %v1365 = vsel %vm1282, %v1364, %v1363
        %v1366 = vsub.s32 4, %v1342
        %v1367 = vsel %vm1282, %v1366, %v1342
        %v1368 = vsel %vm1281, %v660, %v1365
        %v1369 = vsel %vm1281, 0, %v1367
        %v1370 = vcosq.f32.pop %v1368
        %v1371 = vsinq.f32.pop %v1368
        %vm1372 = vweird.f32 %v660
        %v1373 = vand.u32 %v1369, 3
        %vm1374 = vcmp.lt.s32.totalorder %v1373, 2
        %vm1375 = vcmp.eq.s32.totalorder %v1373, 0
        %v1376 = vxor.u32 %v1371, 2147483648
        %v1377 = vsel %vm1375, %v1370, %v1376
        %vm1378 = vcmp.eq.s32.totalorder %v1373, 2
        %v1379 = vxor.u32 %v1370, 2147483648
        %v1380 = vsel %vm1378, %v1379, %v1371
        %v1381 = vsel %vm1374, %v1377, %v1380
        %v1382 = vsel %vm1372, nan, %v1381
        %v1383 = vand.u32 2147483647, %v661
        %vm1384 = vcmp.le.f32.partialorder %v1383, 0.7853982
        %vm1385 = vcmp.lt.s32.totalorder %v661, 0
        %v1386 = vand.u32 %v661, 2139095040
        %v1387 = vshrl.u32 %v1386, 23
        %v1388 = vsub.s32 %v1387, 127
        %v1389 = vand.u32 2147483647, %v661
        %v1390 = vand.u32 %v1389, 8388607
        %v1391 = vor.u32 %v1390, 8388608
        %v1392 = vsub.s32 0, %v1391
        %v1393 = vadd.s32 %v1388, 1
        %vm1394 = vcmp.gt.s32.totalorder %v1393, 0
        %v1395 = vsel %vm1394, %v1393, 0
        %v1396 = vshrl.u32 %v1395, 5
        %v1397 = vand.u32 %v1395, 31
        %v1398 = vsub.s32 32, %v1397
        %v1399 = vshrl.u32 683565275, %v1398
        %v1400 = vshll.u32 683565275, %v1397
        %v1401 = vshrl.u32 2475754826, %v1398
        %v1402 = vor.u32 %v1400, %v1401
        %v1403 = vshll.u32 2475754826, %v1397
        %v1404 = vshrl.u32 2131351028, %v1398
        %v1405 = vor.u32 %v1403, %v1404
        %v1406 = vshll.u32 2131351028, %v1397
        %v1407 = vshrl.u32 2102212464, %v1398
        %v1408 = vor.u32 %v1406, %v1407
        %v1409 = vshll.u32 2102212464, %v1397
        %v1410 = vshrl.u32 920167782, %v1398
        %v1411 = vor.u32 %v1409, %v1410
        %v1412 = vshll.u32 920167782, %v1397
        %v1413 = vshrl.u32 1326507024, %v1398
        %v1414 = vor.u32 %v1412, %v1413
        %vm1415 = vcmp.lt.s32.totalorder %v1396, 1
        %vm1416 = vcmp.lt.s32.totalorder %v1396, 2
        %vm1417 = vcmp.lt.s32.totalorder %v1396, 3
        %vm1418 = vcmp.lt.s32.totalorder %v1396, 4
        %v1419 = vsel %vm1415, %v1399, %v1402
        %v1420 = vsel %vm1418, %v1408, 2102212464
        %v1421 = vsel %vm1417, %v1405, %v1420
        %v1422 = vsel %vm1416, %v1419, %v1421
        %v1423 = vsel %vm1415, %v1402, %v1405
        %v1424 = vsel %vm1418, %v1411, 920167782
        %v1425 = vsel %vm1417, %v1408, %v1424
        %v1426 = vsel %vm1416, %v1423, %v1425
        %v1427 = vsel %vm1415, %v1405, %v1408
        %v1428 = vsel %vm1418, %v1414, 1326507024
        %v1429 = vsel %vm1417, %v1411, %v1428
        %v1430 = vsel %vm1416, %v1427, %v1429
        %v1431 = vshll.u32 %v1391, 8
        %v1432 = vmul.u32.u64.compose %v1431, %v1430
        %v1433 = vextract.low.u32 %v1432
        %v1434 = vextract.high.u32 %v1432
        %v1435 = vmul.u32.u64.compose %v1431, %v1426
        %v1436 = vextract.low.u32 %v1435
        %v1437 = vextract.high.u32 %v1435
        %v1438 = vmul.u32 %v1431, %v1422
        %v1439 = vadd.s32 %v1434, %v1436
        %vm1440 = vc.u32 %v1434, %v1436
        %v1441 = vadd.s32 %v1437, 1
        %v1442 = vsel %vm1440, %v1441, %v1437
        %v1443 = vadd.s32 %v1438, %v1442
        %v1444 = vadd.s32 %v1443, 536870912
        %v1445 = vshrl.u32 %v1444, 30
        %v1446 = vshll.u32 %v1445, 30
        %v1447 = vsub.s32 %v1443, %v1446
        %vm1448 = vcmp.lt.s32.totalorder %v1447, 0
        %v1449 = vsub.s32 0, %v1447
        %v1450 = vsel %vm1448, %v1449, %v1447
        %v1451 = vclz %v1450
        %v1452 = vsub.s32 %v1451, 2
        %vm1453 = vcmp.gt.s32.totalorder 0, %v1452
        %v1454 = vsel %vm1453, 0, %v1452
        %v1455 = vsub.s32 32, %v1454
        %v1456 = vshll.u32 %v1447, %v1454
        %v1457 = vshrl.u32 %v1439, %v1455
        %v1458 = vor.u32 %v1456, %v1457
        %v1459 = vsub.s32 4294967266, %v1454
        %v1460 = vadd.s32 %v1459, 127
        %v1461 = vshll.u32 %v1460, 23
        %v1462 = vor.u32 4788187, %v1461
        %v1463 = vand.u32 2147483647, %v1462
        %v1465 = vcvt.s32.f32 %v1458
        %v1466 = vmul.f32 %v1465, %v1463
        %v1467 = vxor.u32 %v1466, 2147483648
        %v1468 = vsel %vm1385, %v1467, %v1466
        %v1469 = vsub.s32 4, %v1445
        %v1470 = vsel %vm1385, %v1469, %v1445
        %v1471 = vsel %vm1384, %v661, %v1468
        %v1472 = vsel %vm1384, 0, %v1470
        %v1473 = vcosq.f32.pop %v1471
        %v1474 = vsinq.f32.pop %v1471
        %vm1475 = vweird.f32 %v661
        %v1476 = vand.u32 %v1472, 3
        %vm1477 = vcmp.lt.s32.totalorder %v1476, 2
        %vm1478 = vcmp.eq.s32.totalorder %v1476, 0
        %v1479 = vxor.u32 %v1474, 2147483648
        %v1480 = vsel %vm1478, %v1473, %v1479
        %vm1481 = vcmp.eq.s32.totalorder %v1476, 2
        %v1482 = vxor.u32 %v1473, 2147483648
        %v1483 = vsel %vm1481, %v1482, %v1474
        %v1484 = vsel %vm1477, %v1480, %v1483
        %v1485 = vsel %vm1475, nan, %v1484
        %v1486 = vand.u32 2147483647, %v654
        %vm1487 = vcmp.le.f32.partialorder %v1486, 0.7853982
        %vm1488 = vcmp.lt.s32.totalorder %v654, 0
        %v1489 = vand.u32 %v654, 2139095040
        %v1490 = vshrl.u32 %v1489, 23
        %v1491 = vsub.s32 %v1490, 127
        %v1492 = vand.u32 2147483647, %v654
        %v1493 = vand.u32 %v1492, 8388607
        %v1494 = vor.u32 %v1493, 8388608
        %v1495 = vsub.s32 0, %v1494
        %v1496 = vadd.s32 %v1491, 1
        %vm1497 = vcmp.gt.s32.totalorder %v1496, 0
        %v1498 = vsel %vm1497, %v1496, 0
        %v1499 = vshrl.u32 %v1498, 5
        %v1500 = vand.u32 %v1498, 31
        %v1501 = vsub.s32 32, %v1500
        %v1502 = vshrl.u32 683565275, %v1501
        %v1503 = vshll.u32 683565275, %v1500
        %v1504 = vshrl.u32 2475754826, %v1501
        %v1505 = vor.u32 %v1503, %v1504
        %v1506 = vshll.u32 2475754826, %v1500
        %v1507 = vshrl.u32 2131351028, %v1501
        %v1508 = vor.u32 %v1506, %v1507
        %v1509 = vshll.u32 2131351028, %v1500
        %v1510 = vshrl.u32 2102212464, %v1501
        %v1511 = vor.u32 %v1509, %v1510
        %v1512 = vshll.u32 2102212464, %v1500
        %v1513 = vshrl.u32 920167782, %v1501
        %v1514 = vor.u32 %v1512, %v1513
        %v1515 = vshll.u32 920167782, %v1500
        %v1516 = vshrl.u32 1326507024, %v1501
        %v1517 = vor.u32 %v1515, %v1516
        %vm1518 = vcmp.lt.s32.totalorder %v1499, 1
        %vm1519 = vcmp.lt.s32.totalorder %v1499, 2
        %vm1520 = vcmp.lt.s32.totalorder %v1499, 3
        %vm1521 = vcmp.lt.s32.totalorder %v1499, 4
        %v1522 = vsel %vm1518, %v1502, %v1505
        %v1523 = vsel %vm1521, %v1511, 2102212464
        %v1524 = vsel %vm1520, %v1508, %v1523
        %v1525 = vsel %vm1519, %v1522, %v1524
        %v1526 = vsel %vm1518, %v1505, %v1508
        %v1527 = vsel %vm1521, %v1514, 920167782
        %v1528 = vsel %vm1520, %v1511, %v1527
        %v1529 = vsel %vm1519, %v1526, %v1528
        %v1530 = vsel %vm1518, %v1508, %v1511
        %v1531 = vsel %vm1521, %v1517, 1326507024
        %v1532 = vsel %vm1520, %v1514, %v1531
        %v1533 = vsel %vm1519, %v1530, %v1532
        %v1534 = vshll.u32 %v1494, 8
        %v1535 = vmul.u32.u64.compose %v1534, %v1533
        %v1536 = vextract.low.u32 %v1535
        %v1537 = vextract.high.u32 %v1535
        %v1538 = vmul.u32.u64.compose %v1534, %v1529
        %v1539 = vextract.low.u32 %v1538
        %v1540 = vextract.high.u32 %v1538
        %v1541 = vmul.u32 %v1534, %v1525
        %v1542 = vadd.s32 %v1537, %v1539
        %vm1543 = vc.u32 %v1537, %v1539
        %v1544 = vadd.s32 %v1540, 1
        %v1545 = vsel %vm1543, %v1544, %v1540
        %v1546 = vadd.s32 %v1541, %v1545
        %v1547 = vadd.s32 %v1546, 536870912
        %v1548 = vshrl.u32 %v1547, 30
        %v1549 = vshll.u32 %v1548, 30
        %v1550 = vsub.s32 %v1546, %v1549
        %vm1551 = vcmp.lt.s32.totalorder %v1550, 0
        %v1552 = vsub.s32 0, %v1550
        %v1553 = vsel %vm1551, %v1552, %v1550
        %v1554 = vclz %v1553
        %v1555 = vsub.s32 %v1554, 2
        %vm1556 = vcmp.gt.s32.totalorder 0, %v1555
        %v1557 = vsel %vm1556, 0, %v1555
        %v1558 = vsub.s32 32, %v1557
        %v1559 = vshll.u32 %v1550, %v1557
        %v1560 = vshrl.u32 %v1542, %v1558
        %v1561 = vor.u32 %v1559, %v1560
        %v1562 = vsub.s32 4294967266, %v1557
        %v1563 = vadd.s32 %v1562, 127
        %v1564 = vshll.u32 %v1563, 23
        %v1565 = vor.u32 4788187, %v1564
        %v1566 = vand.u32 2147483647, %v1565
        %v1568 = vcvt.s32.f32 %v1561
        %v1569 = vmul.f32 %v1568, %v1566
        %v1570 = vxor.u32 %v1569, 2147483648
        %v1571 = vsel %vm1488, %v1570, %v1569
        %v1572 = vsub.s32 4, %v1548
        %v1573 = vsel %vm1488, %v1572, %v1548
        %v1574 = vsel %vm1487, %v654, %v1571
        %v1575 = vsel %vm1487, 0, %v1573
        %v1576 = vcosq.f32.pop %v1574
        %v1577 = vsinq.f32.pop %v1574
        %vm1578 = vweird.f32 %v654
        %v1579 = vadd.s32 %v1575, 3
        %v1580 = vand.u32 %v1579, 3
        %vm1581 = vcmp.lt.s32.totalorder %v1580, 2
        %vm1582 = vcmp.eq.s32.totalorder %v1580, 0
        %v1583 = vxor.u32 %v1577, 2147483648
        %v1584 = vsel %vm1582, %v1576, %v1583
        %vm1585 = vcmp.eq.s32.totalorder %v1580, 2
        %v1586 = vxor.u32 %v1576, 2147483648
        %v1587 = vsel %vm1585, %v1586, %v1577
        %v1588 = vsel %vm1581, %v1584, %v1587
        %v1589 = vsel %vm1578, nan, %v1588
        %v1590 = vand.u32 2147483647, %v655
        %vm1591 = vcmp.le.f32.partialorder %v1590, 0.7853982
        %vm1592 = vcmp.lt.s32.totalorder %v655, 0
        %v1593 = vand.u32 %v655, 2139095040
        %v1594 = vshrl.u32 %v1593, 23
        %v1595 = vsub.s32 %v1594, 127
        %v1596 = vand.u32 2147483647, %v655
        %v1597 = vand.u32 %v1596, 8388607
        %v1598 = vor.u32 %v1597, 8388608
        %v1599 = vsub.s32 0, %v1598
        %v1600 = vadd.s32 %v1595, 1
        %vm1601 = vcmp.gt.s32.totalorder %v1600, 0
        %v1602 = vsel %vm1601, %v1600, 0
        %v1603 = vshrl.u32 %v1602, 5
        %v1604 = vand.u32 %v1602, 31
        %v1605 = vsub.s32 32, %v1604
        %v1606 = vshrl.u32 683565275, %v1605
        %v1607 = vshll.u32 683565275, %v1604
        %v1608 = vshrl.u32 2475754826, %v1605
        %v1609 = vor.u32 %v1607, %v1608
        %v1610 = vshll.u32 2475754826, %v1604
        %v1611 = vshrl.u32 2131351028, %v1605
        %v1612 = vor.u32 %v1610, %v1611
        %v1613 = vshll.u32 2131351028, %v1604
        %v1614 = vshrl.u32 2102212464, %v1605
        %v1615 = vor.u32 %v1613, %v1614
        %v1616 = vshll.u32 2102212464, %v1604
        %v1617 = vshrl.u32 920167782, %v1605
        %v1618 = vor.u32 %v1616, %v1617
        %v1619 = vshll.u32 920167782, %v1604
        %v1620 = vshrl.u32 1326507024, %v1605
        %v1621 = vor.u32 %v1619, %v1620
        %vm1622 = vcmp.lt.s32.totalorder %v1603, 1
        %vm1623 = vcmp.lt.s32.totalorder %v1603, 2
        %vm1624 = vcmp.lt.s32.totalorder %v1603, 3
        %vm1625 = vcmp.lt.s32.totalorder %v1603, 4
        %v1626 = vsel %vm1622, %v1606, %v1609
        %v1627 = vsel %vm1625, %v1615, 2102212464
        %v1628 = vsel %vm1624, %v1612, %v1627
        %v1629 = vsel %vm1623, %v1626, %v1628
        %v1630 = vsel %vm1622, %v1609, %v1612
        %v1631 = vsel %vm1625, %v1618, 920167782
        %v1632 = vsel %vm1624, %v1615, %v1631
        %v1633 = vsel %vm1623, %v1630, %v1632
        %v1634 = vsel %vm1622, %v1612, %v1615
        %v1635 = vsel %vm1625, %v1621, 1326507024
        %v1636 = vsel %vm1624, %v1618, %v1635
        %v1637 = vsel %vm1623, %v1634, %v1636
        %v1638 = vshll.u32 %v1598, 8
        %v1639 = vmul.u32.u64.compose %v1638, %v1637
        %v1640 = vextract.low.u32 %v1639
        %v1641 = vextract.high.u32 %v1639
        %v1642 = vmul.u32.u64.compose %v1638, %v1633
        %v1643 = vextract.low.u32 %v1642
        %v1644 = vextract.high.u32 %v1642
        %v1645 = vmul.u32 %v1638, %v1629
        %v1646 = vadd.s32 %v1641, %v1643
        %vm1647 = vc.u32 %v1641, %v1643
        %v1648 = vadd.s32 %v1644, 1
        %v1649 = vsel %vm1647, %v1648, %v1644
        %v1650 = vadd.s32 %v1645, %v1649
        %v1651 = vadd.s32 %v1650, 536870912
        %v1652 = vshrl.u32 %v1651, 30
        %v1653 = vshll.u32 %v1652, 30
        %v1654 = vsub.s32 %v1650, %v1653
        %vm1655 = vcmp.lt.s32.totalorder %v1654, 0
        %v1656 = vsub.s32 0, %v1654
        %v1657 = vsel %vm1655, %v1656, %v1654
        %v1658 = vclz %v1657
        %v1659 = vsub.s32 %v1658, 2
        %vm1660 = vcmp.gt.s32.totalorder 0, %v1659
        %v1661 = vsel %vm1660, 0, %v1659
        %v1662 = vsub.s32 32, %v1661
        %v1663 = vshll.u32 %v1654, %v1661
        %v1664 = vshrl.u32 %v1646, %v1662
        %v1665 = vor.u32 %v1663, %v1664
        %v1666 = vsub.s32 4294967266, %v1661
        %v1667 = vadd.s32 %v1666, 127
        %v1668 = vshll.u32 %v1667, 23
        %v1669 = vor.u32 4788187, %v1668
        %v1670 = vand.u32 2147483647, %v1669
        %v1672 = vcvt.s32.f32 %v1665
        %v1673 = vmul.f32 %v1672, %v1670
        %v1674 = vxor.u32 %v1673, 2147483648
        %v1675 = vsel %vm1592, %v1674, %v1673
        %v1676 = vsub.s32 4, %v1652
        %v1677 = vsel %vm1592, %v1676, %v1652
        %v1678 = vsel %vm1591, %v655, %v1675
        %v1679 = vsel %vm1591, 0, %v1677
        %v1680 = vcosq.f32.pop %v1678
        %v1681 = vsinq.f32.pop %v1678
        %vm1682 = vweird.f32 %v655
        %v1683 = vadd.s32 %v1679, 3
        %v1684 = vand.u32 %v1683, 3
        %vm1685 = vcmp.lt.s32.totalorder %v1684, 2
        %vm1686 = vcmp.eq.s32.totalorder %v1684, 0
        %v1687 = vxor.u32 %v1681, 2147483648
        %v1688 = vsel %vm1686, %v1680, %v1687
        %vm1689 = vcmp.eq.s32.totalorder %v1684, 2
        %v1690 = vxor.u32 %v1680, 2147483648
        %v1691 = vsel %vm1689, %v1690, %v1681
        %v1692 = vsel %vm1685, %v1688, %v1691
        %v1693 = vsel %vm1682, nan, %v1692
        %v1694 = vand.u32 2147483647, %v656
        %vm1695 = vcmp.le.f32.partialorder %v1694, 0.7853982
        %vm1696 = vcmp.lt.s32.totalorder %v656, 0
        %v1697 = vand.u32 %v656, 2139095040
        %v1698 = vshrl.u32 %v1697, 23
        %v1699 = vsub.s32 %v1698, 127
        %v1700 = vand.u32 2147483647, %v656
        %v1701 = vand.u32 %v1700, 8388607
        %v1702 = vor.u32 %v1701, 8388608
        %v1703 = vsub.s32 0, %v1702
        %v1704 = vadd.s32 %v1699, 1
        %vm1705 = vcmp.gt.s32.totalorder %v1704, 0
        %v1706 = vsel %vm1705, %v1704, 0
        %v1707 = vshrl.u32 %v1706, 5
        %v1708 = vand.u32 %v1706, 31
        %v1709 = vsub.s32 32, %v1708
        %v1710 = vshrl.u32 683565275, %v1709
        %v1711 = vshll.u32 683565275, %v1708
        %v1712 = vshrl.u32 2475754826, %v1709
        %v1713 = vor.u32 %v1711, %v1712
        %v1714 = vshll.u32 2475754826, %v1708
        %v1715 = vshrl.u32 2131351028, %v1709
        %v1716 = vor.u32 %v1714, %v1715
        %v1717 = vshll.u32 2131351028, %v1708
        %v1718 = vshrl.u32 2102212464, %v1709
        %v1719 = vor.u32 %v1717, %v1718
        %v1720 = vshll.u32 2102212464, %v1708
        %v1721 = vshrl.u32 920167782, %v1709
        %v1722 = vor.u32 %v1720, %v1721
        %v1723 = vshll.u32 920167782, %v1708
        %v1724 = vshrl.u32 1326507024, %v1709
        %v1725 = vor.u32 %v1723, %v1724
        %vm1726 = vcmp.lt.s32.totalorder %v1707, 1
        %vm1727 = vcmp.lt.s32.totalorder %v1707, 2
        %vm1728 = vcmp.lt.s32.totalorder %v1707, 3
        %vm1729 = vcmp.lt.s32.totalorder %v1707, 4
        %v1730 = vsel %vm1726, %v1710, %v1713
        %v1731 = vsel %vm1729, %v1719, 2102212464
        %v1732 = vsel %vm1728, %v1716, %v1731
        %v1733 = vsel %vm1727, %v1730, %v1732
        %v1734 = vsel %vm1726, %v1713, %v1716
        %v1735 = vsel %vm1729, %v1722, 920167782
        %v1736 = vsel %vm1728, %v1719, %v1735
        %v1737 = vsel %vm1727, %v1734, %v1736
        %v1738 = vsel %vm1726, %v1716, %v1719
        %v1739 = vsel %vm1729, %v1725, 1326507024
        %v1740 = vsel %vm1728, %v1722, %v1739
        %v1741 = vsel %vm1727, %v1738, %v1740
        %v1742 = vshll.u32 %v1702, 8
        %v1743 = vmul.u32.u64.compose %v1742, %v1741
        %v1744 = vextract.low.u32 %v1743
        %v1745 = vextract.high.u32 %v1743
        %v1746 = vmul.u32.u64.compose %v1742, %v1737
        %v1747 = vextract.low.u32 %v1746
        %v1748 = vextract.high.u32 %v1746
        %v1749 = vmul.u32 %v1742, %v1733
        %v1750 = vadd.s32 %v1745, %v1747
        %vm1751 = vc.u32 %v1745, %v1747
        %v1752 = vadd.s32 %v1748, 1
        %v1753 = vsel %vm1751, %v1752, %v1748
        %v1754 = vadd.s32 %v1749, %v1753
        %v1755 = vadd.s32 %v1754, 536870912
        %v1756 = vshrl.u32 %v1755, 30
        %v1757 = vshll.u32 %v1756, 30
        %v1758 = vsub.s32 %v1754, %v1757
        %vm1759 = vcmp.lt.s32.totalorder %v1758, 0
        %v1760 = vsub.s32 0, %v1758
        %v1761 = vsel %vm1759, %v1760, %v1758
        %v1762 = vclz %v1761
        %v1763 = vsub.s32 %v1762, 2
        %vm1764 = vcmp.gt.s32.totalorder 0, %v1763
        %v1765 = vsel %vm1764, 0, %v1763
        %v1766 = vsub.s32 32, %v1765
        %v1767 = vshll.u32 %v1758, %v1765
        %v1768 = vshrl.u32 %v1750, %v1766
        %v1769 = vor.u32 %v1767, %v1768
        %v1770 = vsub.s32 4294967266, %v1765
        %v1771 = vadd.s32 %v1770, 127
        %v1772 = vshll.u32 %v1771, 23
        %v1773 = vor.u32 4788187, %v1772
        %v1774 = vand.u32 2147483647, %v1773
        %v1776 = vcvt.s32.f32 %v1769
        %v1777 = vmul.f32 %v1776, %v1774
        %v1778 = vxor.u32 %v1777, 2147483648
        %v1779 = vsel %vm1696, %v1778, %v1777
        %v1780 = vsub.s32 4, %v1756
        %v1781 = vsel %vm1696, %v1780, %v1756
        %v1782 = vsel %vm1695, %v656, %v1779
        %v1783 = vsel %vm1695, 0, %v1781
        %v1784 = vcosq.f32.pop %v1782
        %v1785 = vsinq.f32.pop %v1782
        %vm1786 = vweird.f32 %v656
        %v1787 = vadd.s32 %v1783, 3
        %v1788 = vand.u32 %v1787, 3
        %vm1789 = vcmp.lt.s32.totalorder %v1788, 2
        %vm1790 = vcmp.eq.s32.totalorder %v1788, 0
        %v1791 = vxor.u32 %v1785, 2147483648
        %v1792 = vsel %vm1790, %v1784, %v1791
        %vm1793 = vcmp.eq.s32.totalorder %v1788, 2
        %v1794 = vxor.u32 %v1784, 2147483648
        %v1795 = vsel %vm1793, %v1794, %v1785
        %v1796 = vsel %vm1789, %v1792, %v1795
        %v1797 = vsel %vm1786, nan, %v1796
        %v1798 = vand.u32 2147483647, %v657
        %vm1799 = vcmp.le.f32.partialorder %v1798, 0.7853982
        %vm1800 = vcmp.lt.s32.totalorder %v657, 0
        %v1801 = vand.u32 %v657, 2139095040
        %v1802 = vshrl.u32 %v1801, 23
        %v1803 = vsub.s32 %v1802, 127
        %v1804 = vand.u32 2147483647, %v657
        %v1805 = vand.u32 %v1804, 8388607
        %v1806 = vor.u32 %v1805, 8388608
        %v1807 = vsub.s32 0, %v1806
        %v1808 = vadd.s32 %v1803, 1
        %vm1809 = vcmp.gt.s32.totalorder %v1808, 0
        %v1810 = vsel %vm1809, %v1808, 0
        %v1811 = vshrl.u32 %v1810, 5
        %v1812 = vand.u32 %v1810, 31
        %v1813 = vsub.s32 32, %v1812
        %v1814 = vshrl.u32 683565275, %v1813
        %v1815 = vshll.u32 683565275, %v1812
        %v1816 = vshrl.u32 2475754826, %v1813
        %v1817 = vor.u32 %v1815, %v1816
        %v1818 = vshll.u32 2475754826, %v1812
        %v1819 = vshrl.u32 2131351028, %v1813
        %v1820 = vor.u32 %v1818, %v1819
        %v1821 = vshll.u32 2131351028, %v1812
        %v1822 = vshrl.u32 2102212464, %v1813
        %v1823 = vor.u32 %v1821, %v1822
        %v1824 = vshll.u32 2102212464, %v1812
        %v1825 = vshrl.u32 920167782, %v1813
        %v1826 = vor.u32 %v1824, %v1825
        %v1827 = vshll.u32 920167782, %v1812
        %v1828 = vshrl.u32 1326507024, %v1813
        %v1829 = vor.u32 %v1827, %v1828
        %vm1830 = vcmp.lt.s32.totalorder %v1811, 1
        %vm1831 = vcmp.lt.s32.totalorder %v1811, 2
        %vm1832 = vcmp.lt.s32.totalorder %v1811, 3
        %vm1833 = vcmp.lt.s32.totalorder %v1811, 4
        %v1834 = vsel %vm1830, %v1814, %v1817
        %v1835 = vsel %vm1833, %v1823, 2102212464
        %v1836 = vsel %vm1832, %v1820, %v1835
        %v1837 = vsel %vm1831, %v1834, %v1836
        %v1838 = vsel %vm1830, %v1817, %v1820
        %v1839 = vsel %vm1833, %v1826, 920167782
        %v1840 = vsel %vm1832, %v1823, %v1839
        %v1841 = vsel %vm1831, %v1838, %v1840
        %v1842 = vsel %vm1830, %v1820, %v1823
        %v1843 = vsel %vm1833, %v1829, 1326507024
        %v1844 = vsel %vm1832, %v1826, %v1843
        %v1845 = vsel %vm1831, %v1842, %v1844
        %v1846 = vshll.u32 %v1806, 8
        %v1847 = vmul.u32.u64.compose %v1846, %v1845
        %v1848 = vextract.low.u32 %v1847
        %v1849 = vextract.high.u32 %v1847
        %v1850 = vmul.u32.u64.compose %v1846, %v1841
        %v1851 = vextract.low.u32 %v1850
        %v1852 = vextract.high.u32 %v1850
        %v1853 = vmul.u32 %v1846, %v1837
        %v1854 = vadd.s32 %v1849, %v1851
        %vm1855 = vc.u32 %v1849, %v1851
        %v1856 = vadd.s32 %v1852, 1
        %v1857 = vsel %vm1855, %v1856, %v1852
        %v1858 = vadd.s32 %v1853, %v1857
        %v1859 = vadd.s32 %v1858, 536870912
        %v1860 = vshrl.u32 %v1859, 30
        %v1861 = vshll.u32 %v1860, 30
        %v1862 = vsub.s32 %v1858, %v1861
        %vm1863 = vcmp.lt.s32.totalorder %v1862, 0
        %v1864 = vsub.s32 0, %v1862
        %v1865 = vsel %vm1863, %v1864, %v1862
        %v1866 = vclz %v1865
        %v1867 = vsub.s32 %v1866, 2
        %vm1868 = vcmp.gt.s32.totalorder 0, %v1867
        %v1869 = vsel %vm1868, 0, %v1867
        %v1870 = vsub.s32 32, %v1869
        %v1871 = vshll.u32 %v1862, %v1869
        %v1872 = vshrl.u32 %v1854, %v1870
        %v1873 = vor.u32 %v1871, %v1872
        %v1874 = vsub.s32 4294967266, %v1869
        %v1875 = vadd.s32 %v1874, 127
        %v1876 = vshll.u32 %v1875, 23
        %v1877 = vor.u32 4788187, %v1876
        %v1878 = vand.u32 2147483647, %v1877
        %v1880 = vcvt.s32.f32 %v1873
        %v1881 = vmul.f32 %v1880, %v1878
        %v1882 = vxor.u32 %v1881, 2147483648
        %v1883 = vsel %vm1800, %v1882, %v1881
        %v1884 = vsub.s32 4, %v1860
        %v1885 = vsel %vm1800, %v1884, %v1860
        %v1886 = vsel %vm1799, %v657, %v1883
        %v1887 = vsel %vm1799, 0, %v1885
        %v1888 = vcosq.f32.pop %v1886
        %v1889 = vsinq.f32.pop %v1886
        %vm1890 = vweird.f32 %v657
        %v1891 = vadd.s32 %v1887, 3
        %v1892 = vand.u32 %v1891, 3
        %vm1893 = vcmp.lt.s32.totalorder %v1892, 2
        %vm1894 = vcmp.eq.s32.totalorder %v1892, 0
        %v1895 = vxor.u32 %v1889, 2147483648
        %v1896 = vsel %vm1894, %v1888, %v1895
        %vm1897 = vcmp.eq.s32.totalorder %v1892, 2
        %v1898 = vxor.u32 %v1888, 2147483648
        %v1899 = vsel %vm1897, %v1898, %v1889
        %v1900 = vsel %vm1893, %v1896, %v1899
        %v1901 = vsel %vm1890, nan, %v1900
        %v1902 = vand.u32 2147483647, %v658
        %vm1903 = vcmp.le.f32.partialorder %v1902, 0.7853982
        %vm1904 = vcmp.lt.s32.totalorder %v658, 0
        %v1905 = vand.u32 %v658, 2139095040
        %v1906 = vshrl.u32 %v1905, 23
        %v1907 = vsub.s32 %v1906, 127
        %v1908 = vand.u32 2147483647, %v658
        %v1909 = vand.u32 %v1908, 8388607
        %v1910 = vor.u32 %v1909, 8388608
        %v1911 = vsub.s32 0, %v1910
        %v1912 = vadd.s32 %v1907, 1
        %vm1913 = vcmp.gt.s32.totalorder %v1912, 0
        %v1914 = vsel %vm1913, %v1912, 0
        %v1915 = vshrl.u32 %v1914, 5
        %v1916 = vand.u32 %v1914, 31
        %v1917 = vsub.s32 32, %v1916
        %v1918 = vshrl.u32 683565275, %v1917
        %v1919 = vshll.u32 683565275, %v1916
        %v1920 = vshrl.u32 2475754826, %v1917
        %v1921 = vor.u32 %v1919, %v1920
        %v1922 = vshll.u32 2475754826, %v1916
        %v1923 = vshrl.u32 2131351028, %v1917
        %v1924 = vor.u32 %v1922, %v1923
        %v1925 = vshll.u32 2131351028, %v1916
        %v1926 = vshrl.u32 2102212464, %v1917
        %v1927 = vor.u32 %v1925, %v1926
        %v1928 = vshll.u32 2102212464, %v1916
        %v1929 = vshrl.u32 920167782, %v1917
        %v1930 = vor.u32 %v1928, %v1929
        %v1931 = vshll.u32 920167782, %v1916
        %v1932 = vshrl.u32 1326507024, %v1917
        %v1933 = vor.u32 %v1931, %v1932
        %vm1934 = vcmp.lt.s32.totalorder %v1915, 1
        %vm1935 = vcmp.lt.s32.totalorder %v1915, 2
        %vm1936 = vcmp.lt.s32.totalorder %v1915, 3
        %vm1937 = vcmp.lt.s32.totalorder %v1915, 4
        %v1938 = vsel %vm1934, %v1918, %v1921
        %v1939 = vsel %vm1937, %v1927, 2102212464
        %v1940 = vsel %vm1936, %v1924, %v1939
        %v1941 = vsel %vm1935, %v1938, %v1940
        %v1942 = vsel %vm1934, %v1921, %v1924
        %v1943 = vsel %vm1937, %v1930, 920167782
        %v1944 = vsel %vm1936, %v1927, %v1943
        %v1945 = vsel %vm1935, %v1942, %v1944
        %v1946 = vsel %vm1934, %v1924, %v1927
        %v1947 = vsel %vm1937, %v1933, 1326507024
        %v1948 = vsel %vm1936, %v1930, %v1947
        %v1949 = vsel %vm1935, %v1946, %v1948
        %v1950 = vshll.u32 %v1910, 8
        %v1951 = vmul.u32.u64.compose %v1950, %v1949
        %v1952 = vextract.low.u32 %v1951
        %v1953 = vextract.high.u32 %v1951
        %v1954 = vmul.u32.u64.compose %v1950, %v1945
        %v1955 = vextract.low.u32 %v1954
        %v1956 = vextract.high.u32 %v1954
        %v1957 = vmul.u32 %v1950, %v1941
        %v1958 = vadd.s32 %v1953, %v1955
        %vm1959 = vc.u32 %v1953, %v1955
        %v1960 = vadd.s32 %v1956, 1
        %v1961 = vsel %vm1959, %v1960, %v1956
        %v1962 = vadd.s32 %v1957, %v1961
        %v1963 = vadd.s32 %v1962, 536870912
        %v1964 = vshrl.u32 %v1963, 30
        %v1965 = vshll.u32 %v1964, 30
        %v1966 = vsub.s32 %v1962, %v1965
        %vm1967 = vcmp.lt.s32.totalorder %v1966, 0
        %v1968 = vsub.s32 0, %v1966
        %v1969 = vsel %vm1967, %v1968, %v1966
        %v1970 = vclz %v1969
        %v1971 = vsub.s32 %v1970, 2
        %vm1972 = vcmp.gt.s32.totalorder 0, %v1971
        %v1973 = vsel %vm1972, 0, %v1971
        %v1974 = vsub.s32 32, %v1973
        %v1975 = vshll.u32 %v1966, %v1973
        %v1976 = vshrl.u32 %v1958, %v1974
        %v1977 = vor.u32 %v1975, %v1976
        %v1978 = vsub.s32 4294967266, %v1973
        %v1979 = vadd.s32 %v1978, 127
        %v1980 = vshll.u32 %v1979, 23
        %v1981 = vor.u32 4788187, %v1980
        %v1982 = vand.u32 2147483647, %v1981
        %v1984 = vcvt.s32.f32 %v1977
        %v1985 = vmul.f32 %v1984, %v1982
        %v1986 = vxor.u32 %v1985, 2147483648
        %v1987 = vsel %vm1904, %v1986, %v1985
        %v1988 = vsub.s32 4, %v1964
        %v1989 = vsel %vm1904, %v1988, %v1964
        %v1990 = vsel %vm1903, %v658, %v1987
        %v1991 = vsel %vm1903, 0, %v1989
        %v1992 = vcosq.f32.pop %v1990
        %v1993 = vsinq.f32.pop %v1990
        %vm1994 = vweird.f32 %v658
        %v1995 = vadd.s32 %v1991, 3
        %v1996 = vand.u32 %v1995, 3
        %vm1997 = vcmp.lt.s32.totalorder %v1996, 2
        %vm1998 = vcmp.eq.s32.totalorder %v1996, 0
        %v1999 = vxor.u32 %v1993, 2147483648
        %v2000 = vsel %vm1998, %v1992, %v1999
        %vm2001 = vcmp.eq.s32.totalorder %v1996, 2
        %v2002 = vxor.u32 %v1992, 2147483648
        %v2003 = vsel %vm2001, %v2002, %v1993
        %v2004 = vsel %vm1997, %v2000, %v2003
        %v2005 = vsel %vm1994, nan, %v2004
        %v2006 = vand.u32 2147483647, %v659
        %vm2007 = vcmp.le.f32.partialorder %v2006, 0.7853982
        %vm2008 = vcmp.lt.s32.totalorder %v659, 0
        %v2009 = vand.u32 %v659, 2139095040
        %v2010 = vshrl.u32 %v2009, 23
        %v2011 = vsub.s32 %v2010, 127
        %v2012 = vand.u32 2147483647, %v659
        %v2013 = vand.u32 %v2012, 8388607
        %v2014 = vor.u32 %v2013, 8388608
        %v2015 = vsub.s32 0, %v2014
        %v2016 = vadd.s32 %v2011, 1
        %vm2017 = vcmp.gt.s32.totalorder %v2016, 0
        %v2018 = vsel %vm2017, %v2016, 0
        %v2019 = vshrl.u32 %v2018, 5
        %v2020 = vand.u32 %v2018, 31
        %v2021 = vsub.s32 32, %v2020
        %v2022 = vshrl.u32 683565275, %v2021
        %v2023 = vshll.u32 683565275, %v2020
        %v2024 = vshrl.u32 2475754826, %v2021
        %v2025 = vor.u32 %v2023, %v2024
        %v2026 = vshll.u32 2475754826, %v2020
        %v2027 = vshrl.u32 2131351028, %v2021
        %v2028 = vor.u32 %v2026, %v2027
        %v2029 = vshll.u32 2131351028, %v2020
        %v2030 = vshrl.u32 2102212464, %v2021
        %v2031 = vor.u32 %v2029, %v2030
        %v2032 = vshll.u32 2102212464, %v2020
        %v2033 = vshrl.u32 920167782, %v2021
        %v2034 = vor.u32 %v2032, %v2033
        %v2035 = vshll.u32 920167782, %v2020
        %v2036 = vshrl.u32 1326507024, %v2021
        %v2037 = vor.u32 %v2035, %v2036
        %vm2038 = vcmp.lt.s32.totalorder %v2019, 1
        %vm2039 = vcmp.lt.s32.totalorder %v2019, 2
        %vm2040 = vcmp.lt.s32.totalorder %v2019, 3
        %vm2041 = vcmp.lt.s32.totalorder %v2019, 4
        %v2042 = vsel %vm2038, %v2022, %v2025
        %v2043 = vsel %vm2041, %v2031, 2102212464
        %v2044 = vsel %vm2040, %v2028, %v2043
        %v2045 = vsel %vm2039, %v2042, %v2044
        %v2046 = vsel %vm2038, %v2025, %v2028
        %v2047 = vsel %vm2041, %v2034, 920167782
        %v2048 = vsel %vm2040, %v2031, %v2047
        %v2049 = vsel %vm2039, %v2046, %v2048
        %v2050 = vsel %vm2038, %v2028, %v2031
        %v2051 = vsel %vm2041, %v2037, 1326507024
        %v2052 = vsel %vm2040, %v2034, %v2051
        %v2053 = vsel %vm2039, %v2050, %v2052
        %v2054 = vshll.u32 %v2014, 8
        %v2055 = vmul.u32.u64.compose %v2054, %v2053
        %v2056 = vextract.low.u32 %v2055
        %v2057 = vextract.high.u32 %v2055
        %v2058 = vmul.u32.u64.compose %v2054, %v2049
        %v2059 = vextract.low.u32 %v2058
        %v2060 = vextract.high.u32 %v2058
        %v2061 = vmul.u32 %v2054, %v2045
        %v2062 = vadd.s32 %v2057, %v2059
        %vm2063 = vc.u32 %v2057, %v2059
        %v2064 = vadd.s32 %v2060, 1
        %v2065 = vsel %vm2063, %v2064, %v2060
        %v2066 = vadd.s32 %v2061, %v2065
        %v2067 = vadd.s32 %v2066, 536870912
        %v2068 = vshrl.u32 %v2067, 30
        %v2069 = vshll.u32 %v2068, 30
        %v2070 = vsub.s32 %v2066, %v2069
        %vm2071 = vcmp.lt.s32.totalorder %v2070, 0
        %v2072 = vsub.s32 0, %v2070
        %v2073 = vsel %vm2071, %v2072, %v2070
        %v2074 = vclz %v2073
        %v2075 = vsub.s32 %v2074, 2
        %vm2076 = vcmp.gt.s32.totalorder 0, %v2075
        %v2077 = vsel %vm2076, 0, %v2075
        %v2078 = vsub.s32 32, %v2077
        %v2079 = vshll.u32 %v2070, %v2077
        %v2080 = vshrl.u32 %v2062, %v2078
        %v2081 = vor.u32 %v2079, %v2080
        %v2082 = vsub.s32 4294967266, %v2077
        %v2083 = vadd.s32 %v2082, 127
        %v2084 = vshll.u32 %v2083, 23
        %v2085 = vor.u32 4788187, %v2084
        %v2086 = vand.u32 2147483647, %v2085
        %v2088 = vcvt.s32.f32 %v2081
        %v2089 = vmul.f32 %v2088, %v2086
        %v2090 = vxor.u32 %v2089, 2147483648
        %v2091 = vsel %vm2008, %v2090, %v2089
        %v2092 = vsub.s32 4, %v2068
        %v2093 = vsel %vm2008, %v2092, %v2068
        %v2094 = vsel %vm2007, %v659, %v2091
        %v2095 = vsel %vm2007, 0, %v2093
        %v2096 = vcosq.f32.pop %v2094
        %v2097 = vsinq.f32.pop %v2094
        %vm2098 = vweird.f32 %v659
        %v2099 = vadd.s32 %v2095, 3
        %v2100 = vand.u32 %v2099, 3
        %vm2101 = vcmp.lt.s32.totalorder %v2100, 2
        %vm2102 = vcmp.eq.s32.totalorder %v2100, 0
        %v2103 = vxor.u32 %v2097, 2147483648
        %v2104 = vsel %vm2102, %v2096, %v2103
        %vm2105 = vcmp.eq.s32.totalorder %v2100, 2
        %v2106 = vxor.u32 %v2096, 2147483648
        %v2107 = vsel %vm2105, %v2106, %v2097
        %v2108 = vsel %vm2101, %v2104, %v2107
        %v2109 = vsel %vm2098, nan, %v2108
        %v2110 = vand.u32 2147483647, %v660
        %vm2111 = vcmp.le.f32.partialorder %v2110, 0.7853982
        %vm2112 = vcmp.lt.s32.totalorder %v660, 0
        %v2113 = vand.u32 %v660, 2139095040
        %v2114 = vshrl.u32 %v2113, 23
        %v2115 = vsub.s32 %v2114, 127
        %v2116 = vand.u32 2147483647, %v660
        %v2117 = vand.u32 %v2116, 8388607
        %v2118 = vor.u32 %v2117, 8388608
        %v2119 = vsub.s32 0, %v2118
        %v2120 = vadd.s32 %v2115, 1
        %vm2121 = vcmp.gt.s32.totalorder %v2120, 0
        %v2122 = vsel %vm2121, %v2120, 0
        %v2123 = vshrl.u32 %v2122, 5
        %v2124 = vand.u32 %v2122, 31
        %v2125 = vsub.s32 32, %v2124
        %v2126 = vshrl.u32 683565275, %v2125
        %v2127 = vshll.u32 683565275, %v2124
        %v2128 = vshrl.u32 2475754826, %v2125
        %v2129 = vor.u32 %v2127, %v2128
        %v2130 = vshll.u32 2475754826, %v2124
        %v2131 = vshrl.u32 2131351028, %v2125
        %v2132 = vor.u32 %v2130, %v2131
        %v2133 = vshll.u32 2131351028, %v2124
        %v2134 = vshrl.u32 2102212464, %v2125
        %v2135 = vor.u32 %v2133, %v2134
        %v2136 = vshll.u32 2102212464, %v2124
        %v2137 = vshrl.u32 920167782, %v2125
        %v2138 = vor.u32 %v2136, %v2137
        %v2139 = vshll.u32 920167782, %v2124
        %v2140 = vshrl.u32 1326507024, %v2125
        %v2141 = vor.u32 %v2139, %v2140
        %vm2142 = vcmp.lt.s32.totalorder %v2123, 1
        %vm2143 = vcmp.lt.s32.totalorder %v2123, 2
        %vm2144 = vcmp.lt.s32.totalorder %v2123, 3
        %vm2145 = vcmp.lt.s32.totalorder %v2123, 4
        %v2146 = vsel %vm2142, %v2126, %v2129
        %v2147 = vsel %vm2145, %v2135, 2102212464
        %v2148 = vsel %vm2144, %v2132, %v2147
        %v2149 = vsel %vm2143, %v2146, %v2148
        %v2150 = vsel %vm2142, %v2129, %v2132
        %v2151 = vsel %vm2145, %v2138, 920167782
        %v2152 = vsel %vm2144, %v2135, %v2151
        %v2153 = vsel %vm2143, %v2150, %v2152
        %v2154 = vsel %vm2142, %v2132, %v2135
        %v2155 = vsel %vm2145, %v2141, 1326507024
        %v2156 = vsel %vm2144, %v2138, %v2155
        %v2157 = vsel %vm2143, %v2154, %v2156
        %v2158 = vshll.u32 %v2118, 8
        %v2159 = vmul.u32.u64.compose %v2158, %v2157
        %v2160 = vextract.low.u32 %v2159
        %v2161 = vextract.high.u32 %v2159
        %v2162 = vmul.u32.u64.compose %v2158, %v2153
        %v2163 = vextract.low.u32 %v2162
        %v2164 = vextract.high.u32 %v2162
        %v2165 = vmul.u32 %v2158, %v2149
        %v2166 = vadd.s32 %v2161, %v2163
        %vm2167 = vc.u32 %v2161, %v2163
        %v2168 = vadd.s32 %v2164, 1
        %v2169 = vsel %vm2167, %v2168, %v2164
        %v2170 = vadd.s32 %v2165, %v2169
        %v2171 = vadd.s32 %v2170, 536870912
        %v2172 = vshrl.u32 %v2171, 30
        %v2173 = vshll.u32 %v2172, 30
        %v2174 = vsub.s32 %v2170, %v2173
        %vm2175 = vcmp.lt.s32.totalorder %v2174, 0
        %v2176 = vsub.s32 0, %v2174
        %v2177 = vsel %vm2175, %v2176, %v2174
        %v2178 = vclz %v2177
        %v2179 = vsub.s32 %v2178, 2
        %vm2180 = vcmp.gt.s32.totalorder 0, %v2179
        %v2181 = vsel %vm2180, 0, %v2179
        %v2182 = vsub.s32 32, %v2181
        %v2183 = vshll.u32 %v2174, %v2181
        %v2184 = vshrl.u32 %v2166, %v2182
        %v2185 = vor.u32 %v2183, %v2184
        %v2186 = vsub.s32 4294967266, %v2181
        %v2187 = vadd.s32 %v2186, 127
        %v2188 = vshll.u32 %v2187, 23
        %v2189 = vor.u32 4788187, %v2188
        %v2190 = vand.u32 2147483647, %v2189
        %v2192 = vcvt.s32.f32 %v2185
        %v2193 = vmul.f32 %v2192, %v2190
        %v2194 = vxor.u32 %v2193, 2147483648
        %v2195 = vsel %vm2112, %v2194, %v2193
        %v2196 = vsub.s32 4, %v2172
        %v2197 = vsel %vm2112, %v2196, %v2172
        %v2198 = vsel %vm2111, %v660, %v2195
        %v2199 = vsel %vm2111, 0, %v2197
        %v2200 = vcosq.f32.pop %v2198
        %v2201 = vsinq.f32.pop %v2198
        %vm2202 = vweird.f32 %v660
        %v2203 = vadd.s32 %v2199, 3
        %v2204 = vand.u32 %v2203, 3
        %vm2205 = vcmp.lt.s32.totalorder %v2204, 2
        %vm2206 = vcmp.eq.s32.totalorder %v2204, 0
        %v2207 = vxor.u32 %v2201, 2147483648
        %v2208 = vsel %vm2206, %v2200, %v2207
        %vm2209 = vcmp.eq.s32.totalorder %v2204, 2
        %v2210 = vxor.u32 %v2200, 2147483648
        %v2211 = vsel %vm2209, %v2210, %v2201
        %v2212 = vsel %vm2205, %v2208, %v2211
        %v2213 = vsel %vm2202, nan, %v2212
        %v2214 = vand.u32 2147483647, %v661
        %vm2215 = vcmp.le.f32.partialorder %v2214, 0.7853982
        %vm2216 = vcmp.lt.s32.totalorder %v661, 0
        %v2217 = vand.u32 %v661, 2139095040
        %v2218 = vshrl.u32 %v2217, 23
        %v2219 = vsub.s32 %v2218, 127
        %v2220 = vand.u32 2147483647, %v661
        %v2221 = vand.u32 %v2220, 8388607
        %v2222 = vor.u32 %v2221, 8388608
        %v2223 = vsub.s32 0, %v2222
        %v2224 = vadd.s32 %v2219, 1
        %vm2225 = vcmp.gt.s32.totalorder %v2224, 0
        %v2226 = vsel %vm2225, %v2224, 0
        %v2227 = vshrl.u32 %v2226, 5
        %v2228 = vand.u32 %v2226, 31
        %v2229 = vsub.s32 32, %v2228
        %v2230 = vshrl.u32 683565275, %v2229
        %v2231 = vshll.u32 683565275, %v2228
        %v2232 = vshrl.u32 2475754826, %v2229
        %v2233 = vor.u32 %v2231, %v2232
        %v2234 = vshll.u32 2475754826, %v2228
        %v2235 = vshrl.u32 2131351028, %v2229
        %v2236 = vor.u32 %v2234, %v2235
        %v2237 = vshll.u32 2131351028, %v2228
        %v2238 = vshrl.u32 2102212464, %v2229
        %v2239 = vor.u32 %v2237, %v2238
        %v2240 = vshll.u32 2102212464, %v2228
        %v2241 = vshrl.u32 920167782, %v2229
        %v2242 = vor.u32 %v2240, %v2241
        %v2243 = vshll.u32 920167782, %v2228
        %v2244 = vshrl.u32 1326507024, %v2229
        %v2245 = vor.u32 %v2243, %v2244
        %vm2246 = vcmp.lt.s32.totalorder %v2227, 1
        %vm2247 = vcmp.lt.s32.totalorder %v2227, 2
        %vm2248 = vcmp.lt.s32.totalorder %v2227, 3
        %vm2249 = vcmp.lt.s32.totalorder %v2227, 4
        %v2250 = vsel %vm2246, %v2230, %v2233
        %v2251 = vsel %vm2249, %v2239, 2102212464
        %v2252 = vsel %vm2248, %v2236, %v2251
        %v2253 = vsel %vm2247, %v2250, %v2252
        %v2254 = vsel %vm2246, %v2233, %v2236
        %v2255 = vsel %vm2249, %v2242, 920167782
        %v2256 = vsel %vm2248, %v2239, %v2255
        %v2257 = vsel %vm2247, %v2254, %v2256
        %v2258 = vsel %vm2246, %v2236, %v2239
        %v2259 = vsel %vm2249, %v2245, 1326507024
        %v2260 = vsel %vm2248, %v2242, %v2259
        %v2261 = vsel %vm2247, %v2258, %v2260
        %v2262 = vshll.u32 %v2222, 8
        %v2263 = vmul.u32.u64.compose %v2262, %v2261
        %v2264 = vextract.low.u32 %v2263
        %v2265 = vextract.high.u32 %v2263
        %v2266 = vmul.u32.u64.compose %v2262, %v2257
        %v2267 = vextract.low.u32 %v2266
        %v2268 = vextract.high.u32 %v2266
        %v2269 = vmul.u32 %v2262, %v2253
        %v2270 = vadd.s32 %v2265, %v2267
        %vm2271 = vc.u32 %v2265, %v2267
        %v2272 = vadd.s32 %v2268, 1
        %v2273 = vsel %vm2271, %v2272, %v2268
        %v2274 = vadd.s32 %v2269, %v2273
        %v2275 = vadd.s32 %v2274, 536870912
        %v2276 = vshrl.u32 %v2275, 30
        %v2277 = vshll.u32 %v2276, 30
        %v2278 = vsub.s32 %v2274, %v2277
        %vm2279 = vcmp.lt.s32.totalorder %v2278, 0
        %v2280 = vsub.s32 0, %v2278
        %v2281 = vsel %vm2279, %v2280, %v2278
        %v2282 = vclz %v2281
        %v2283 = vsub.s32 %v2282, 2
        %vm2284 = vcmp.gt.s32.totalorder 0, %v2283
        %v2285 = vsel %vm2284, 0, %v2283
        %v2286 = vsub.s32 32, %v2285
        %v2287 = vshll.u32 %v2278, %v2285
        %v2288 = vshrl.u32 %v2270, %v2286
        %v2289 = vor.u32 %v2287, %v2288
        %v2290 = vsub.s32 4294967266, %v2285
        %v2291 = vadd.s32 %v2290, 127
        %v2292 = vshll.u32 %v2291, 23
        %v2293 = vor.u32 4788187, %v2292
        %v2294 = vand.u32 2147483647, %v2293
        %v2296 = vcvt.s32.f32 %v2289
        %v2297 = vmul.f32 %v2296, %v2294
        %v2298 = vxor.u32 %v2297, 2147483648
        %v2299 = vsel %vm2216, %v2298, %v2297
        %v2300 = vsub.s32 4, %v2276
        %v2301 = vsel %vm2216, %v2300, %v2276
        %v2302 = vsel %vm2215, %v661, %v2299
        %v2303 = vsel %vm2215, 0, %v2301
        %v2304 = vcosq.f32.pop %v2302
        %v2305 = vsinq.f32.pop %v2302
        %vm2306 = vweird.f32 %v661
        %v2307 = vadd.s32 %v2303, 3
        %v2308 = vand.u32 %v2307, 3
        %vm2309 = vcmp.lt.s32.totalorder %v2308, 2
        %vm2310 = vcmp.eq.s32.totalorder %v2308, 0
        %v2311 = vxor.u32 %v2305, 2147483648
        %v2312 = vsel %vm2310, %v2304, %v2311
        %vm2313 = vcmp.eq.s32.totalorder %v2308, 2
        %v2314 = vxor.u32 %v2304, 2147483648
        %v2315 = vsel %vm2313, %v2314, %v2305
        %v2316 = vsel %vm2309, %v2312, %v2315
        %v2317 = vsel %vm2306, nan, %v2316
        %v2318 = vcombine.high %v485, %v485
        %v2319 = vcombine.high %v486, %v486
        %v2320 = vrot.slane %v485, 1
        %v2321 = vrot.slane %v2318, 1
        %v2322 = vrot.slane %v486, 1
        %v2323 = vrot.slane %v2319, 1
        %v2324 = vld [vmem:[%s4] sm:$0xff]
        %v2325 = vld [vmem:[%s4 + $0x8] sm:$0xff]
        %v2326 = vld [vmem:[%s4 + $0x10] sm:$0xff]
        %v2327 = vld [vmem:[%s4 + $0x18] sm:$0xff]
        %v2328 = vld [vmem:[%s5] sm:$0xff]
        %v2329 = vld [vmem:[%s5 + $0x8] sm:$0xff]
        %v2330 = vld [vmem:[%s5 + $0x10] sm:$0xff]
        %v2331 = vld [vmem:[%s5 + $0x18] sm:$0xff]
        %2333 = vset.pattern.permute.xlu0 0
        %2334 = vperm.xlu0 %2333, %v2328
        %v2335 = vpop.permute.xlu0 %2334
        %2338 = vset.pattern.permute.xlu0 0
        %2339 = vperm.xlu0 %2338, %v2329
        %v2340 = vpop.permute.xlu0 %2339
        %2343 = vset.pattern.permute.xlu0 0
        %2344 = vperm.xlu0 %2343, %v2330
        %v2345 = vpop.permute.xlu0 %2344
        %2348 = vset.pattern.permute.xlu0 0
        %2349 = vperm.xlu0 %2348, %v2331
        %v2350 = vpop.permute.xlu0 %2349
        %vm2352 = vcmask 277504
        %v2354 = vsel %vm2352, %v2324, 0
        %v2357 = vsel %vm2352, %v2325, 0
        %v2360 = vsel %vm2352, %v2326, 0
        %v2363 = vsel %vm2352, %v2327, 0
        %vm2365 = vcmask 1041408
        %v2366 = vsel %vm2365, %v2320, 0
        %v2368 = vsel %vm2365, %v2321, 0
        %v2370 = vsel %vm2365, %v2322, 0
        %v2372 = vsel %vm2365, %v2323, 0
        %2374 = vmatprep.subr.mxu0 %v867
        %2375 = vmatpush1.msra.mxu0 %v764
        %2376 = vmatprep.subr.mxu0 %v1279
        %2377 = vmatpush1.msra.mxu0 %v1176
        %2378 = vmatprep.subr.mxu0 %v1693
        %2379 = vmatpush1.msra.mxu0 %v1589
        %2380 = vmatprep.subr.mxu0 %v2109
        %2381 = vmatpush1.msra.mxu0 %v2005
        %2382 = vmatprep.subr.mxu0 %v2368
        %2383 = vmatpush1.msra.mxu0 %v2366
        %2384 = vmatprep.subr.mxu0 0.0
        %2385 = vmatpush1.msra.mxu0 0.0
        %2386 = vmatprep.subr.mxu0 0.0
        %2387 = vmatpush1.msra.mxu0 0.0
        %2388 = vmatprep.subr.mxu0 0.0
        %2389 = vmatpush1.msra.mxu0 0.0
        %2390 = vmatprep.subr.mxu0 0.0
        %2391 = vmatpush1.msra.mxu0 0.0
        %2392 = vmatprep.subr.mxu0 0.0
        %2393 = vmatpush1.msra.mxu0 0.0
        %2394 = vmatprep.subr.mxu0 0.0
        %2395 = vmatpush1.msra.mxu0 0.0
        %2396 = vmatprep.subr.mxu0 0.0
        %2397 = vmatpush1.msra.mxu0 0.0
        %2398 = vmatprep.subr.mxu0 0.0
        %2399 = vmatpush1.msra.mxu0 0.0
        %2400 = vmatprep.subr.mxu0 0.0
        %2401 = vmatpush1.msra.mxu0 0.0
        %2402 = vmatprep.subr.mxu0 0.0
        %2403 = vmatpush1.msra.mxu0 0.0
        %2404 = vmatprep.subr.mxu0 0.0
        %2405 = vmatpush1.msra.mxu0 0.0
        %2406 = vmatprep.subr.mxu0 0.0
        %2407 = vmatpush1.msra.mxu0 0.0
        %2408 = vmatprep.subr.mxu0 0.0
        %2409 = vmatpush1.msra.mxu0 0.0
        %2410 = vmatprep.subr.mxu0 0.0
        %2411 = vmatpush1.msra.mxu0 0.0
        %2412 = vmatprep.subr.mxu0 0.0
        %2413 = vmatpush1.msra.mxu0 0.0
        %2414 = vmatprep.subr.mxu0 0.0
        %2415 = vmatpush1.msra.mxu0 0.0
        %2416 = vmatprep.subr.mxu0 0.0
        %2417 = vmatpush1.msra.mxu0 0.0
        %2418 = vmatprep.subr.mxu0 0.0
        %2419 = vmatpush1.msra.mxu0 0.0
        %2420 = vmatprep.subr.mxu0 0.0
        %2421 = vmatpush1.msra.mxu0 0.0
        %2422 = vmatprep.subr.mxu0 0.0
        %2423 = vmatpush1.msra.mxu0 0.0
        %2424 = vmatprep.subr.mxu0 0.0
        %2425 = vmatpush1.msra.mxu0 0.0
        %2426 = vmatprep.subr.mxu0 0.0
        %2427 = vmatpush1.msra.mxu0 0.0
        %2428 = vmatprep.subr.mxu0 0.0
        %2429 = vmatpush1.msra.mxu0 0.0
        %2430 = vmatprep.subr.mxu0 0.0
        %2431 = vmatpush1.msra.mxu0 0.0
        %2432 = vmatprep.subr.mxu0 0.0
        %2433 = vmatpush1.msra.mxu0 0.0
        %2434 = vmatprep.subr.mxu0 0.0
        %2435 = vmatpush1.msra.mxu0 0.0
        %2436 = vmatprep.subr.mxu0 0.0
        %2437 = vmatpush1.msra.mxu0 0.0
        %2438 = vmatprep.mubr.f32.mxu0 0.0
        %2439 = vmatmul.mubr.f32.gmra.mrb[0].mxu0 %v2354
        %v2440 = vpop.f32.mrb[0].mxu0
        %v2441 = vadd.f32 %v2335, %v2440
        %v2442 = vpop.f32.mrb[0].mxu0
        %v2443 = vadd.f32 %v2335, %v2442
        %2444 = vmatprep.mubr.f32.mxu0 0.0
        %2445 = vmatmul.mubr.f32.gmra.mrb[0].mxu0 %v2357
        %v2446 = vpop.f32.mrb[0].mxu0
        %v2447 = vadd.f32 %v2340, %v2446
        %v2448 = vpop.f32.mrb[0].mxu0
        %v2449 = vadd.f32 %v2340, %v2448
        %2450 = vmatprep.mubr.f32.mxu0 0.0
        %2451 = vmatmul.mubr.f32.gmra.mrb[0].mxu0 %v2360
        %v2452 = vpop.f32.mrb[0].mxu0
        %v2453 = vadd.f32 %v2345, %v2452
        %v2454 = vpop.f32.mrb[0].mxu0
        %v2455 = vadd.f32 %v2345, %v2454
        %2456 = vmatprep.mubr.f32.mxu0 0.0
        %2457 = vmatmul.mubr.f32.gmra.mrb[0].mxu0 %v2363
        %v2458 = vpop.f32.mrb[0].mxu0
        %v2459 = vadd.f32 %v2350, %v2458
        %v2460 = vpop.f32.mrb[0].mxu0
        %v2461 = vadd.f32 %v2350, %v2460
        %2462 = vdwg.mxu0
        %2463 = vmatprep.subr.mxu0 %v1073
        %2464 = vmatpush1.msra.mxu0 %v970
        %2465 = vmatprep.subr.mxu0 %v1485
        %2466 = vmatpush1.msra.mxu0 %v1382
        %2467 = vmatprep.subr.mxu0 %v1901
        %2468 = vmatpush1.msra.mxu0 %v1797
        %2469 = vmatprep.subr.mxu0 %v2317
        %2470 = vmatpush1.msra.mxu0 %v2213
        %2471 = vmatprep.subr.mxu0 %v2372
        %2472 = vmatpush1.msra.mxu0 %v2370
        %2473 = vmatprep.subr.mxu0 0.0
        %2474 = vmatpush1.msra.mxu0 0.0
        %2475 = vmatprep.subr.mxu0 0.0
        %2476 = vmatpush1.msra.mxu0 0.0
        %2477 = vmatprep.subr.mxu0 0.0
        %2478 = vmatpush1.msra.mxu0 0.0
        %2479 = vmatprep.subr.mxu0 0.0
        %2480 = vmatpush1.msra.mxu0 0.0
        %2481 = vmatprep.subr.mxu0 0.0
        %2482 = vmatpush1.msra.mxu0 0.0
        %2483 = vmatprep.subr.mxu0 0.0
        %2484 = vmatpush1.msra.mxu0 0.0
        %2485 = vmatprep.subr.mxu0 0.0
        %2486 = vmatpush1.msra.mxu0 0.0
        %2487 = vmatprep.subr.mxu0 0.0
        %2488 = vmatpush1.msra.mxu0 0.0
        %2489 = vmatprep.subr.mxu0 0.0
        %2490 = vmatpush1.msra.mxu0 0.0
        %2491 = vmatprep.subr.mxu0 0.0
        %2492 = vmatpush1.msra.mxu0 0.0
        %2493 = vmatprep.subr.mxu0 0.0
        %2494 = vmatpush1.msra.mxu0 0.0
        %2495 = vmatprep.subr.mxu0 0.0
        %2496 = vmatpush1.msra.mxu0 0.0
        %2497 = vmatprep.subr.mxu0 0.0
        %2498 = vmatpush1.msra.mxu0 0.0
        %2499 = vmatprep.subr.mxu0 0.0
        %2500 = vmatpush1.msra.mxu0 0.0
        %2501 = vmatprep.subr.mxu0 0.0
        %2502 = vmatpush1.msra.mxu0 0.0
        %2503 = vmatprep.subr.mxu0 0.0
        %2504 = vmatpush1.msra.mxu0 0.0
        %2505 = vmatprep.subr.mxu0 0.0
        %2506 = vmatpush1.msra.mxu0 0.0
        %2507 = vmatprep.subr.mxu0 0.0
        %2508 = vmatpush1.msra.mxu0 0.0
        %2509 = vmatprep.subr.mxu0 0.0
        %2510 = vmatpush1.msra.mxu0 0.0
        %2511 = vmatprep.subr.mxu0 0.0
        %2512 = vmatpush1.msra.mxu0 0.0
        %2513 = vmatprep.subr.mxu0 0.0
        %2514 = vmatpush1.msra.mxu0 0.0
        %2515 = vmatprep.subr.mxu0 0.0
        %2516 = vmatpush1.msra.mxu0 0.0
        %2517 = vmatprep.subr.mxu0 0.0
        %2518 = vmatpush1.msra.mxu0 0.0
        %2519 = vmatprep.subr.mxu0 0.0
        %2520 = vmatpush1.msra.mxu0 0.0
        %2521 = vmatprep.subr.mxu0 0.0
        %2522 = vmatpush1.msra.mxu0 0.0
        %2523 = vmatprep.subr.mxu0 0.0
        %2524 = vmatpush1.msra.mxu0 0.0
        %2525 = vmatprep.subr.mxu0 0.0
        %2526 = vmatpush1.msra.mxu0 0.0
        %2527 = vmatprep.mubr.f32.mxu0 0.0
        %2528 = vmatmul.mubr.f32.gmra.mrb[0].mxu0 %v2354
        %v2529 = vpop.f32.mrb[0].mxu0
        %v2530 = vadd.f32 %v2335, %v2529
        %v2531 = vpop.f32.mrb[0].mxu0
        %v2532 = vadd.f32 %v2335, %v2531
        %2533 = vmatprep.mubr.f32.mxu0 0.0
        %2534 = vmatmul.mubr.f32.gmra.mrb[0].mxu0 %v2357
        %v2535 = vpop.f32.mrb[0].mxu0
        %v2536 = vadd.f32 %v2340, %v2535
        %v2537 = vpop.f32.mrb[0].mxu0
        %v2538 = vadd.f32 %v2340, %v2537
        %2539 = vmatprep.mubr.f32.mxu0 0.0
        %2540 = vmatmul.mubr.f32.gmra.mrb[0].mxu0 %v2360
        %v2541 = vpop.f32.mrb[0].mxu0
        %v2542 = vadd.f32 %v2345, %v2541
        %v2543 = vpop.f32.mrb[0].mxu0
        %v2544 = vadd.f32 %v2345, %v2543
        %2545 = vmatprep.mubr.f32.mxu0 0.0
        %2546 = vmatmul.mubr.f32.gmra.mrb[0].mxu0 %v2363
        %v2547 = vpop.f32.mrb[0].mxu0
        %v2548 = vadd.f32 %v2350, %v2547
        %v2549 = vpop.f32.mrb[0].mxu0
        %v2550 = vadd.f32 %v2350, %v2549
        %2551 = vdwg.mxu0
        %v2552 = vtanh.pop %v2441
        %v2553 = vtanh.pop %v2443
        %v2554 = vtanh.pop %v2530
        %v2555 = vtanh.pop %v2532
        %v2556 = vtanh.pop %v2447
        %v2557 = vtanh.pop %v2449
        %v2558 = vtanh.pop %v2536
        %v2559 = vtanh.pop %v2538
        %v2560 = vtanh.pop %v2453
        %v2561 = vtanh.pop %v2455
        %v2562 = vtanh.pop %v2542
        %v2563 = vtanh.pop %v2544
        %v2564 = vtanh.pop %v2459
        %v2565 = vtanh.pop %v2461
        %v2566 = vtanh.pop %v2548
        %v2567 = vtanh.pop %v2550
        %v2568 = vld [vmem:[%s6] sm:$0xff]
        %v2569 = vld [vmem:[%s6 + $0x8] sm:$0xff]
        %v2570 = vld [vmem:[%s6 + $0x10] sm:$0xff]
        %v2571 = vld [vmem:[%s6 + $0x18] sm:$0xff]
        %v2572 = vld [vmem:[%s7] sm:$0xff]
        %v2573 = vld [vmem:[%s7 + $0x8] sm:$0xff]
        %v2574 = vld [vmem:[%s7 + $0x10] sm:$0xff]
        %v2575 = vld [vmem:[%s7 + $0x18] sm:$0xff]
        %2577 = vset.pattern.permute.xlu0 0
        %2578 = vperm.xlu0 %2577, %v2572
        %v2579 = vpop.permute.xlu0 %2578
        %2582 = vset.pattern.permute.xlu0 0
        %2583 = vperm.xlu0 %2582, %v2573
        %v2584 = vpop.permute.xlu0 %2583
        %2587 = vset.pattern.permute.xlu0 0
        %2588 = vperm.xlu0 %2587, %v2574
        %v2589 = vpop.permute.xlu0 %2588
        %2592 = vset.pattern.permute.xlu0 0
        %2593 = vperm.xlu0 %2592, %v2575
        %v2594 = vpop.permute.xlu0 %2593
        %vm2596 = vcmask 261120
        %v2598 = vsel %vm2596, %v2568, 0
        %v2601 = vsel %vm2596, %v2569, 0
        %v2604 = vsel %vm2596, %v2570, 0
        %v2607 = vsel %vm2596, %v2571, 0
        %2609 = vmatprep.subr.mxu0 %v2553
        %2610 = vmatpush1.msra.mxu0 %v2552
        %2611 = vmatprep.subr.mxu0 %v2557
        %2612 = vmatpush1.msra.mxu0 %v2556
        %2613 = vmatprep.subr.mxu0 %v2561
        %2614 = vmatpush1.msra.mxu0 %v2560
        %2615 = vmatprep.subr.mxu0 %v2565
        %2616 = vmatpush1.msra.mxu0 %v2564
        %2617 = vmatprep.subr.mxu0 0.0
        %2618 = vmatpush1.msra.mxu0 0.0
        %2619 = vmatprep.subr.mxu0 0.0
        %2620 = vmatpush1.msra.mxu0 0.0
        %2621 = vmatprep.subr.mxu0 0.0
        %2622 = vmatpush1.msra.mxu0 0.0
        %2623 = vmatprep.subr.mxu0 0.0
        %2624 = vmatpush1.msra.mxu0 0.0
        %2625 = vmatprep.subr.mxu0 0.0
        %2626 = vmatpush1.msra.mxu0 0.0
        %2627 = vmatprep.subr.mxu0 0.0
        %2628 = vmatpush1.msra.mxu0 0.0
        %2629 = vmatprep.subr.mxu0 0.0
        %2630 = vmatpush1.msra.mxu0 0.0
        %2631 = vmatprep.subr.mxu0 0.0
        %2632 = vmatpush1.msra.mxu0 0.0
        %2633 = vmatprep.subr.mxu0 0.0
        %2634 = vmatpush1.msra.mxu0 0.0
        %2635 = vmatprep.subr.mxu0 0.0
        %2636 = vmatpush1.msra.mxu0 0.0
        %2637 = vmatprep.subr.mxu0 0.0
        %2638 = vmatpush1.msra.mxu0 0.0
        %2639 = vmatprep.subr.mxu0 0.0
        %2640 = vmatpush1.msra.mxu0 0.0
        %2641 = vmatprep.subr.mxu0 0.0
        %2642 = vmatpush1.msra.mxu0 0.0
        %2643 = vmatprep.subr.mxu0 0.0
        %2644 = vmatpush1.msra.mxu0 0.0
        %2645 = vmatprep.subr.mxu0 0.0
        %2646 = vmatpush1.msra.mxu0 0.0
        %2647 = vmatprep.subr.mxu0 0.0
        %2648 = vmatpush1.msra.mxu0 0.0
        %2649 = vmatprep.subr.mxu0 0.0
        %2650 = vmatpush1.msra.mxu0 0.0
        %2651 = vmatprep.subr.mxu0 0.0
        %2652 = vmatpush1.msra.mxu0 0.0
        %2653 = vmatprep.subr.mxu0 0.0
        %2654 = vmatpush1.msra.mxu0 0.0
        %2655 = vmatprep.subr.mxu0 0.0
        %2656 = vmatpush1.msra.mxu0 0.0
        %2657 = vmatprep.subr.mxu0 0.0
        %2658 = vmatpush1.msra.mxu0 0.0
        %2659 = vmatprep.subr.mxu0 0.0
        %2660 = vmatpush1.msra.mxu0 0.0
        %2661 = vmatprep.subr.mxu0 0.0
        %2662 = vmatpush1.msra.mxu0 0.0
        %2663 = vmatprep.subr.mxu0 0.0
        %2664 = vmatpush1.msra.mxu0 0.0
        %2665 = vmatprep.subr.mxu0 0.0
        %2666 = vmatpush1.msra.mxu0 0.0
        %2667 = vmatprep.subr.mxu0 0.0
        %2668 = vmatpush1.msra.mxu0 0.0
        %2669 = vmatprep.subr.mxu0 0.0
        %2670 = vmatpush1.msra.mxu0 0.0
        %2671 = vmatprep.subr.mxu0 0.0
        %2672 = vmatpush1.msra.mxu0 0.0
        %2673 = vmatprep.mubr.f32.mxu0 0.0
        %2674 = vmatmul.mubr.f32.gmra.mrb[0].mxu0 %v2598
        %v2675 = vpop.f32.mrb[0].mxu0
        %v2676 = vadd.f32 %v2579, %v2675
        %v2677 = vpop.f32.mrb[0].mxu0
        %v2678 = vadd.f32 %v2579, %v2677
        %2679 = vmatprep.mubr.f32.mxu0 0.0
        %2680 = vmatmul.mubr.f32.gmra.mrb[0].mxu0 %v2601
        %v2681 = vpop.f32.mrb[0].mxu0
        %v2682 = vadd.f32 %v2584, %v2681
        %v2683 = vpop.f32.mrb[0].mxu0
        %v2684 = vadd.f32 %v2584, %v2683
        %2685 = vmatprep.mubr.f32.mxu0 0.0
        %2686 = vmatmul.mubr.f32.gmra.mrb[0].mxu0 %v2604
        %v2687 = vpop.f32.mrb[0].mxu0
        %v2688 = vadd.f32 %v2589, %v2687
        %v2689 = vpop.f32.mrb[0].mxu0
        %v2690 = vadd.f32 %v2589, %v2689
        %2691 = vmatprep.mubr.f32.mxu0 0.0
        %2692 = vmatmul.mubr.f32.gmra.mrb[0].mxu0 %v2607
        %v2693 = vpop.f32.mrb[0].mxu0
        %v2694 = vadd.f32 %v2594, %v2693
        %v2695 = vpop.f32.mrb[0].mxu0
        %v2696 = vadd.f32 %v2594, %v2695
        %2697 = vdwg.mxu0
        %2698 = vmatprep.subr.mxu0 %v2555
        %2699 = vmatpush1.msra.mxu0 %v2554
        %2700 = vmatprep.subr.mxu0 %v2559
        %2701 = vmatpush1.msra.mxu0 %v2558
        %2702 = vmatprep.subr.mxu0 %v2563
        %2703 = vmatpush1.msra.mxu0 %v2562
        %2704 = vmatprep.subr.mxu0 %v2567
        %2705 = vmatpush1.msra.mxu0 %v2566
        %2706 = vmatprep.subr.mxu0 0.0
        %2707 = vmatpush1.msra.mxu0 0.0
        %2708 = vmatprep.subr.mxu0 0.0
        %2709 = vmatpush1.msra.mxu0 0.0
        %2710 = vmatprep.subr.mxu0 0.0
        %2711 = vmatpush1.msra.mxu0 0.0
        %2712 = vmatprep.subr.mxu0 0.0
        %2713 = vmatpush1.msra.mxu0 0.0
        %2714 = vmatprep.subr.mxu0 0.0
        %2715 = vmatpush1.msra.mxu0 0.0
        %2716 = vmatprep.subr.mxu0 0.0
        %2717 = vmatpush1.msra.mxu0 0.0
        %2718 = vmatprep.subr.mxu0 0.0
        %2719 = vmatpush1.msra.mxu0 0.0
        %2720 = vmatprep.subr.mxu0 0.0
        %2721 = vmatpush1.msra.mxu0 0.0
        %2722 = vmatprep.subr.mxu0 0.0
        %2723 = vmatpush1.msra.mxu0 0.0
        %2724 = vmatprep.subr.mxu0 0.0
        %2725 = vmatpush1.msra.mxu0 0.0
        %2726 = vmatprep.subr.mxu0 0.0
        %2727 = vmatpush1.msra.mxu0 0.0
        %2728 = vmatprep.subr.mxu0 0.0
        %2729 = vmatpush1.msra.mxu0 0.0
        %2730 = vmatprep.subr.mxu0 0.0
        %2731 = vmatpush1.msra.mxu0 0.0
        %2732 = vmatprep.subr.mxu0 0.0
        %2733 = vmatpush1.msra.mxu0 0.0
        %2734 = vmatprep.subr.mxu0 0.0
        %2735 = vmatpush1.msra.mxu0 0.0
        %2736 = vmatprep.subr.mxu0 0.0
        %2737 = vmatpush1.msra.mxu0 0.0
        %2738 = vmatprep.subr.mxu0 0.0
        %2739 = vmatpush1.msra.mxu0 0.0
        %2740 = vmatprep.subr.mxu0 0.0
        %2741 = vmatpush1.msra.mxu0 0.0
        %2742 = vmatprep.subr.mxu0 0.0
        %2743 = vmatpush1.msra.mxu0 0.0
        %2744 = vmatprep.subr.mxu0 0.0
        %2745 = vmatpush1.msra.mxu0 0.0
        %2746 = vmatprep.subr.mxu0 0.0
        %2747 = vmatpush1.msra.mxu0 0.0
        %2748 = vmatprep.subr.mxu0 0.0
        %2749 = vmatpush1.msra.mxu0 0.0
        %2750 = vmatprep.subr.mxu0 0.0
        %2751 = vmatpush1.msra.mxu0 0.0
        %2752 = vmatprep.subr.mxu0 0.0
        %2753 = vmatpush1.msra.mxu0 0.0
        %2754 = vmatprep.subr.mxu0 0.0
        %2755 = vmatpush1.msra.mxu0 0.0
        %2756 = vmatprep.subr.mxu0 0.0
        %2757 = vmatpush1.msra.mxu0 0.0
        %2758 = vmatprep.subr.mxu0 0.0
        %2759 = vmatpush1.msra.mxu0 0.0
        %2760 = vmatprep.subr.mxu0 0.0
        %2761 = vmatpush1.msra.mxu0 0.0
        %2762 = vmatprep.mubr.f32.mxu0 0.0
        %2763 = vmatmul.mubr.f32.gmra.mrb[0].mxu0 %v2598
        %v2764 = vpop.f32.mrb[0].mxu0
        %v2765 = vadd.f32 %v2579, %v2764
        %v2766 = vpop.f32.mrb[0].mxu0
        %v2767 = vadd.f32 %v2579, %v2766
        %2768 = vmatprep.mubr.f32.mxu0 0.0
        %2769 = vmatmul.mubr.f32.gmra.mrb[0].mxu0 %v2601
        %v2770 = vpop.f32.mrb[0].mxu0
        %v2771 = vadd.f32 %v2584, %v2770
        %v2772 = vpop.f32.mrb[0].mxu0
        %v2773 = vadd.f32 %v2584, %v2772
        %2774 = vmatprep.mubr.f32.mxu0 0.0
        %2775 = vmatmul.mubr.f32.gmra.mrb[0].mxu0 %v2604
        %v2776 = vpop.f32.mrb[0].mxu0
        %v2777 = vadd.f32 %v2589, %v2776
        %v2778 = vpop.f32.mrb[0].mxu0
        %v2779 = vadd.f32 %v2589, %v2778
        %2780 = vmatprep.mubr.f32.mxu0 0.0
        %2781 = vmatmul.mubr.f32.gmra.mrb[0].mxu0 %v2607
        %v2782 = vpop.f32.mrb[0].mxu0
        %v2783 = vadd.f32 %v2594, %v2782
        %v2784 = vpop.f32.mrb[0].mxu0
        %v2785 = vadd.f32 %v2594, %v2784
        %2786 = vdwg.mxu0
        %v2787 = vtanh.pop %v2676
        %v2788 = vtanh.pop %v2678
        %v2789 = vtanh.pop %v2765
        %v2790 = vtanh.pop %v2767
        %v2791 = vtanh.pop %v2682
        %v2792 = vtanh.pop %v2684
        %v2793 = vtanh.pop %v2771
        %v2794 = vtanh.pop %v2773
        %v2795 = vtanh.pop %v2688
        %v2796 = vtanh.pop %v2690
        %v2797 = vtanh.pop %v2777
        %v2798 = vtanh.pop %v2779
        %v2799 = vtanh.pop %v2694
        %v2800 = vtanh.pop %v2696
        %v2801 = vtanh.pop %v2783
        %v2802 = vtanh.pop %v2785
        %v2803 = vadd.f32 %v2441, %v2787
        %v2804 = vadd.f32 %v2443, %v2788
        %v2805 = vadd.f32 %v2530, %v2789
        %v2806 = vadd.f32 %v2532, %v2790
        %v2807 = vadd.f32 %v2447, %v2791
        %v2808 = vadd.f32 %v2449, %v2792
        %v2809 = vadd.f32 %v2536, %v2793
        %v2810 = vadd.f32 %v2538, %v2794
        %v2811 = vadd.f32 %v2453, %v2795
        %v2812 = vadd.f32 %v2455, %v2796
        %v2813 = vadd.f32 %v2542, %v2797
        %v2814 = vadd.f32 %v2544, %v2798
        %v2815 = vadd.f32 %v2459, %v2799
        %v2816 = vadd.f32 %v2461, %v2800
        %v2817 = vadd.f32 %v2548, %v2801
        %v2818 = vadd.f32 %v2550, %v2802
        %v2819 = vld [vmem:[%s8] sm:$0xff]
        %v2820 = vld [vmem:[%s8 + $0x8] sm:$0xff]
        %v2821 = vld [vmem:[%s8 + $0x10] sm:$0xff]
        %v2822 = vld [vmem:[%s8 + $0x18] sm:$0xff]
        %v2823 = vld [vmem:[%s9] sm:$0xff]
        %v2824 = vld [vmem:[%s9 + $0x8] sm:$0xff]
        %v2825 = vld [vmem:[%s9 + $0x10] sm:$0xff]
        %v2826 = vld [vmem:[%s9 + $0x18] sm:$0xff]
        %2828 = vset.pattern.permute.xlu0 0
        %2829 = vperm.xlu0 %2828, %v2823
        %v2830 = vpop.permute.xlu0 %2829
        %2833 = vset.pattern.permute.xlu0 0
        %2834 = vperm.xlu0 %2833, %v2824
        %v2835 = vpop.permute.xlu0 %2834
        %2838 = vset.pattern.permute.xlu0 0
        %2839 = vperm.xlu0 %2838, %v2825
        %v2840 = vpop.permute.xlu0 %2839
        %2843 = vset.pattern.permute.xlu0 0
        %2844 = vperm.xlu0 %2843, %v2826
        %v2845 = vpop.permute.xlu0 %2844
        %v2848 = vsel %vm2596, %v2819, 0
        %v2851 = vsel %vm2596, %v2820, 0
        %v2854 = vsel %vm2596, %v2821, 0
        %v2857 = vsel %vm2596, %v2822, 0
        %2859 = vmatprep.subr.mxu0 %v2804
        %2860 = vmatpush1.msra.mxu0 %v2803
        %2861 = vmatprep.subr.mxu0 %v2808
        %2862 = vmatpush1.msra.mxu0 %v2807
        %2863 = vmatprep.subr.mxu0 %v2812
        %2864 = vmatpush1.msra.mxu0 %v2811
        %2865 = vmatprep.subr.mxu0 %v2816
        %2866 = vmatpush1.msra.mxu0 %v2815
        %2867 = vmatprep.subr.mxu0 0.0
        %2868 = vmatpush1.msra.mxu0 0.0
        %2869 = vmatprep.subr.mxu0 0.0
        %2870 = vmatpush1.msra.mxu0 0.0
        %2871 = vmatprep.subr.mxu0 0.0
        %2872 = vmatpush1.msra.mxu0 0.0
        %2873 = vmatprep.subr.mxu0 0.0
        %2874 = vmatpush1.msra.mxu0 0.0
        %2875 = vmatprep.subr.mxu0 0.0
        %2876 = vmatpush1.msra.mxu0 0.0
        %2877 = vmatprep.subr.mxu0 0.0
        %2878 = vmatpush1.msra.mxu0 0.0
        %2879 = vmatprep.subr.mxu0 0.0
        %2880 = vmatpush1.msra.mxu0 0.0
        %2881 = vmatprep.subr.mxu0 0.0
        %2882 = vmatpush1.msra.mxu0 0.0
        %2883 = vmatprep.subr.mxu0 0.0
        %2884 = vmatpush1.msra.mxu0 0.0
        %2885 = vmatprep.subr.mxu0 0.0
        %2886 = vmatpush1.msra.mxu0 0.0
        %2887 = vmatprep.subr.mxu0 0.0
        %2888 = vmatpush1.msra.mxu0 0.0
        %2889 = vmatprep.subr.mxu0 0.0
        %2890 = vmatpush1.msra.mxu0 0.0
        %2891 = vmatprep.subr.mxu0 0.0
        %2892 = vmatpush1.msra.mxu0 0.0
        %2893 = vmatprep.subr.mxu0 0.0
        %2894 = vmatpush1.msra.mxu0 0.0
        %2895 = vmatprep.subr.mxu0 0.0
        %2896 = vmatpush1.msra.mxu0 0.0
        %2897 = vmatprep.subr.mxu0 0.0
        %2898 = vmatpush1.msra.mxu0 0.0
        %2899 = vmatprep.subr.mxu0 0.0
        %2900 = vmatpush1.msra.mxu0 0.0
        %2901 = vmatprep.subr.mxu0 0.0
        %2902 = vmatpush1.msra.mxu0 0.0
        %2903 = vmatprep.subr.mxu0 0.0
        %2904 = vmatpush1.msra.mxu0 0.0
        %2905 = vmatprep.subr.mxu0 0.0
        %2906 = vmatpush1.msra.mxu0 0.0
        %2907 = vmatprep.subr.mxu0 0.0
        %2908 = vmatpush1.msra.mxu0 0.0
        %2909 = vmatprep.subr.mxu0 0.0
        %2910 = vmatpush1.msra.mxu0 0.0
        %2911 = vmatprep.subr.mxu0 0.0
        %2912 = vmatpush1.msra.mxu0 0.0
        %2913 = vmatprep.subr.mxu0 0.0
        %2914 = vmatpush1.msra.mxu0 0.0
        %2915 = vmatprep.subr.mxu0 0.0
        %2916 = vmatpush1.msra.mxu0 0.0
        %2917 = vmatprep.subr.mxu0 0.0
        %2918 = vmatpush1.msra.mxu0 0.0
        %2919 = vmatprep.subr.mxu0 0.0
        %2920 = vmatpush1.msra.mxu0 0.0
        %2921 = vmatprep.subr.mxu0 0.0
        %2922 = vmatpush1.msra.mxu0 0.0
        %2923 = vmatprep.mubr.f32.mxu0 0.0
        %2924 = vmatmul.mubr.f32.gmra.mrb[0].mxu0 %v2848
        %v2925 = vpop.f32.mrb[0].mxu0
        %v2926 = vadd.f32 %v2830, %v2925
        %v2927 = vpop.f32.mrb[0].mxu0
        %v2928 = vadd.f32 %v2830, %v2927
        %2929 = vmatprep.mubr.f32.mxu0 0.0
        %2930 = vmatmul.mubr.f32.gmra.mrb[0].mxu0 %v2851
        %v2931 = vpop.f32.mrb[0].mxu0
        %v2932 = vadd.f32 %v2835, %v2931
        %v2933 = vpop.f32.mrb[0].mxu0
        %v2934 = vadd.f32 %v2835, %v2933
        %2935 = vmatprep.mubr.f32.mxu0 0.0
        %2936 = vmatmul.mubr.f32.gmra.mrb[0].mxu0 %v2854
        %v2937 = vpop.f32.mrb[0].mxu0
        %v2938 = vadd.f32 %v2840, %v2937
        %v2939 = vpop.f32.mrb[0].mxu0
        %v2940 = vadd.f32 %v2840, %v2939
        %2941 = vmatprep.mubr.f32.mxu0 0.0
        %2942 = vmatmul.mubr.f32.gmra.mrb[0].mxu0 %v2857
        %v2943 = vpop.f32.mrb[0].mxu0
        %v2944 = vadd.f32 %v2845, %v2943
        %v2945 = vpop.f32.mrb[0].mxu0
        %v2946 = vadd.f32 %v2845, %v2945
        %2947 = vdwg.mxu0
        %2948 = vmatprep.subr.mxu0 %v2806
        %2949 = vmatpush1.msra.mxu0 %v2805
        %2950 = vmatprep.subr.mxu0 %v2810
        %2951 = vmatpush1.msra.mxu0 %v2809
        %2952 = vmatprep.subr.mxu0 %v2814
        %2953 = vmatpush1.msra.mxu0 %v2813
        %2954 = vmatprep.subr.mxu0 %v2818
        %2955 = vmatpush1.msra.mxu0 %v2817
        %2956 = vmatprep.subr.mxu0 0.0
        %2957 = vmatpush1.msra.mxu0 0.0
        %2958 = vmatprep.subr.mxu0 0.0
        %2959 = vmatpush1.msra.mxu0 0.0
        %2960 = vmatprep.subr.mxu0 0.0
        %2961 = vmatpush1.msra.mxu0 0.0
        %2962 = vmatprep.subr.mxu0 0.0
        %2963 = vmatpush1.msra.mxu0 0.0
        %2964 = vmatprep.subr.mxu0 0.0
        %2965 = vmatpush1.msra.mxu0 0.0
        %2966 = vmatprep.subr.mxu0 0.0
        %2967 = vmatpush1.msra.mxu0 0.0
        %2968 = vmatprep.subr.mxu0 0.0
        %2969 = vmatpush1.msra.mxu0 0.0
        %2970 = vmatprep.subr.mxu0 0.0
        %2971 = vmatpush1.msra.mxu0 0.0
        %2972 = vmatprep.subr.mxu0 0.0
        %2973 = vmatpush1.msra.mxu0 0.0
        %2974 = vmatprep.subr.mxu0 0.0
        %2975 = vmatpush1.msra.mxu0 0.0
        %2976 = vmatprep.subr.mxu0 0.0
        %2977 = vmatpush1.msra.mxu0 0.0
        %2978 = vmatprep.subr.mxu0 0.0
        %2979 = vmatpush1.msra.mxu0 0.0
        %2980 = vmatprep.subr.mxu0 0.0
        %2981 = vmatpush1.msra.mxu0 0.0
        %2982 = vmatprep.subr.mxu0 0.0
        %2983 = vmatpush1.msra.mxu0 0.0
        %2984 = vmatprep.subr.mxu0 0.0
        %2985 = vmatpush1.msra.mxu0 0.0
        %2986 = vmatprep.subr.mxu0 0.0
        %2987 = vmatpush1.msra.mxu0 0.0
        %2988 = vmatprep.subr.mxu0 0.0
        %2989 = vmatpush1.msra.mxu0 0.0
        %2990 = vmatprep.subr.mxu0 0.0
        %2991 = vmatpush1.msra.mxu0 0.0
        %2992 = vmatprep.subr.mxu0 0.0
        %2993 = vmatpush1.msra.mxu0 0.0
        %2994 = vmatprep.subr.mxu0 0.0
        %2995 = vmatpush1.msra.mxu0 0.0
        %2996 = vmatprep.subr.mxu0 0.0
        %2997 = vmatpush1.msra.mxu0 0.0
        %2998 = vmatprep.subr.mxu0 0.0
        %2999 = vmatpush1.msra.mxu0 0.0
        %3000 = vmatprep.subr.mxu0 0.0
        %3001 = vmatpush1.msra.mxu0 0.0
        %3002 = vmatprep.subr.mxu0 0.0
        %3003 = vmatpush1.msra.mxu0 0.0
        %3004 = vmatprep.subr.mxu0 0.0
        %3005 = vmatpush1.msra.mxu0 0.0
        %3006 = vmatprep.subr.mxu0 0.0
        %3007 = vmatpush1.msra.mxu0 0.0
        %3008 = vmatprep.subr.mxu0 0.0
        %3009 = vmatpush1.msra.mxu0 0.0
        %3010 = vmatprep.subr.mxu0 0.0
        %3011 = vmatpush1.msra.mxu0 0.0
        %3012 = vmatprep.mubr.f32.mxu0 0.0
        %3013 = vmatmul.mubr.f32.gmra.mrb[0].mxu0 %v2848
        %v3014 = vpop.f32.mrb[0].mxu0
        %v3015 = vadd.f32 %v2830, %v3014
        %v3016 = vpop.f32.mrb[0].mxu0
        %v3017 = vadd.f32 %v2830, %v3016
        %3018 = vmatprep.mubr.f32.mxu0 0.0
        %3019 = vmatmul.mubr.f32.gmra.mrb[0].mxu0 %v2851
        %v3020 = vpop.f32.mrb[0].mxu0
        %v3021 = vadd.f32 %v2835, %v3020
        %v3022 = vpop.f32.mrb[0].mxu0
        %v3023 = vadd.f32 %v2835, %v3022
        %3024 = vmatprep.mubr.f32.mxu0 0.0
        %3025 = vmatmul.mubr.f32.gmra.mrb[0].mxu0 %v2854
        %v3026 = vpop.f32.mrb[0].mxu0
        %v3027 = vadd.f32 %v2840, %v3026
        %v3028 = vpop.f32.mrb[0].mxu0
        %v3029 = vadd.f32 %v2840, %v3028
        %3030 = vmatprep.mubr.f32.mxu0 0.0
        %3031 = vmatmul.mubr.f32.gmra.mrb[0].mxu0 %v2857
        %v3032 = vpop.f32.mrb[0].mxu0
        %v3033 = vadd.f32 %v2845, %v3032
        %v3034 = vpop.f32.mrb[0].mxu0
        %v3035 = vadd.f32 %v2845, %v3034
        %3036 = vdwg.mxu0
        %v3037 = vtanh.pop %v2926
        %v3038 = vtanh.pop %v2928
        %v3039 = vtanh.pop %v3015
        %v3040 = vtanh.pop %v3017
        %v3041 = vtanh.pop %v2932
        %v3042 = vtanh.pop %v2934
        %v3043 = vtanh.pop %v3021
        %v3044 = vtanh.pop %v3023
        %v3045 = vtanh.pop %v2938
        %v3046 = vtanh.pop %v2940
        %v3047 = vtanh.pop %v3027
        %v3048 = vtanh.pop %v3029
        %v3049 = vtanh.pop %v2944
        %v3050 = vtanh.pop %v2946
        %v3051 = vtanh.pop %v3033
        %v3052 = vtanh.pop %v3035
        %v3053 = vld [vmem:[%s10] sm:$0xff]
        %v3054 = vld [vmem:[%s10 + $0x8] sm:$0xff]
        %v3055 = vld [vmem:[%s10 + $0x10] sm:$0xff]
        %v3056 = vld [vmem:[%s10 + $0x18] sm:$0xff]
        %v3057 = vld [vmem:[%s11] sm:$0xff]
        %v3058 = vld [vmem:[%s11 + $0x8] sm:$0xff]
        %v3059 = vld [vmem:[%s11 + $0x10] sm:$0xff]
        %v3060 = vld [vmem:[%s11 + $0x18] sm:$0xff]
        %3062 = vset.pattern.permute.xlu0 0
        %3063 = vperm.xlu0 %3062, %v3057
        %v3064 = vpop.permute.xlu0 %3063
        %3067 = vset.pattern.permute.xlu0 0
        %3068 = vperm.xlu0 %3067, %v3058
        %v3069 = vpop.permute.xlu0 %3068
        %3072 = vset.pattern.permute.xlu0 0
        %3073 = vperm.xlu0 %3072, %v3059
        %v3074 = vpop.permute.xlu0 %3073
        %3077 = vset.pattern.permute.xlu0 0
        %3078 = vperm.xlu0 %3077, %v3060
        %v3079 = vpop.permute.xlu0 %3078
        %v3082 = vsel %vm2596, %v3053, 0
        %v3085 = vsel %vm2596, %v3054, 0
        %v3088 = vsel %vm2596, %v3055, 0
        %v3091 = vsel %vm2596, %v3056, 0
        %3093 = vmatprep.subr.mxu0 %v3038
        %3094 = vmatpush1.msra.mxu0 %v3037
        %3095 = vmatprep.subr.mxu0 %v3042
        %3096 = vmatpush1.msra.mxu0 %v3041
        %3097 = vmatprep.subr.mxu0 %v3046
        %3098 = vmatpush1.msra.mxu0 %v3045
        %3099 = vmatprep.subr.mxu0 %v3050
        %3100 = vmatpush1.msra.mxu0 %v3049
        %3101 = vmatprep.subr.mxu0 0.0
        %3102 = vmatpush1.msra.mxu0 0.0
        %3103 = vmatprep.subr.mxu0 0.0
        %3104 = vmatpush1.msra.mxu0 0.0
        %3105 = vmatprep.subr.mxu0 0.0
        %3106 = vmatpush1.msra.mxu0 0.0
        %3107 = vmatprep.subr.mxu0 0.0
        %3108 = vmatpush1.msra.mxu0 0.0
        %3109 = vmatprep.subr.mxu0 0.0
        %3110 = vmatpush1.msra.mxu0 0.0
        %3111 = vmatprep.subr.mxu0 0.0
        %3112 = vmatpush1.msra.mxu0 0.0
        %3113 = vmatprep.subr.mxu0 0.0
        %3114 = vmatpush1.msra.mxu0 0.0
        %3115 = vmatprep.subr.mxu0 0.0
        %3116 = vmatpush1.msra.mxu0 0.0
        %3117 = vmatprep.subr.mxu0 0.0
        %3118 = vmatpush1.msra.mxu0 0.0
        %3119 = vmatprep.subr.mxu0 0.0
        %3120 = vmatpush1.msra.mxu0 0.0
        %3121 = vmatprep.subr.mxu0 0.0
        %3122 = vmatpush1.msra.mxu0 0.0
        %3123 = vmatprep.subr.mxu0 0.0
        %3124 = vmatpush1.msra.mxu0 0.0
        %3125 = vmatprep.subr.mxu0 0.0
        %3126 = vmatpush1.msra.mxu0 0.0
        %3127 = vmatprep.subr.mxu0 0.0
        %3128 = vmatpush1.msra.mxu0 0.0
        %3129 = vmatprep.subr.mxu0 0.0
        %3130 = vmatpush1.msra.mxu0 0.0
        %3131 = vmatprep.subr.mxu0 0.0
        %3132 = vmatpush1.msra.mxu0 0.0
        %3133 = vmatprep.subr.mxu0 0.0
        %3134 = vmatpush1.msra.mxu0 0.0
        %3135 = vmatprep.subr.mxu0 0.0
        %3136 = vmatpush1.msra.mxu0 0.0
        %3137 = vmatprep.subr.mxu0 0.0
        %3138 = vmatpush1.msra.mxu0 0.0
        %3139 = vmatprep.subr.mxu0 0.0
        %3140 = vmatpush1.msra.mxu0 0.0
        %3141 = vmatprep.subr.mxu0 0.0
        %3142 = vmatpush1.msra.mxu0 0.0
        %3143 = vmatprep.subr.mxu0 0.0
        %3144 = vmatpush1.msra.mxu0 0.0
        %3145 = vmatprep.subr.mxu0 0.0
        %3146 = vmatpush1.msra.mxu0 0.0
        %3147 = vmatprep.subr.mxu0 0.0
        %3148 = vmatpush1.msra.mxu0 0.0
        %3149 = vmatprep.subr.mxu0 0.0
        %3150 = vmatpush1.msra.mxu0 0.0
        %3151 = vmatprep.subr.mxu0 0.0
        %3152 = vmatpush1.msra.mxu0 0.0
        %3153 = vmatprep.subr.mxu0 0.0
        %3154 = vmatpush1.msra.mxu0 0.0
        %3155 = vmatprep.subr.mxu0 0.0
        %3156 = vmatpush1.msra.mxu0 0.0
        %3157 = vmatprep.mubr.f32.mxu0 0.0
        %3158 = vmatmul.mubr.f32.gmra.mrb[0].mxu0 %v3082
        %v3159 = vpop.f32.mrb[0].mxu0
        %v3160 = vadd.f32 %v3064, %v3159
        %v3161 = vpop.f32.mrb[0].mxu0
        %v3162 = vadd.f32 %v3064, %v3161
        %3163 = vmatprep.mubr.f32.mxu0 0.0
        %3164 = vmatmul.mubr.f32.gmra.mrb[0].mxu0 %v3085
        %v3165 = vpop.f32.mrb[0].mxu0
        %v3166 = vadd.f32 %v3069, %v3165
        %v3167 = vpop.f32.mrb[0].mxu0
        %v3168 = vadd.f32 %v3069, %v3167
        %3169 = vmatprep.mubr.f32.mxu0 0.0
        %3170 = vmatmul.mubr.f32.gmra.mrb[0].mxu0 %v3088
        %v3171 = vpop.f32.mrb[0].mxu0
        %v3172 = vadd.f32 %v3074, %v3171
        %v3173 = vpop.f32.mrb[0].mxu0
        %v3174 = vadd.f32 %v3074, %v3173
        %3175 = vmatprep.mubr.f32.mxu0 0.0
        %3176 = vmatmul.mubr.f32.gmra.mrb[0].mxu0 %v3091
        %v3177 = vpop.f32.mrb[0].mxu0
        %v3178 = vadd.f32 %v3079, %v3177
        %v3179 = vpop.f32.mrb[0].mxu0
        %v3180 = vadd.f32 %v3079, %v3179
        %3181 = vdwg.mxu0
        %3182 = vmatprep.subr.mxu0 %v3040
        %3183 = vmatpush1.msra.mxu0 %v3039
        %3184 = vmatprep.subr.mxu0 %v3044
        %3185 = vmatpush1.msra.mxu0 %v3043
        %3186 = vmatprep.subr.mxu0 %v3048
        %3187 = vmatpush1.msra.mxu0 %v3047
        %3188 = vmatprep.subr.mxu0 %v3052
        %3189 = vmatpush1.msra.mxu0 %v3051
        %3190 = vmatprep.subr.mxu0 0.0
        %3191 = vmatpush1.msra.mxu0 0.0
        %3192 = vmatprep.subr.mxu0 0.0
        %3193 = vmatpush1.msra.mxu0 0.0
        %3194 = vmatprep.subr.mxu0 0.0
        %3195 = vmatpush1.msra.mxu0 0.0
        %3196 = vmatprep.subr.mxu0 0.0
        %3197 = vmatpush1.msra.mxu0 0.0
        %3198 = vmatprep.subr.mxu0 0.0
        %3199 = vmatpush1.msra.mxu0 0.0
        %3200 = vmatprep.subr.mxu0 0.0
        %3201 = vmatpush1.msra.mxu0 0.0
        %3202 = vmatprep.subr.mxu0 0.0
        %3203 = vmatpush1.msra.mxu0 0.0
        %3204 = vmatprep.subr.mxu0 0.0
        %3205 = vmatpush1.msra.mxu0 0.0
        %3206 = vmatprep.subr.mxu0 0.0
        %3207 = vmatpush1.msra.mxu0 0.0
        %3208 = vmatprep.subr.mxu0 0.0
        %3209 = vmatpush1.msra.mxu0 0.0
        %3210 = vmatprep.subr.mxu0 0.0
        %3211 = vmatpush1.msra.mxu0 0.0
        %3212 = vmatprep.subr.mxu0 0.0
        %3213 = vmatpush1.msra.mxu0 0.0
        %3214 = vmatprep.subr.mxu0 0.0
        %3215 = vmatpush1.msra.mxu0 0.0
        %3216 = vmatprep.subr.mxu0 0.0
        %3217 = vmatpush1.msra.mxu0 0.0
        %3218 = vmatprep.subr.mxu0 0.0
        %3219 = vmatpush1.msra.mxu0 0.0
        %3220 = vmatprep.subr.mxu0 0.0
        %3221 = vmatpush1.msra.mxu0 0.0
        %3222 = vmatprep.subr.mxu0 0.0
        %3223 = vmatpush1.msra.mxu0 0.0
        %3224 = vmatprep.subr.mxu0 0.0
        %3225 = vmatpush1.msra.mxu0 0.0
        %3226 = vmatprep.subr.mxu0 0.0
        %3227 = vmatpush1.msra.mxu0 0.0
        %3228 = vmatprep.subr.mxu0 0.0
        %3229 = vmatpush1.msra.mxu0 0.0
        %3230 = vmatprep.subr.mxu0 0.0
        %3231 = vmatpush1.msra.mxu0 0.0
        %3232 = vmatprep.subr.mxu0 0.0
        %3233 = vmatpush1.msra.mxu0 0.0
        %3234 = vmatprep.subr.mxu0 0.0
        %3235 = vmatpush1.msra.mxu0 0.0
        %3236 = vmatprep.subr.mxu0 0.0
        %3237 = vmatpush1.msra.mxu0 0.0
        %3238 = vmatprep.subr.mxu0 0.0
        %3239 = vmatpush1.msra.mxu0 0.0
        %3240 = vmatprep.subr.mxu0 0.0
        %3241 = vmatpush1.msra.mxu0 0.0
        %3242 = vmatprep.subr.mxu0 0.0
        %3243 = vmatpush1.msra.mxu0 0.0
        %3244 = vmatprep.subr.mxu0 0.0
        %3245 = vmatpush1.msra.mxu0 0.0
        %3246 = vmatprep.mubr.f32.mxu0 0.0
        %3247 = vmatmul.mubr.f32.gmra.mrb[0].mxu0 %v3082
        %v3248 = vpop.f32.mrb[0].mxu0
        %v3249 = vadd.f32 %v3064, %v3248
        %v3250 = vpop.f32.mrb[0].mxu0
        %v3251 = vadd.f32 %v3064, %v3250
        %3252 = vmatprep.mubr.f32.mxu0 0.0
        %3253 = vmatmul.mubr.f32.gmra.mrb[0].mxu0 %v3085
        %v3254 = vpop.f32.mrb[0].mxu0
        %v3255 = vadd.f32 %v3069, %v3254
        %v3256 = vpop.f32.mrb[0].mxu0
        %v3257 = vadd.f32 %v3069, %v3256
        %3258 = vmatprep.mubr.f32.mxu0 0.0
        %3259 = vmatmul.mubr.f32.gmra.mrb[0].mxu0 %v3088
        %v3260 = vpop.f32.mrb[0].mxu0
        %v3261 = vadd.f32 %v3074, %v3260
        %v3262 = vpop.f32.mrb[0].mxu0
        %v3263 = vadd.f32 %v3074, %v3262
        %3264 = vmatprep.mubr.f32.mxu0 0.0
        %3265 = vmatmul.mubr.f32.gmra.mrb[0].mxu0 %v3091
        %v3266 = vpop.f32.mrb[0].mxu0
        %v3267 = vadd.f32 %v3079, %v3266
        %v3268 = vpop.f32.mrb[0].mxu0
        %v3269 = vadd.f32 %v3079, %v3268
        %3270 = vdwg.mxu0
        %v3271 = vtanh.pop %v3160
        %v3272 = vtanh.pop %v3162
        %v3273 = vtanh.pop %v3249
        %v3274 = vtanh.pop %v3251
        %v3275 = vtanh.pop %v3166
        %v3276 = vtanh.pop %v3168
        %v3277 = vtanh.pop %v3255
        %v3278 = vtanh.pop %v3257
        %v3279 = vtanh.pop %v3172
        %v3280 = vtanh.pop %v3174
        %v3281 = vtanh.pop %v3261
        %v3282 = vtanh.pop %v3263
        %v3283 = vtanh.pop %v3178
        %v3284 = vtanh.pop %v3180
        %v3285 = vtanh.pop %v3267
        %v3286 = vtanh.pop %v3269
        %v3287 = vadd.f32 %v2926, %v3271
        %v3288 = vadd.f32 %v2928, %v3272
        %v3289 = vadd.f32 %v3015, %v3273
        %v3290 = vadd.f32 %v3017, %v3274
        %v3291 = vadd.f32 %v2932, %v3275
        %v3292 = vadd.f32 %v2934, %v3276
        %v3293 = vadd.f32 %v3021, %v3277
        %v3294 = vadd.f32 %v3023, %v3278
        %v3295 = vadd.f32 %v2938, %v3279
        %v3296 = vadd.f32 %v2940, %v3280
        %v3297 = vadd.f32 %v3027, %v3281
        %v3298 = vadd.f32 %v3029, %v3282
        %v3299 = vadd.f32 %v2944, %v3283
        %v3300 = vadd.f32 %v2946, %v3284
        %v3301 = vadd.f32 %v3033, %v3285
        %v3302 = vadd.f32 %v3035, %v3286
        %v3303 = vld [vmem:[%s12] sm:$0x7]
        %v3304 = vld [vmem:[%s13] sm:$0x7]
        %3306 = vset.pattern.permute.xlu0 0
        %3307 = vperm.xlu0 %3306, %v3304
        %v3308 = vpop.permute.xlu0 %3307
        %v3311 = vsel %vm2596, %v3303, 0
        %3313 = vmatprep.subr.mxu0 %v3288
        %3314 = vmatpush1.msra.mxu0 %v3287
        %3315 = vmatprep.subr.mxu0 %v3292
        %3316 = vmatpush1.msra.mxu0 %v3291
        %3317 = vmatprep.subr.mxu0 %v3296
        %3318 = vmatpush1.msra.mxu0 %v3295
        %3319 = vmatprep.subr.mxu0 %v3300
        %3320 = vmatpush1.msra.mxu0 %v3299
        %3321 = vmatprep.subr.mxu0 0.0
        %3322 = vmatpush1.msra.mxu0 0.0
        %3323 = vmatprep.subr.mxu0 0.0
        %3324 = vmatpush1.msra.mxu0 0.0
        %3325 = vmatprep.subr.mxu0 0.0
        %3326 = vmatpush1.msra.mxu0 0.0
        %3327 = vmatprep.subr.mxu0 0.0
        %3328 = vmatpush1.msra.mxu0 0.0
        %3329 = vmatprep.subr.mxu0 0.0
        %3330 = vmatpush1.msra.mxu0 0.0
        %3331 = vmatprep.subr.mxu0 0.0
        %3332 = vmatpush1.msra.mxu0 0.0
        %3333 = vmatprep.subr.mxu0 0.0
        %3334 = vmatpush1.msra.mxu0 0.0
        %3335 = vmatprep.subr.mxu0 0.0
        %3336 = vmatpush1.msra.mxu0 0.0
        %3337 = vmatprep.subr.mxu0 0.0
        %3338 = vmatpush1.msra.mxu0 0.0
        %3339 = vmatprep.subr.mxu0 0.0
        %3340 = vmatpush1.msra.mxu0 0.0
        %3341 = vmatprep.subr.mxu0 0.0
        %3342 = vmatpush1.msra.mxu0 0.0
        %3343 = vmatprep.subr.mxu0 0.0
        %3344 = vmatpush1.msra.mxu0 0.0
        %3345 = vmatprep.subr.mxu0 0.0
        %3346 = vmatpush1.msra.mxu0 0.0
        %3347 = vmatprep.subr.mxu0 0.0
        %3348 = vmatpush1.msra.mxu0 0.0
        %3349 = vmatprep.subr.mxu0 0.0
        %3350 = vmatpush1.msra.mxu0 0.0
        %3351 = vmatprep.subr.mxu0 0.0
        %3352 = vmatpush1.msra.mxu0 0.0
        %3353 = vmatprep.subr.mxu0 0.0
        %3354 = vmatpush1.msra.mxu0 0.0
        %3355 = vmatprep.subr.mxu0 0.0
        %3356 = vmatpush1.msra.mxu0 0.0
        %3357 = vmatprep.subr.mxu0 0.0
        %3358 = vmatpush1.msra.mxu0 0.0
        %3359 = vmatprep.subr.mxu0 0.0
        %3360 = vmatpush1.msra.mxu0 0.0
        %3361 = vmatprep.subr.mxu0 0.0
        %3362 = vmatpush1.msra.mxu0 0.0
        %3363 = vmatprep.subr.mxu0 0.0
        %3364 = vmatpush1.msra.mxu0 0.0
        %3365 = vmatprep.subr.mxu0 0.0
        %3366 = vmatpush1.msra.mxu0 0.0
        %3367 = vmatprep.subr.mxu0 0.0
        %3368 = vmatpush1.msra.mxu0 0.0
        %3369 = vmatprep.subr.mxu0 0.0
        %3370 = vmatpush1.msra.mxu0 0.0
        %3371 = vmatprep.subr.mxu0 0.0
        %3372 = vmatpush1.msra.mxu0 0.0
        %3373 = vmatprep.subr.mxu0 0.0
        %3374 = vmatpush1.msra.mxu0 0.0
        %3375 = vmatprep.subr.mxu0 0.0
        %3376 = vmatpush1.msra.mxu0 0.0
        %3377 = vmatprep.mubr.f32.mxu0 0.0
        %3378 = vmatmul.mubr.f32.gmra.mrb[0].mxu0 %v3311
        %v3379 = vpop.f32.mrb[0].mxu0
        %v3380 = vadd.f32 %v3308, %v3379
        %v3381 = vpop.f32.mrb[0].mxu0
        %v3382 = vadd.f32 %v3308, %v3381
        %3383 = vdwg.mxu0
        %3384 = vmatprep.subr.mxu0 %v3290
        %3385 = vmatpush1.msra.mxu0 %v3289
        %3386 = vmatprep.subr.mxu0 %v3294
        %3387 = vmatpush1.msra.mxu0 %v3293
        %3388 = vmatprep.subr.mxu0 %v3298
        %3389 = vmatpush1.msra.mxu0 %v3297
        %3390 = vmatprep.subr.mxu0 %v3302
        %3391 = vmatpush1.msra.mxu0 %v3301
        %3392 = vmatprep.subr.mxu0 0.0
        %3393 = vmatpush1.msra.mxu0 0.0
        %3394 = vmatprep.subr.mxu0 0.0
        %3395 = vmatpush1.msra.mxu0 0.0
        %3396 = vmatprep.subr.mxu0 0.0
        %3397 = vmatpush1.msra.mxu0 0.0
        %3398 = vmatprep.subr.mxu0 0.0
        %3399 = vmatpush1.msra.mxu0 0.0
        %3400 = vmatprep.subr.mxu0 0.0
        %3401 = vmatpush1.msra.mxu0 0.0
        %3402 = vmatprep.subr.mxu0 0.0
        %3403 = vmatpush1.msra.mxu0 0.0
        %3404 = vmatprep.subr.mxu0 0.0
        %3405 = vmatpush1.msra.mxu0 0.0
        %3406 = vmatprep.subr.mxu0 0.0
        %3407 = vmatpush1.msra.mxu0 0.0
        %3408 = vmatprep.subr.mxu0 0.0
        %3409 = vmatpush1.msra.mxu0 0.0
        %3410 = vmatprep.subr.mxu0 0.0
        %3411 = vmatpush1.msra.mxu0 0.0
        %3412 = vmatprep.subr.mxu0 0.0
        %3413 = vmatpush1.msra.mxu0 0.0
        %3414 = vmatprep.subr.mxu0 0.0
        %3415 = vmatpush1.msra.mxu0 0.0
        %3416 = vmatprep.subr.mxu0 0.0
        %3417 = vmatpush1.msra.mxu0 0.0
        %3418 = vmatprep.subr.mxu0 0.0
        %3419 = vmatpush1.msra.mxu0 0.0
        %3420 = vmatprep.subr.mxu0 0.0
        %3421 = vmatpush1.msra.mxu0 0.0
        %3422 = vmatprep.subr.mxu0 0.0
        %3423 = vmatpush1.msra.mxu0 0.0
        %3424 = vmatprep.subr.mxu0 0.0
        %3425 = vmatpush1.msra.mxu0 0.0
        %3426 = vmatprep.subr.mxu0 0.0
        %3427 = vmatpush1.msra.mxu0 0.0
        %3428 = vmatprep.subr.mxu0 0.0
        %3429 = vmatpush1.msra.mxu0 0.0
        %3430 = vmatprep.subr.mxu0 0.0
        %3431 = vmatpush1.msra.mxu0 0.0
        %3432 = vmatprep.subr.mxu0 0.0
        %3433 = vmatpush1.msra.mxu0 0.0
        %3434 = vmatprep.subr.mxu0 0.0
        %3435 = vmatpush1.msra.mxu0 0.0
        %3436 = vmatprep.subr.mxu0 0.0
        %3437 = vmatpush1.msra.mxu0 0.0
        %3438 = vmatprep.subr.mxu0 0.0
        %3439 = vmatpush1.msra.mxu0 0.0
        %3440 = vmatprep.subr.mxu0 0.0
        %3441 = vmatpush1.msra.mxu0 0.0
        %3442 = vmatprep.subr.mxu0 0.0
        %3443 = vmatpush1.msra.mxu0 0.0
        %3444 = vmatprep.subr.mxu0 0.0
        %3445 = vmatpush1.msra.mxu0 0.0
        %3446 = vmatprep.subr.mxu0 0.0
        %3447 = vmatpush1.msra.mxu0 0.0
        %3448 = vmatprep.mubr.f32.mxu0 0.0
        %3449 = vmatmul.mubr.f32.gmra.mrb[0].mxu0 %v3311
        %v3450 = vpop.f32.mrb[0].mxu0
        %v3451 = vadd.f32 %v3308, %v3450
        %v3452 = vpop.f32.mrb[0].mxu0
        %v3453 = vadd.f32 %v3308, %v3452
        %3454 = vdwg.mxu0
        %vm3455 = vcmp.lt.s32.totalorder %v488, 2
        %v3456 = vsel %vm3455, 1, 0
        %vm3457 = vcmp.eq.s32.totalorder %v3456, 1
        %v3458 = vsel %vm3457, %v609, %v525
        %v3459 = vsel %vm3457, %v613, %v529
        %v3460 = vsel %vm3457, %v617, %v533
        %v3461 = vsel %vm3457, %v621, %v537
        %v3462 = vmul.f32 %v3458, 10.56
        %v3463 = vmul.f32 %v3459, 10.56
        %v3464 = vmul.f32 %v3460, 10.56
        %v3465 = vmul.f32 %v3461, 10.56
        %vm3466 = vcmp.lt.s32.totalorder %v488, 0
        %v3467 = vsub.s32 0, %v488
        %v3468 = vsel %vm3466, %v3467, %v488
        %v3469 = vshrl.u32 %v3468, 1
        %v3470 = vand.u32 %v3468, 1
        %v3471 = vsub.s32 0, %v3470
        %v3472 = vsel %vm3466, %v3471, %v3470
        %vm3473 = vcmp.ne.s32.totalorder %v3472, 0
        %vm3474 = vcmp.lt.s32.totalorder %v3472, 0
        %vm3475 = vmand %vm3474, %vm3473
        %v3476 = vadd.s32 %v3472, 2
        %v3477 = vsel %vm3475, %v3476, %v3472
        %vm3478 = vcmp.eq.s32.totalorder %v3477, 0
        %v3479 = vsub.f32 10.56, %v3462
        %v3480 = vsub.f32 10.56, %v3463
        %v3481 = vsub.f32 10.56, %v3464
        %v3482 = vsub.f32 10.56, %v3465
        %v3483 = vsel %vm3478, 1, 0
        %vm3484 = vcmp.eq.s32.totalorder %v3483, 1
        %v3485 = vsel %vm3484, %v3462, %v3479
        %v3486 = vsel %vm3484, %v3463, %v3480
        %v3487 = vsel %vm3484, %v3464, %v3481
        %v3488 = vsel %vm3484, %v3465, %v3482
        %v3489 = vtanh.pop %v3485
        %v3490 = vtanh.pop %v3486
        %v3491 = vtanh.pop %v3487
        %v3492 = vtanh.pop %v3488
        %v3497 = vrot.slane %v3489, 2
        %v3498 = vrot.slane %v3490, 2
        %v3499 = vrot.slane %v3491, 2
        %v3500 = vrot.slane %v3492, 2
        %v3505 = vmul.f32 %v3489, %v3497
        %v3506 = vmul.f32 %v3490, %v3498
        %v3507 = vmul.f32 %v3491, %v3499
        %v3508 = vmul.f32 %v3492, %v3500
        %vm3509 = vcmp.eq.s32.totalorder %v488, 0
        %vm3510 = vcmp.eq.s32.totalorder %v488, 1
        %v3511 = vrot.slane %v3489, 1
        %v3512 = vrot.slane %v3490, 1
        %v3513 = vrot.slane %v3491, 1
        %v3514 = vrot.slane %v3492, 1
        %v3519 = vmul.f32 %v3505, %v3511
        %v3520 = vmul.f32 %v3506, %v3512
        %v3521 = vmul.f32 %v3507, %v3513
        %v3522 = vmul.f32 %v3508, %v3514
        %v3523 = vsel %vm3510, 1, 0
        %vm3524 = vcmp.eq.s32.totalorder %v3523, 1
        %v3525 = vlaneseq
        %v3526 = vshrl.u32 %v3525, 7
        %v3527 = vsub.s32 1, %v3526
        %v3528 = vrot.slane %v3505, %v3527
        %v3529 = vlaneseq
        %v3530 = vshrl.u32 %v3529, 7
        %v3531 = vsub.s32 1, %v3530
        %v3532 = vrot.slane %v3506, %v3531
        %v3533 = vlaneseq
        %v3534 = vshrl.u32 %v3533, 7
        %v3535 = vsub.s32 1, %v3534
        %v3536 = vrot.slane %v3507, %v3535
        %v3537 = vlaneseq
        %v3538 = vshrl.u32 %v3537, 7
        %v3539 = vsub.s32 1, %v3538
        %v3540 = vrot.slane %v3508, %v3539
        %v3541 = vlaneseq
        %v3542 = vshrl.u32 %v3541, 7
        %v3543 = vsub.s32 1, %v3542
        %v3544 = vrot.slane %v3519, %v3543
        %v3545 = vlaneseq
        %v3546 = vshrl.u32 %v3545, 7
        %v3547 = vsub.s32 1, %v3546
        %v3548 = vrot.slane %v3520, %v3547
        %v3549 = vlaneseq
        %v3550 = vshrl.u32 %v3549, 7
        %v3551 = vsub.s32 1, %v3550
        %v3552 = vrot.slane %v3521, %v3551
        %v3553 = vlaneseq
        %v3554 = vshrl.u32 %v3553, 7
        %v3555 = vsub.s32 1, %v3554
        %v3556 = vrot.slane %v3522, %v3555
        %v3557 = vsel %vm3524, %v3528, %v3544
        %v3558 = vsel %vm3524, %v3532, %v3548
        %v3559 = vsel %vm3524, %v3536, %v3552
        %v3560 = vsel %vm3524, %v3540, %v3556
        %v3561 = vsel %vm3509, 1, 0
        %vm3562 = vcmp.eq.s32.totalorder %v3561, 1
        %v3563 = vlaneseq
        %v3564 = vshrl.u32 %v3563, 7
        %v3565 = vsub.s32 0, %v3564
        %v3566 = vrot.slane %v3489, %v3565
        %v3567 = vlaneseq
        %v3568 = vshrl.u32 %v3567, 7
        %v3569 = vsub.s32 0, %v3568
        %v3570 = vrot.slane %v3490, %v3569
        %v3571 = vlaneseq
        %v3572 = vshrl.u32 %v3571, 7
        %v3573 = vsub.s32 0, %v3572
        %v3574 = vrot.slane %v3491, %v3573
        %v3575 = vlaneseq
        %v3576 = vshrl.u32 %v3575, 7
        %v3577 = vsub.s32 0, %v3576
        %v3578 = vrot.slane %v3492, %v3577
        %v3579 = vsel %vm3562, %v3566, %v3557
        %v3580 = vsel %vm3562, %v3570, %v3558
        %v3581 = vsel %vm3562, %v3574, %v3559
        %v3582 = vsel %vm3562, %v3578, %v3560
        %s3583 = sld [smem:[#allocation2]]
        %v3584 = vstv %s3583
        %v3585 = vmul.f32 %v3584, %v2005
        %v3586 = vmul.f32 %v3584, %v2109
        %v3587 = vmul.f32 %v3584, %v2213
        %v3588 = vmul.f32 %v3584, %v2317
        %v3589 = vlaneseq
        %v3590 = vshrl.u32 %v3589, 7
        %v3591 = vsub.s32 4, %v3590
        %v3592 = vrot.slane %v3585, %v3591
        %v3593 = vlaneseq
        %v3594 = vshrl.u32 %v3593, 7
        %v3595 = vsub.s32 4, %v3594
        %v3596 = vrot.slane %v3586, %v3595
        %v3597 = vlaneseq
        %v3598 = vshrl.u32 %v3597, 7
        %v3599 = vsub.s32 4, %v3598
        %v3600 = vrot.slane %v3587, %v3599
        %v3601 = vlaneseq
        %v3602 = vshrl.u32 %v3601, 7
        %v3603 = vsub.s32 4, %v3602
        %v3604 = vrot.slane %v3588, %v3603
        %v3605 = vsel %vm3562, %v3592, 0.0
        %v3606 = vsel %vm3562, %v3596, 0.0
        %v3607 = vsel %vm3562, %v3600, 0.0
        %v3608 = vsel %vm3562, %v3604, 0.0
        %v3609 = vmul.f32 %v3579, %v3380
        %v3610 = vmul.f32 %v3580, %v3382
        %v3611 = vmul.f32 %v3581, %v3451
        %v3612 = vmul.f32 %v3582, %v3453
        %v3613 = vadd.f32 %v3609, %v3605
        %v3614 = vadd.f32 %v3610, %v3606
        %v3615 = vadd.f32 %v3611, %v3607
        %v3616 = vadd.f32 %v3612, %v3608
        %v3621 = vcombine.low %v3613, %v3614
        %v3622 = vcombine.low %v3615, %v3616
        %3625 = vst [vmem:[%s462] sm:$0x77] %v3621
        %3626 = vst [vmem:[%s462 + $0x8] sm:$0x77] %v3622
        %s3627 = sand.u32 %s336, 1
        %s3628 = scalar_lea.sflag [#allocation4], %s3627
        %s3629 = sand.u32 %s336, 1
        %s3630 = smul.addr %s3629, 16
        %s3631 = scalar_lea.vmem [#allocation3], %s3630
        // Predicated region
        $region77: #{tpu_custom_call.1} parent=75 // pred_check
          %p3632 = pneg %p346
        $region78: #{tpu_custom_call.1} parent=75 // pred_check_branch
          %3634 = sbr.rel (%p3632) target = $region80
        $region79: #{tpu_custom_call.1} parent=75 // pred_region
          %s3635 = smul.u32 4, %s29
          %s3637 = ssub.s32 256, 256
          %3638 = vsyncadd %s3628, %s3637
          %s3639 = smul.addr %s3635, 64
          %s3640 = scalar_lea.hbm %s14, %s3639
          %s3642 = sshll.u32 %s3631, 4
          %s3643 = int_to_ptr.vmem [resolvable:$true] %s3642
          %3645 = dma.vmem_to_hbm [thread:$0]  %s3643, 256, %s3640, %s3628
        $region80: #{tpu_custom_call.1} parent=75 // pred_fallthru
          _
      $region76: #{tpu_custom_call.1} parent=5 // pred_fallthru
        _
      %p3646 = scmp.le.s32.totalorder 2, %s24
      // Predicated region
      $region81: #{tpu_custom_call.1} parent=5 // pred_check
        %p3647 = pneg %p3646
      $region82: #{tpu_custom_call.1} parent=5 // pred_check_branch
        %3649 = sbr.rel (%p3647) target = $region84
      $region83: #{tpu_custom_call.1} parent=5 // pred_region
        %s3650 = ssub.s32 %s24, 2
        // Predicated region
        $region85: #{tpu_custom_call.1} parent=83 // pred_check
          %p3651 = pneg %p352
        $region86: #{tpu_custom_call.1} parent=83 // pred_check_branch
          %3653 = sbr.rel (%p3651) target = $region88
        $region87: #{tpu_custom_call.1} parent=83 // pred_region
          %s3654 = sand.u32 %s337, 1
          %s3655 = scalar_lea.sflag [#allocation4], %s3654
          %s3656 = sand.u32 %s337, 1
          %s3657 = smul.addr %s3656, 16
          %s3658 = scalar_lea.vmem [#allocation3], %s3657
          %3659 = dma.done %s3655, 256
        $region88: #{tpu_custom_call.1} parent=83 // pred_fallthru
          _
      $region84: #{tpu_custom_call.1} parent=5 // pred_fallthru
        _
    $region6: #{tpu_custom_call.1} parent=1 // loop_footer
      %s28 = sadd.s32 1, %s24
    $region7: #{tpu_custom_call.1} parent=1 // loop_footer_branch
      %23 = sbr.rel target = $region3
    $region8: #{tpu_custom_call.1} parent=1 // loop_exit
      _
    %3660 = vsyncpa [#allocation4], 1
    %s3661 = scalar_lea.sflag [#allocation4], 1
    %3662 = vsyncpa %s3661, 1

</llo_original>
